<compile_context>
chip_gen: v5e
topology: v5e:2x2
jax: 0.10.0
libtpu: 0.0.40
codegen_flags: <defaults>
</compile_context>

<pallas_src>
import functools

import jax
import jax.numpy as jnp
from jax.experimental import pallas as pl
from jax.experimental.pallas import tpu as pltpu

SQRT_HALF = 0.7071067811865476
_VMEM_LIMIT = 32 * 1024 * 1024   # raises v5e's 16 MiB scoped default; safe on v7x (64 MiB)


def _ceil_div(a, b):
    return -(-a // b)


def _erf(x):
    # Abramowitz & Stegun 7.1.26 polynomial (abs err ~1.5e-7) — reproduces
    # PyTorch's erf-based F.gelu with Mosaic-safe ops only.
    a1, a2, a3, a4, a5 = 0.254829592, -0.284496736, 1.421413741, -1.453152027, 1.061405429
    p = 0.3275911
    ax = jnp.abs(x)
    t = 1.0 / (1.0 + p * ax)
    poly = t * (a1 + t * (a2 + t * (a3 + t * (a4 + t * a5))))
    y = 1.0 - poly * jnp.exp(-ax * ax)
    return jnp.where(x >= 0, y, -y)


def _gelu(x):
    return 0.5 * x * (1.0 + _erf(x * SQRT_HALF))


# ------------------------------ row tiling --------------------------------- #

def _row_tiling(n, cap=8192, target_depth=4):
    """Pick (tile, padded_n).

    tile is a multiple of 128 (lane-dense), <= cap, and padded_n = tile * grid
    with grid >= 4 whenever n allows it (>= 2 blocks per TensorCore on v7x,
    and enough steps for the double-buffered DMA pipeline).  VMEM budget at
    width=32, tile=8192: x(bf16)+add(f32)+out(bf16)+out(f32) ~= 3 MiB per
    buffer, ~6 MiB double-buffered — far below the 32 MiB limit on every gen.
    """
    nb = _ceil_div(n, 128)                               # 128-lane blocks
    grid = max(min(target_depth, nb), _ceil_div(nb * 128, cap))
    tile = _ceil_div(nb, grid) * 128
    return tile, tile * grid


# ----------------------------- Pallas kernels ------------------------------ #

def _lift_kernel(x_ref, w_ref, b_ref, o16_ref, o32_ref):
    # fc0: Linear(1, width) in channels-first = outer-product broadcast FMA.
    # x block (1, tn) f32, w/b (width, 1) f32 -> (width, tn), dual dtype out.
    y = w_ref[...] * x_ref[...] + b_ref[...]
    o16_ref[...] = y.astype(jnp.bfloat16)
    o32_ref[...] = y


def _pointwise_add_kernel(x_ref, w_ref, b_ref, add_ref, *out_refs, apply_gelu):
    # y = W^T @ x + b + spectral_branch, optional GELU.
    #   x (ci, tn) bf16, w (co, ci) bf16, b (co, 1) f32, add (co, tn) f32.
    # out_refs: (bf16,) for the last Fourier layer, (bf16, f32) when the output
    # also feeds the next layer's FFT (f32 twin written from vregs for free).
    y = jnp.dot(w_ref[...], x_ref[...], preferred_element_type=jnp.float32)
    y = y + b_ref[...] + add_ref[...]
    if apply_gelu:
        y = _gelu(y)
    out_refs[0][...] = y.astype(out_refs[0].dtype)
    if len(out_refs) > 1:
        out_refs[1][...] = y


def _head_kernel(x_ref, w1_ref, b1_ref, w2_ref, b2_ref, o_ref):
    # Fused fc1 -> GELU -> fc2: the (64, tn) intermediate stays in VMEM.
    # Both matmuls use bf16 MXU operands with f32 accumulation; fc2 bias is a
    # scalar held in SMEM.
    h = jnp.dot(w1_ref[...], x_ref[...], preferred_element_type=jnp.float32)
    h = _gelu(h + b1_ref[...])
    y = jnp.dot(w2_ref[...], h.astype(jnp.bfloat16),
                preferred_element_type=jnp.float32)
    o_ref[...] = (y + b2_ref[0]).astype(o_ref.dtype)


# ----------------------------- kernel wrappers ----------------------------- #

def lift(x_flat, w_c, b_c, tn):
    _, n_pad = x_flat.shape
    width = w_c.shape[0]
    return pl.pallas_call(
        _lift_kernel,
        grid=(n_pad // tn,),
        in_specs=[pl.BlockSpec((1, tn), lambda i: (0, i)),
                  pl.BlockSpec((width, 1), lambda i: (0, 0)),
                  pl.BlockSpec((width, 1), lambda i: (0, 0))],
        out_specs=(pl.BlockSpec((width, tn), lambda i: (0, i)),
                   pl.BlockSpec((width, tn), lambda i: (0, i))),
        out_shape=(jax.ShapeDtypeStruct((width, n_pad), jnp.bfloat16),
                   jax.ShapeDtypeStruct((width, n_pad), jnp.float32)),
        compiler_params=pltpu.CompilerParams(
            dimension_semantics=("parallel",), vmem_limit_bytes=_VMEM_LIMIT),
    )(x_flat, w_c, b_c)


def pointwise_conv_add(x16, wT, b, add, tn, *, apply_gelu, dual_out):
    ci, n_pad = x16.shape
    co = wT.shape[0]
    kernel = functools.partial(_pointwise_add_kernel, apply_gelu=apply_gelu)
    if dual_out:
        out_shape = (jax.ShapeDtypeStruct((co, n_pad), jnp.bfloat16),
                     jax.ShapeDtypeStruct((co, n_pad), jnp.float32))
        out_specs = (pl.BlockSpec((co, tn), lambda i: (0, i)),
                     pl.BlockSpec((co, tn), lambda i: (0, i)))
    else:
        out_shape = jax.ShapeDtypeStruct((co, n_pad), jnp.bfloat16)
        out_specs = pl.BlockSpec((co, tn), lambda i: (0, i))
    return pl.pallas_call(
        kernel,
        grid=(n_pad // tn,),
        in_specs=[pl.BlockSpec((ci, tn), lambda i: (0, i)),
                  pl.BlockSpec((co, ci), lambda i: (0, 0)),
                  pl.BlockSpec((co, 1), lambda i: (0, 0)),
                  pl.BlockSpec((co, tn), lambda i: (0, i))],
        out_specs=out_specs,
        out_shape=out_shape,
        compiler_params=pltpu.CompilerParams(
            dimension_semantics=("parallel",), vmem_limit_bytes=_VMEM_LIMIT),
    )(x16, wT, b, add)


def projection_head(x16, w1T, b1, w2T, b2, tn):
    ci, n_pad = x16.shape
    hmid = w1T.shape[0]
    return pl.pallas_call(
        _head_kernel,
        grid=(n_pad // tn,),
        in_specs=[pl.BlockSpec((ci, tn), lambda i: (0, i)),
                  pl.BlockSpec((hmid, ci), lambda i: (0, 0)),
                  pl.BlockSpec((hmid, 1), lambda i: (0, 0)),
                  pl.BlockSpec((1, hmid), lambda i: (0, 0)),
                  pl.BlockSpec(memory_space=pltpu.MemorySpace.SMEM)],
        out_specs=pl.BlockSpec((1, tn), lambda i: (0, i)),
        out_shape=jax.ShapeDtypeStruct((1, n_pad), jnp.float32),
        compiler_params=pltpu.CompilerParams(
            dimension_semantics=("parallel",), vmem_limit_bytes=_VMEM_LIMIT),
    )(x16, w1T, b1, w2T, b2)


# ----------------------------- spectral branch ------------------------------ #

def spectral_conv2d(h_cf, w1, w2, m1, m2):
    # h_cf: (Ci, B, H, W) f32 (channels-first == FFT-ready, no transpose).
    # TODO(synk): rfft2/irfft2 have no Pallas primitive; the tiny per-mode
    # complex mix is left to XLA as well (a Pallas kernel here is padding-bound:
    # trailing (B, Ci) dims pad ~16x into native (8,128) tiles).
    ci, bsz, hgt, wid = h_cf.shape
    co = w1.shape[1]
    wf = wid // 2 + 1
    x_ft = jnp.fft.rfft2(h_cf)                                     # (Ci,B,H,Wf)
    lo = jnp.einsum('ibxy,ioxy->obxy', x_ft[:, :, :m1, :m2], w1)   # (Co,B,m1,m2)
    hi = jnp.einsum('ibxy,ioxy->obxy', x_ft[:, :, hgt - m1:, :m2], w2)
    # Assemble the full spectrum with one concat + one pad (no zero-init +
    # double scatter passes over the (Co,B,H,Wf) complex buffer).
    mid = jnp.zeros((co, bsz, hgt - 2 * m1, m2), jnp.complex64)
    band = jnp.concatenate([lo, mid, hi], axis=2)                  # (Co,B,H,m2)
    out_ft = jnp.pad(band, ((0, 0), (0, 0), (0, 0), (0, wf - m2)))
    return jnp.fft.irfft2(out_ft, s=(hgt, wid))                    # (Co,B,H,W) f32


# ------------------------ parameter preparation (once) ---------------------- #

def prepare_params(params):
    # Hoist weight transposes / complex packing / bf16 casts out of the forward.
    width = params['fc0_w'].shape[1]
    prep = {
        'fc0_w': params['fc0_w'].reshape(width, 1).astype(jnp.float32),
        'fc0_b': params['fc0_b'].reshape(width, 1).astype(jnp.float32),
    }
    for name in ('0', '2', '3'):
        prep[f'w{name}_wT'] = params[f'w{name}_w'].T.astype(jnp.bfloat16)       # (Co,Ci)
        prep[f'w{name}_b'] = params[f'w{name}_b'].reshape(-1, 1).astype(jnp.float32)
        prep[f'conv{name}_w1'] = (params[f'conv{name}_w1r']
                                  + 1j * params[f'conv{name}_w1i']).astype(jnp.complex64)
        prep[f'conv{name}_w2'] = (params[f'conv{name}_w2r']
                                  + 1j * params[f'conv{name}_w2i']).astype(jnp.complex64)
    prep['fc1_wT'] = params['fc1_w'].T.astype(jnp.bfloat16)                      # (64,width)
    prep['fc1_b'] = params['fc1_b'].reshape(-1, 1).astype(jnp.float32)
    prep['fc2_wT'] = params['fc2_w'].T.astype(jnp.bfloat16)                      # (1,64)
    prep['fc2_b'] = params['fc2_b'].reshape(1).astype(jnp.float32)               # SMEM scalar
    return prep


# -------------------------------- FNO2d model ------------------------------ #

def fno2d_forward(x, prep, modes1, modes2):
    # x: (B, S, S, 1) float32  ->  (B, S, S, 1) float32
    bsz, hgt, wid, _ = x.shape
    n = bsz * hgt * wid
    width = prep['fc0_w'].shape[0]
    tn, n_pad = _row_tiling(n)

    x_flat = x.reshape(1, n).astype(jnp.float32)
    if n_pad != n:
        x_flat = jnp.pad(x_flat, ((0, 0), (0, n_pad - n)))

    h16, h32 = lift(x_flat, prep['fc0_w'], prep['fc0_b'], tn)     # (width, n_pad)

    for name, act, feeds_fft in (('0', True, True), ('2', True, True), ('3', False, False)):
        h_cf = h32[:, :n].reshape(width, bsz, hgt, wid)           # f32 copy for FFT
        spec = spectral_conv2d(h_cf, prep[f'conv{name}_w1'],
                               prep[f'conv{name}_w2'], modes1, modes2)
        spec_flat = spec.reshape(width, n)                        # keep f32 (see header)
        if n_pad != n:
            spec_flat = jnp.pad(spec_flat, ((0, 0), (0, n_pad - n)))
        outs = pointwise_conv_add(h16, prep[f'w{name}_wT'], prep[f'w{name}_b'],
                                  spec_flat, tn, apply_gelu=act, dual_out=feeds_fft)
        if feeds_fft:
            h16, h32 = outs
        else:
            h16 = outs

    out = projection_head(h16, prep['fc1_wT'], prep['fc1_b'],
                          prep['fc2_wT'], prep['fc2_b'], tn)      # (1, n_pad)
    return out[:, :n].reshape(bsz, hgt, wid, 1)


# ------------------------ pure-JAX reference (check) ----------------------- #

def fno2d_reference(x, params, modes1, modes2):
    from jax.scipy.special import erf
    gelu = lambda v: 0.5 * v * (1.0 + erf(v * SQRT_HALF))
    bsz, h, w, _ = x.shape
    width = params['fc0_w'].shape[1]

    def spec(hc, name):
        x_ft = jnp.fft.rfft2(hc)
        w1 = params[f'conv{name}_w1r'] + 1j * params[f'conv{name}_w1i']
        w2 = params[f'conv{name}_w2r'] + 1j * params[f'conv{name}_w2i']
        out_ft = jnp.zeros((bsz, width, h, w // 2 + 1), jnp.complex64)
        out_ft = out_ft.at[:, :, :modes1, :modes2].set(
            jnp.einsum('bixy,ioxy->boxy', x_ft[:, :, :modes1, :modes2], w1))
        out_ft = out_ft.at[:, :, h - modes1:, :modes2].set(
            jnp.einsum('bixy,ioxy->boxy', x_ft[:, :, -modes1:, :modes2], w2))
        return jnp.fft.irfft2(out_ft, s=(h, w))

    hact = x @ params['fc0_w'] + params['fc0_b']
    for name, act in (('0', True), ('2', True), ('3', False)):
        hc = jnp.transpose(hact, (0, 3, 1, 2))
        x1 = spec(hc, name)
        x2 = jnp.einsum('bhwi,io->bhwo', hact, params[f'w{name}_w']) + params[f'w{name}_b']
        hact = jnp.transpose(x1, (0, 2, 3, 1)) + x2
        if act:
            hact = gelu(hact)
    hact = gelu(hact @ params['fc1_w'] + params['fc1_b'])
    return hact @ params['fc2_w'] + params['fc2_b']


# --------------------------------- params ---------------------------------- #

def init_params(key, modes1, modes2, width):
    ks = iter(jax.random.split(key, 40))

    def unif(shape, scale=1.0, shift=0.0):
        return scale * jax.random.uniform(next(ks), shape, dtype=jnp.float32) + shift

    p = {}
    p['fc0_w'] = unif((1, width), 2.0, -1.0)
    p['fc0_b'] = unif((width,), 0.2, -0.1)
    spec_scale = 1.0 / (width * width)
    for name in ('0', '2', '3'):
        for wname in ('w1', 'w2'):
            p[f'conv{name}_{wname}r'] = spec_scale * unif((width, width, modes1, modes2))
            p[f'conv{name}_{wname}i'] = spec_scale * unif((width, width, modes1, modes2))
        p[f'w{name}_w'] = unif((width, width), 2.0 / width, -1.0 / width)
        p[f'w{name}_b'] = unif((width,), 0.2, -0.1)
    p['fc1_w'] = unif((width, 64), 2.0 / width, -1.0 / width)
    p['fc1_b'] = unif((64,), 0.2, -0.1)
    p['fc2_w'] = unif((64, 1), 0.25, -0.125)
    p['fc2_b'] = unif((1,), 0.2, -0.1)
    return p


if __name__ == "__main__":
    B, S, MODES, WIDTH = 2, 16, 4, 32
    key = jax.random.PRNGKey(0)
    pkey, xkey = jax.random.split(key)
    params = init_params(pkey, MODES, MODES, WIDTH)
    x = jax.random.uniform(xkey, (B, S, S, 1), dtype=jnp.float32)

    prep = prepare_params(params)   # one-time layout prep + bf16/complex packing

    fwd = jax.jit(functools.partial(fno2d_forward, modes1=MODES, modes2=MODES))
    out = jax.block_until_ready(fwd(x, prep))

    ref = fno2d_reference(x, params, MODES, MODES)
    assert out.shape == (B, S, S, 1), out.shape
    # Tolerance accounts for bf16 activations / bf16 MXU operands in the
    # pointwise + head layers (f32 accumulation; spectral/FFT path stays f32).
    err = float(jnp.max(jnp.abs(out - ref)))
    assert jnp.allclose(out, ref, rtol=2e-2, atol=2e-2), err
    print("KERNEL_OK")
</pallas_src>

<mosaic_0001>
module attributes {stable_mosaic.version = 11 : i64} {
  func.func @_lift_kernel(%arg0: i32, %arg1: memref<1x128xf32, #tpu.memory_space<vmem>>, %arg2: memref<32x1xf32, #tpu.memory_space<vmem>>, %arg3: memref<32x1xf32, #tpu.memory_space<vmem>>, %arg4: memref<32x128xbf16, #tpu.memory_space<vmem>>, %arg5: memref<32x128xf32, #tpu.memory_space<vmem>>) attributes {dimension_semantics = [#tpu.dimension_semantics<parallel>], iteration_bounds = array<i64: 4>, scalar_prefetch = 0 : i64, scratch_operands = 0 : i64, tpu.core_type = #tpu.core_type<tc>, window_params = [{transform_indices = @transform_0, window_bounds = array<i64: 1, 128>}, {pipeline_mode = #tpu.pipeline_mode<synchronous>, transform_indices = @transform_1, window_bounds = array<i64: 32, 1>}, {pipeline_mode = #tpu.pipeline_mode<synchronous>, transform_indices = @transform_2, window_bounds = array<i64: 32, 1>}, {transform_indices = @transform_3, window_bounds = array<i64: 32, 128>}, {transform_indices = @transform_4, window_bounds = array<i64: 32, 128>}]} {
    %c0 = arith.constant 0 : index
    %c0_0 = arith.constant 0 : index
    %0 = vector.load %arg2[%c0, %c0_0] : memref<32x1xf32, #tpu.memory_space<vmem>>, vector<32x1xf32>
    %c0_1 = arith.constant 0 : index
    %c0_2 = arith.constant 0 : index
    %1 = vector.load %arg1[%c0_1, %c0_2] : memref<1x128xf32, #tpu.memory_space<vmem>>, vector<1x128xf32>
    %2 = vector.broadcast %0 : vector<32x1xf32> to vector<32x128xf32>
    %3 = vector.broadcast %1 : vector<1x128xf32> to vector<32x128xf32>
    %4 = arith.mulf %2, %3 : vector<32x128xf32>
    %c0_3 = arith.constant 0 : index
    %c0_4 = arith.constant 0 : index
    %5 = vector.load %arg3[%c0_3, %c0_4] : memref<32x1xf32, #tpu.memory_space<vmem>>, vector<32x1xf32>
    %6 = vector.broadcast %5 : vector<32x1xf32> to vector<32x128xf32>
    %7 = arith.addf %4, %6 : vector<32x128xf32>
    %8 = arith.truncf %7 : vector<32x128xf32> to vector<32x128xbf16>
    %c0_5 = arith.constant 0 : index
    %c0_6 = arith.constant 0 : index
    %9 = vector.load %arg4[%c0_5, %c0_6] : memref<32x128xbf16, #tpu.memory_space<vmem>>, vector<32x128xbf16>
    tpu.vector_store %arg4[%c0_5, %c0_6], %8 {strides = array<i32>} : memref<32x128xbf16, #tpu.memory_space<vmem>>, vector<32x128xbf16>,
    %c0_7 = arith.constant 0 : index
    %c0_8 = arith.constant 0 : index
    %10 = vector.load %arg5[%c0_7, %c0_8] : memref<32x128xf32, #tpu.memory_space<vmem>>, vector<32x128xf32>
    tpu.vector_store %arg5[%c0_7, %c0_8], %7 {strides = array<i32>} : memref<32x128xf32, #tpu.memory_space<vmem>>, vector<32x128xf32>,
    return
  }
  func.func @transform_0(%arg0: i32) -> (i32, i32) {
    %c0_i32 = arith.constant 0 : i32
    %c0_i32_0 = arith.constant 0 : i32
    return %c0_i32, %arg0 : i32, i32
  }
  func.func @transform_1(%arg0: i32) -> (i32, i32) {
    %c0_i32 = arith.constant 0 : i32
    %c0_i32_0 = arith.constant 0 : i32
    %c0_i32_1 = arith.constant 0 : i32
    return %c0_i32, %c0_i32_0 : i32, i32
  }
  func.func @transform_2(%arg0: i32) -> (i32, i32) {
    %c0_i32 = arith.constant 0 : i32
    %c0_i32_0 = arith.constant 0 : i32
    %c0_i32_1 = arith.constant 0 : i32
    return %c0_i32, %c0_i32_0 : i32, i32
  }
  func.func @transform_3(%arg0: i32) -> (i32, i32) {
    %c0_i32 = arith.constant 0 : i32
    %c0_i32_0 = arith.constant 0 : i32
    return %c0_i32, %arg0 : i32, i32
  }
  func.func @transform_4(%arg0: i32) -> (i32, i32) {
    %c0_i32 = arith.constant 0 : i32
    %c0_i32_0 = arith.constant 0 : i32
    return %c0_i32, %arg0 : i32, i32
  }
}

module attributes {stable_mosaic.version = 11 : i64} {
  func.func @_pointwise_add_kernel(%arg0: i32, %arg1: memref<32x128xbf16, #tpu.memory_space<vmem>>, %arg2: memref<32x32xbf16, #tpu.memory_space<vmem>>, %arg3: memref<32x1xf32, #tpu.memory_space<vmem>>, %arg4: memref<32x128xf32, #tpu.memory_space<vmem>>, %arg5: memref<32x128xbf16, #tpu.memory_space<vmem>>, %arg6: memref<32x128xf32, #tpu.memory_space<vmem>>) attributes {dimension_semantics = [#tpu.dimension_semantics<parallel>], iteration_bounds = array<i64: 4>, scalar_prefetch = 0 : i64, scratch_operands = 0 : i64, tpu.core_type = #tpu.core_type<tc>, window_params = [{transform_indices = @transform_0, window_bounds = array<i64: 32, 128>}, {pipeline_mode = #tpu.pipeline_mode<synchronous>, transform_indices = @transform_1, window_bounds = array<i64: 32, 32>}, {pipeline_mode = #tpu.pipeline_mode<synchronous>, transform_indices = @transform_2, window_bounds = array<i64: 32, 1>}, {transform_indices = @transform_3, window_bounds = array<i64: 32, 128>}, {transform_indices = @transform_4, window_bounds = array<i64: 32, 128>}, {transform_indices = @transform_5, window_bounds = array<i64: 32, 128>}]} {
    %c0 = arith.constant 0 : index
    %c0_0 = arith.constant 0 : index
    %0 = vector.load %arg2[%c0, %c0_0] : memref<32x32xbf16, #tpu.memory_space<vmem>>, vector<32x32xbf16>
    %c0_1 = arith.constant 0 : index
    %c0_2 = arith.constant 0 : index
    %1 = vector.load %arg1[%c0_1, %c0_2] : memref<32x128xbf16, #tpu.memory_space<vmem>>, vector<32x128xbf16>
    %cst = arith.constant dense<0.000000e+00> : vector<32x128xf32>
    %2 = tpu.matmul %0, %1, %cst {dimension_numbers = #tpu.dot_dimension_numbers<[1], [0], [0], [1], [0, 0, 1, 1], [], []>} : vector<32x32xbf16>, vector<32x128xbf16>, vector<32x128xf32> -> vector<32x128xf32>
    %c0_3 = arith.constant 0 : index
    %c0_4 = arith.constant 0 : index
    %3 = vector.load %arg3[%c0_3, %c0_4] : memref<32x1xf32, #tpu.memory_space<vmem>>, vector<32x1xf32>
    %4 = vector.broadcast %3 : vector<32x1xf32> to vector<32x128xf32>
    %5 = arith.addf %2, %4 : vector<32x128xf32>
    %c0_5 = arith.constant 0 : index
    %c0_6 = arith.constant 0 : index
    %6 = vector.load %arg4[%c0_5, %c0_6] : memref<32x128xf32, #tpu.memory_space<vmem>>, vector<32x128xf32>
    %7 = arith.addf %5, %6 : vector<32x128xf32>
    %cst_7 = arith.constant 5.000000e-01 : f32
    %8 = vector.broadcast %cst_7 : f32 to vector<32x128xf32>
    %9 = arith.mulf %8, %7 : vector<32x128xf32>
    %cst_8 = arith.constant 0.707106769 : f32
    %10 = vector.broadcast %cst_8 : f32 to vector<32x128xf32>
    %11 = arith.mulf %7, %10 : vector<32x128xf32>
    %12 = math.absf %11 : vector<32x128xf32>
    %cst_9 = arith.constant 0.327591091 : f32
    %13 = vector.broadcast %cst_9 : f32 to vector<32x128xf32>
    %14 = arith.mulf %13, %12 : vector<32x128xf32>
    %cst_10 = arith.constant 1.000000e+00 : f32
    %15 = vector.broadcast %cst_10 : f32 to vector<32x128xf32>
    %16 = arith.addf %15, %14 : vector<32x128xf32>
    %cst_11 = arith.constant 1.000000e+00 : f32
    %17 = vector.broadcast %cst_11 : f32 to vector<32x128xf32>
    %18 = arith.divf %17, %16 : vector<32x128xf32>
    %cst_12 = arith.constant 1.06140542 : f32
    %19 = vector.broadcast %cst_12 : f32 to vector<32x128xf32>
    %20 = arith.mulf %18, %19 : vector<32x128xf32>
    %cst_13 = arith.constant -1.45315206 : f32
    %21 = vector.broadcast %cst_13 : f32 to vector<32x128xf32>
    %22 = arith.addf %21, %20 : vector<32x128xf32>
    %23 = arith.mulf %18, %22 : vector<32x128xf32>
    %cst_14 = arith.constant 1.42141378 : f32
    %24 = vector.broadcast %cst_14 : f32 to vector<32x128xf32>
    %25 = arith.addf %24, %23 : vector<32x128xf32>
    %26 = arith.mulf %18, %25 : vector<32x128xf32>
    %cst_15 = arith.constant -0.284496725 : f32
    %27 = vector.broadcast %cst_15 : f32 to vector<32x128xf32>
    %28 = arith.addf %27, %26 : vector<32x128xf32>
    %29 = arith.mulf %18, %28 : vector<32x128xf32>
    %cst_16 = arith.constant 0.254829586 : f32
    %30 = vector.broadcast %cst_16 : f32 to vector<32x128xf32>
    %31 = arith.addf %30, %29 : vector<32x128xf32>
    %32 = arith.mulf %18, %31 : vector<32x128xf32>
    %cst_17 = arith.constant 0.000000e+00 : f32
    %33 = vector.broadcast %cst_17 : f32 to vector<32x128xf32>
    %34 = arith.subf %33, %12 : vector<32x128xf32>
    %35 = arith.mulf %34, %12 : vector<32x128xf32>
    %36 = math.exp %35 : vector<32x128xf32>
    %37 = arith.mulf %32, %36 : vector<32x128xf32>
    %cst_18 = arith.constant 1.000000e+00 : f32
    %38 = vector.broadcast %cst_18 : f32 to vector<32x128xf32>
    %39 = arith.subf %38, %37 : vector<32x128xf32>
    %cst_19 = arith.constant 0.000000e+00 : f32
    %40 = vector.broadcast %cst_19 : f32 to vector<32x128xf32>
    %41 = arith.cmpf oge, %11, %40 : vector<32x128xf32>
    %cst_20 = arith.constant 0.000000e+00 : f32
    %42 = vector.broadcast %cst_20 : f32 to vector<32x128xf32>
    %43 = arith.subf %42, %39 : vector<32x128xf32>
    %44 = arith.select %41, %39, %43 : vector<32x128xi1>, vector<32x128xf32>
    %cst_21 = arith.constant 1.000000e+00 : f32
    %45 = vector.broadcast %cst_21 : f32 to vector<32x128xf32>
    %46 = arith.addf %45, %44 : vector<32x128xf32>
    %47 = arith.mulf %9, %46 : vector<32x128xf32>
    %48 = arith.truncf %47 : vector<32x128xf32> to vector<32x128xbf16>
    %c0_22 = arith.constant 0 : index
    %c0_23 = arith.constant 0 : index
    %49 = vector.load %arg5[%c0_22, %c0_23] : memref<32x128xbf16, #tpu.memory_space<vmem>>, vector<32x128xbf16>
    tpu.vector_store %arg5[%c0_22, %c0_23], %48 {strides = array<i32>} : memref<32x128xbf16, #tpu.memory_space<vmem>>, vector<32x128xbf16>,
    %c0_24 = arith.constant 0 : index
    %c0_25 = arith.constant 0 : index
    %50 = vector.load %arg6[%c0_24, %c0_25] : memref<32x128xf32, #tpu.memory_space<vmem>>, vector<32x128xf32>
    tpu.vector_store %arg6[%c0_24, %c0_25], %47 {strides = array<i32>} : memref<32x128xf32, #tpu.memory_space<vmem>>, vector<32x128xf32>,
    return
  }
  func.func @transform_0(%arg0: i32) -> (i32, i32) {
    %c0_i32 = arith.constant 0 : i32
    %c0_i32_0 = arith.constant 0 : i32
    return %c0_i32, %arg0 : i32, i32
  }
  func.func @transform_1(%arg0: i32) -> (i32, i32) {
    %c0_i32 = arith.constant 0 : i32
    %c0_i32_0 = arith.constant 0 : i32
    %c0_i32_1 = arith.constant 0 : i32
    return %c0_i32, %c0_i32_0 : i32, i32
  }
  func.func @transform_2(%arg0: i32) -> (i32, i32) {
    %c0_i32 = arith.constant 0 : i32
    %c0_i32_0 = arith.constant 0 : i32
    %c0_i32_1 = arith.constant 0 : i32
    return %c0_i32, %c0_i32_0 : i32, i32
  }
  func.func @transform_3(%arg0: i32) -> (i32, i32) {
    %c0_i32 = arith.constant 0 : i32
    %c0_i32_0 = arith.constant 0 : i32
    return %c0_i32, %arg0 : i32, i32
  }
  func.func @transform_4(%arg0: i32) -> (i32, i32) {
    %c0_i32 = arith.constant 0 : i32
    %c0_i32_0 = arith.constant 0 : i32
    return %c0_i32, %arg0 : i32, i32
  }
  func.func @transform_5(%arg0: i32) -> (i32, i32) {
    %c0_i32 = arith.constant 0 : i32
    %c0_i32_0 = arith.constant 0 : i32
    return %c0_i32, %arg0 : i32, i32
  }
}

module attributes {stable_mosaic.version = 11 : i64} {
  func.func @_pointwise_add_kernel(%arg0: i32, %arg1: memref<32x128xbf16, #tpu.memory_space<vmem>>, %arg2: memref<32x32xbf16, #tpu.memory_space<vmem>>, %arg3: memref<32x1xf32, #tpu.memory_space<vmem>>, %arg4: memref<32x128xf32, #tpu.memory_space<vmem>>, %arg5: memref<32x128xbf16, #tpu.memory_space<vmem>>) attributes {dimension_semantics = [#tpu.dimension_semantics<parallel>], iteration_bounds = array<i64: 4>, scalar_prefetch = 0 : i64, scratch_operands = 0 : i64, tpu.core_type = #tpu.core_type<tc>, window_params = [{transform_indices = @transform_0, window_bounds = array<i64: 32, 128>}, {pipeline_mode = #tpu.pipeline_mode<synchronous>, transform_indices = @transform_1, window_bounds = array<i64: 32, 32>}, {pipeline_mode = #tpu.pipeline_mode<synchronous>, transform_indices = @transform_2, window_bounds = array<i64: 32, 1>}, {transform_indices = @transform_3, window_bounds = array<i64: 32, 128>}, {transform_indices = @transform_4, window_bounds = array<i64: 32, 128>}]} {
    %c0 = arith.constant 0 : index
    %c0_0 = arith.constant 0 : index
    %0 = vector.load %arg2[%c0, %c0_0] : memref<32x32xbf16, #tpu.memory_space<vmem>>, vector<32x32xbf16>
    %c0_1 = arith.constant 0 : index
    %c0_2 = arith.constant 0 : index
    %1 = vector.load %arg1[%c0_1, %c0_2] : memref<32x128xbf16, #tpu.memory_space<vmem>>, vector<32x128xbf16>
    %cst = arith.constant dense<0.000000e+00> : vector<32x128xf32>
    %2 = tpu.matmul %0, %1, %cst {dimension_numbers = #tpu.dot_dimension_numbers<[1], [0], [0], [1], [0, 0, 1, 1], [], []>} : vector<32x32xbf16>, vector<32x128xbf16>, vector<32x128xf32> -> vector<32x128xf32>
    %c0_3 = arith.constant 0 : index
    %c0_4 = arith.constant 0 : index
    %3 = vector.load %arg3[%c0_3, %c0_4] : memref<32x1xf32, #tpu.memory_space<vmem>>, vector<32x1xf32>
    %4 = vector.broadcast %3 : vector<32x1xf32> to vector<32x128xf32>
    %5 = arith.addf %2, %4 : vector<32x128xf32>
    %c0_5 = arith.constant 0 : index
    %c0_6 = arith.constant 0 : index
    %6 = vector.load %arg4[%c0_5, %c0_6] : memref<32x128xf32, #tpu.memory_space<vmem>>, vector<32x128xf32>
    %7 = arith.addf %5, %6 : vector<32x128xf32>
    %8 = arith.truncf %7 : vector<32x128xf32> to vector<32x128xbf16>
    %c0_7 = arith.constant 0 : index
    %c0_8 = arith.constant 0 : index
    %9 = vector.load %arg5[%c0_7, %c0_8] : memref<32x128xbf16, #tpu.memory_space<vmem>>, vector<32x128xbf16>
    tpu.vector_store %arg5[%c0_7, %c0_8], %8 {strides = array<i32>} : memref<32x128xbf16, #tpu.memory_space<vmem>>, vector<32x128xbf16>,
    return
  }
  func.func @transform_0(%arg0: i32) -> (i32, i32) {
    %c0_i32 = arith.constant 0 : i32
    %c0_i32_0 = arith.constant 0 : i32
    return %c0_i32, %arg0 : i32, i32
  }
  func.func @transform_1(%arg0: i32) -> (i32, i32) {
    %c0_i32 = arith.constant 0 : i32
    %c0_i32_0 = arith.constant 0 : i32
    %c0_i32_1 = arith.constant 0 : i32
    return %c0_i32, %c0_i32_0 : i32, i32
  }
  func.func @transform_2(%arg0: i32) -> (i32, i32) {
    %c0_i32 = arith.constant 0 : i32
    %c0_i32_0 = arith.constant 0 : i32
    %c0_i32_1 = arith.constant 0 : i32
    return %c0_i32, %c0_i32_0 : i32, i32
  }
  func.func @transform_3(%arg0: i32) -> (i32, i32) {
    %c0_i32 = arith.constant 0 : i32
    %c0_i32_0 = arith.constant 0 : i32
    return %c0_i32, %arg0 : i32, i32
  }
  func.func @transform_4(%arg0: i32) -> (i32, i32) {
    %c0_i32 = arith.constant 0 : i32
    %c0_i32_0 = arith.constant 0 : i32
    return %c0_i32, %arg0 : i32, i32
  }
}

module attributes {stable_mosaic.version = 11 : i64} {
  func.func @_head_kernel(%arg0: i32, %arg1: memref<32x128xbf16, #tpu.memory_space<vmem>>, %arg2: memref<64x32xbf16, #tpu.memory_space<vmem>>, %arg3: memref<64x1xf32, #tpu.memory_space<vmem>>, %arg4: memref<1x64xbf16, #tpu.memory_space<vmem>>, %arg5: memref<1xf32, #tpu.memory_space<smem>>, %arg6: memref<1x128xf32, #tpu.memory_space<vmem>>) attributes {dimension_semantics = [#tpu.dimension_semantics<parallel>], iteration_bounds = array<i64: 4>, scalar_prefetch = 0 : i64, scratch_operands = 0 : i64, tpu.core_type = #tpu.core_type<tc>, window_params = [{transform_indices = @transform_0, window_bounds = array<i64: 32, 128>}, {pipeline_mode = #tpu.pipeline_mode<synchronous>, transform_indices = @transform_1, window_bounds = array<i64: 64, 32>}, {pipeline_mode = #tpu.pipeline_mode<synchronous>, transform_indices = @transform_2, window_bounds = array<i64: 64, 1>}, {pipeline_mode = #tpu.pipeline_mode<synchronous>, transform_indices = @transform_3, window_bounds = array<i64: 1, 64>}, {transform_indices = @transform_4, window_bounds = array<i64: 1>}, {transform_indices = @transform_5, window_bounds = array<i64: 1, 128>}]} {
    %c0 = arith.constant 0 : index
    %c0_0 = arith.constant 0 : index
    %0 = vector.load %arg2[%c0, %c0_0] : memref<64x32xbf16, #tpu.memory_space<vmem>>, vector<64x32xbf16>
    %c0_1 = arith.constant 0 : index
    %c0_2 = arith.constant 0 : index
    %1 = vector.load %arg1[%c0_1, %c0_2] : memref<32x128xbf16, #tpu.memory_space<vmem>>, vector<32x128xbf16>
    %cst = arith.constant dense<0.000000e+00> : vector<64x128xf32>
    %2 = tpu.matmul %0, %1, %cst {dimension_numbers = #tpu.dot_dimension_numbers<[1], [0], [0], [1], [0, 0, 1, 1], [], []>} : vector<64x32xbf16>, vector<32x128xbf16>, vector<64x128xf32> -> vector<64x128xf32>
    %c0_3 = arith.constant 0 : index
    %c0_4 = arith.constant 0 : index
    %3 = vector.load %arg3[%c0_3, %c0_4] : memref<64x1xf32, #tpu.memory_space<vmem>>, vector<64x1xf32>
    %4 = vector.broadcast %3 : vector<64x1xf32> to vector<64x128xf32>
    %5 = arith.addf %2, %4 : vector<64x128xf32>
    %cst_5 = arith.constant 5.000000e-01 : f32
    %6 = vector.broadcast %cst_5 : f32 to vector<64x128xf32>
    %7 = arith.mulf %6, %5 : vector<64x128xf32>
    %cst_6 = arith.constant 0.707106769 : f32
    %8 = vector.broadcast %cst_6 : f32 to vector<64x128xf32>
    %9 = arith.mulf %5, %8 : vector<64x128xf32>
    %10 = math.absf %9 : vector<64x128xf32>
    %cst_7 = arith.constant 0.327591091 : f32
    %11 = vector.broadcast %cst_7 : f32 to vector<64x128xf32>
    %12 = arith.mulf %11, %10 : vector<64x128xf32>
    %cst_8 = arith.constant 1.000000e+00 : f32
    %13 = vector.broadcast %cst_8 : f32 to vector<64x128xf32>
    %14 = arith.addf %13, %12 : vector<64x128xf32>
    %cst_9 = arith.constant 1.000000e+00 : f32
    %15 = vector.broadcast %cst_9 : f32 to vector<64x128xf32>
    %16 = arith.divf %15, %14 : vector<64x128xf32>
    %cst_10 = arith.constant 1.06140542 : f32
    %17 = vector.broadcast %cst_10 : f32 to vector<64x128xf32>
    %18 = arith.mulf %16, %17 : vector<64x128xf32>
    %cst_11 = arith.constant -1.45315206 : f32
    %19 = vector.broadcast %cst_11 : f32 to vector<64x128xf32>
    %20 = arith.addf %19, %18 : vector<64x128xf32>
    %21 = arith.mulf %16, %20 : vector<64x128xf32>
    %cst_12 = arith.constant 1.42141378 : f32
    %22 = vector.broadcast %cst_12 : f32 to vector<64x128xf32>
    %23 = arith.addf %22, %21 : vector<64x128xf32>
    %24 = arith.mulf %16, %23 : vector<64x128xf32>
    %cst_13 = arith.constant -0.284496725 : f32
    %25 = vector.broadcast %cst_13 : f32 to vector<64x128xf32>
    %26 = arith.addf %25, %24 : vector<64x128xf32>
    %27 = arith.mulf %16, %26 : vector<64x128xf32>
    %cst_14 = arith.constant 0.254829586 : f32
    %28 = vector.broadcast %cst_14 : f32 to vector<64x128xf32>
    %29 = arith.addf %28, %27 : vector<64x128xf32>
    %30 = arith.mulf %16, %29 : vector<64x128xf32>
    %cst_15 = arith.constant 0.000000e+00 : f32
    %31 = vector.broadcast %cst_15 : f32 to vector<64x128xf32>
    %32 = arith.subf %31, %10 : vector<64x128xf32>
    %33 = arith.mulf %32, %10 : vector<64x128xf32>
    %34 = math.exp %33 : vector<64x128xf32>
    %35 = arith.mulf %30, %34 : vector<64x128xf32>
    %cst_16 = arith.constant 1.000000e+00 : f32
    %36 = vector.broadcast %cst_16 : f32 to vector<64x128xf32>
    %37 = arith.subf %36, %35 : vector<64x128xf32>
    %cst_17 = arith.constant 0.000000e+00 : f32
    %38 = vector.broadcast %cst_17 : f32 to vector<64x128xf32>
    %39 = arith.cmpf oge, %9, %38 : vector<64x128xf32>
    %cst_18 = arith.constant 0.000000e+00 : f32
    %40 = vector.broadcast %cst_18 : f32 to vector<64x128xf32>
    %41 = arith.subf %40, %37 : vector<64x128xf32>
    %42 = arith.select %39, %37, %41 : vector<64x128xi1>, vector<64x128xf32>
    %cst_19 = arith.constant 1.000000e+00 : f32
    %43 = vector.broadcast %cst_19 : f32 to vector<64x128xf32>
    %44 = arith.addf %43, %42 : vector<64x128xf32>
    %45 = arith.mulf %7, %44 : vector<64x128xf32>
    %c0_20 = arith.constant 0 : index
    %c0_21 = arith.constant 0 : index
    %46 = vector.load %arg4[%c0_20, %c0_21] : memref<1x64xbf16, #tpu.memory_space<vmem>>, vector<1x64xbf16>
    %47 = arith.truncf %45 : vector<64x128xf32> to vector<64x128xbf16>
    %cst_22 = arith.constant dense<0.000000e+00> : vector<1x128xf32>
    %48 = tpu.matmul %46, %47, %cst_22 {dimension_numbers = #tpu.dot_dimension_numbers<[1], [0], [0], [1], [0, 0, 1, 1], [], []>} : vector<1x64xbf16>, vector<64x128xbf16>, vector<1x128xf32> -> vector<1x128xf32>
    %c0_23 = arith.constant 0 : index
    %49 = memref.load %arg5[%c0_23] : memref<1xf32, #tpu.memory_space<smem>>
    %50 = vector.broadcast %49 : f32 to vector<1x128xf32>
    %51 = arith.addf %48, %50 : vector<1x128xf32>
    %c0_24 = arith.constant 0 : index
    %c0_25 = arith.constant 0 : index
    %52 = vector.load %arg6[%c0_24, %c0_25] : memref<1x128xf32, #tpu.memory_space<vmem>>, vector<1x128xf32>
    tpu.vector_store %arg6[%c0_24, %c0_25], %51 {strides = array<i32>} : memref<1x128xf32, #tpu.memory_space<vmem>>, vector<1x128xf32>,
    return
  }
  func.func @transform_0(%arg0: i32) -> (i32, i32) {
    %c0_i32 = arith.constant 0 : i32
    %c0_i32_0 = arith.constant 0 : i32
    return %c0_i32, %arg0 : i32, i32
  }
  func.func @transform_1(%arg0: i32) -> (i32, i32) {
    %c0_i32 = arith.constant 0 : i32
    %c0_i32_0 = arith.constant 0 : i32
    %c0_i32_1 = arith.constant 0 : i32
    return %c0_i32, %c0_i32_0 : i32, i32
  }
  func.func @transform_2(%arg0: i32) -> (i32, i32) {
    %c0_i32 = arith.constant 0 : i32
    %c0_i32_0 = arith.constant 0 : i32
    %c0_i32_1 = arith.constant 0 : i32
    return %c0_i32, %c0_i32_0 : i32, i32
  }
  func.func @transform_3(%arg0: i32) -> (i32, i32) {
    %c0_i32 = arith.constant 0 : i32
    %c0_i32_0 = arith.constant 0 : i32
    %c0_i32_1 = arith.constant 0 : i32
    return %c0_i32, %c0_i32_0 : i32, i32
  }
  func.func @transform_4(%arg0: i32) -> i32 {
    %c0_i32 = arith.constant 0 : i32
    %c0_i32_0 = arith.constant 0 : i32
    return %c0_i32 : i32
  }
  func.func @transform_5(%arg0: i32) -> (i32, i32) {
    %c0_i32 = arith.constant 0 : i32
    %c0_i32_0 = arith.constant 0 : i32
    return %c0_i32, %arg0 : i32, i32
  }
}

</mosaic_0001>

<llo_original>
// kernel: fno2d_forward.5
$region0: #{fno2d_forward.5}
  #allocation0 [shape = 'u32[]', space=smem, size = 0x4, offset = 0x4, fixed_abs, tag = 'smem constant byte address 0x4 - core index']
  #allocation1 [shape = 'u32[72,128]{1,0:T(1,128)}', space=vmem, size = 0x9000, scoped, tag = 'internal scratch']
  %s0 = inlined_call_operand.vmem [shape: f32[1,512], index: 0, kind: input, shape index: {}]
  %s1 = inlined_call_operand.vmem [shape: f32[32,1], index: 1, kind: input, shape index: {}]
  %s2 = inlined_call_operand.vmem [shape: f32[32,1], index: 2, kind: input, shape index: {}]
  %s3 = inlined_call_operand.vmem [shape: bf16[32,512], index: 3, kind: output, shape index: {0}]
  %s4 = inlined_call_operand.vmem [shape: f32[32,512], index: 4, kind: output, shape index: {1}]
  %5 = xla_tuple %s3, %s4
  %s6 = sld [smem:[#allocation0]]
  $region124: #{fno2d_forward.5} parent=0
    _
  %s8 = ssub.s32 1, %s6
  %s9 = scalar_select 0, %s8, %s6
  $region1: #{fno2d_forward.5} parent=0
    #allocation2 [shape = 'u8[16384]{0}', space=vmem, size = 0x4000, scoped, tag = 'output window, operand 0']
    #allocation3 [shape = 'u8[32768]{0}', space=vmem, size = 0x8000, scoped, tag = 'output window, operand 1']
    loop: start=0, step=1, limit=6
    $region2: #{fno2d_forward.5} parent=1 // loop_pre_header
      _
    $region3: #{fno2d_forward.5} parent=1 // loop_header
      %s11 = sphi 0, %s15
      %p12 = scmp.ge.s32.totalorder %s11, 6
      %s21 = sphi 0, %s23
      %s24 = sphi 0, %s21
      %s25 = sphi 0, %s24
      %s41 = sphi 0, %s25
      %s45 = sphi 0, %s45
      %s47 = sphi 0, %s45
      %s48 = sphi 0, %s47
      %s62 = sphi 0, %s48
      %s66 = sphi 0, %s66
      %s68 = sphi 0, %s66
      %s69 = sphi 0, %s68
      %s83 = sphi 0, %s69
      %s89 = sphi 0, %s91
      %s92 = sphi 0, %s89
      %s93 = sphi 0, %s92
      %s109 = sphi 0, %s93
      %s115 = sphi 0, %s117
      %s118 = sphi 0, %s115
      %s119 = sphi 0, %s118
      %s135 = sphi 0, %s119
    $region4: #{fno2d_forward.5} parent=1 // loop_header_branch
      %14 = sbr.rel (%p12) target = $region8
    $region5: #{fno2d_forward.5} parent=1 // loop_body
      %s16 = ssub.s32 %s11, 1
      %s17 = ssub.s32 %s11, 2
      %s18 = sadd.s32 %s11, 1
      %s19 = ssub.s32 %s11, %s18
      %p20 = scmp.eq.s32.totalorder %s19, 0
      %s22 = sadd.s32 %s21, 1
      %s23 = scalar_select %p20, %s21, %s22
      %p26 = pneg %p20
      %p27 = scmp.eq.s32.totalorder %s11, 3
      %p28 = por %p26, %p27
      %p29 = scmp.ne.s32.totalorder %s21, %s24
      %p30 = scmp.eq.s32.totalorder %s11, 0
      %p31 = por %p29, %p30
      %p32 = scmp.ne.s32.totalorder %s21, %s24
      %p33 = scmp.eq.s32.totalorder %s16, 3
      %p34 = por %p32, %p33
      %p35 = scmp.ne.s32.totalorder %s24, %s25
      %p36 = scmp.eq.s32.totalorder %s16, 0
      %p37 = por %p35, %p36
      %p38 = scmp.ne.s32.totalorder %s24, %s25
      %p39 = scmp.eq.s32.totalorder %s17, 3
      %p40 = por %p38, %p39
      %p42 = scmp.ne.s32.totalorder %s25, %s41
      %p43 = scmp.eq.s32.totalorder %s17, 0
      %p44 = por %p42, %p43
      %s46 = sadd.s32 %s45, 1
      %p49 = scmp.eq.s32.totalorder %s11, 3
      %p50 = scmp.ne.s32.totalorder %s45, %s47
      %p51 = scmp.eq.s32.totalorder %s11, 0
      %p52 = por %p50, %p51
      %p53 = scmp.ne.s32.totalorder %s45, %s47
      %p54 = scmp.eq.s32.totalorder %s16, 3
      %p55 = por %p53, %p54
      %p56 = scmp.ne.s32.totalorder %s47, %s48
      %p57 = scmp.eq.s32.totalorder %s16, 0
      %p58 = por %p56, %p57
      %p59 = scmp.ne.s32.totalorder %s47, %s48
      %p60 = scmp.eq.s32.totalorder %s17, 3
      %p61 = por %p59, %p60
      %p63 = scmp.ne.s32.totalorder %s48, %s62
      %p64 = scmp.eq.s32.totalorder %s17, 0
      %p65 = por %p63, %p64
      %s67 = sadd.s32 %s66, 1
      %p70 = scmp.eq.s32.totalorder %s11, 3
      %p71 = scmp.ne.s32.totalorder %s66, %s68
      %p72 = scmp.eq.s32.totalorder %s11, 0
      %p73 = por %p71, %p72
      %p74 = scmp.ne.s32.totalorder %s66, %s68
      %p75 = scmp.eq.s32.totalorder %s16, 3
      %p76 = por %p74, %p75
      %p77 = scmp.ne.s32.totalorder %s68, %s69
      %p78 = scmp.eq.s32.totalorder %s16, 0
      %p79 = por %p77, %p78
      %p80 = scmp.ne.s32.totalorder %s68, %s69
      %p81 = scmp.eq.s32.totalorder %s17, 3
      %p82 = por %p80, %p81
      %p84 = scmp.ne.s32.totalorder %s69, %s83
      %p85 = scmp.eq.s32.totalorder %s17, 0
      %p86 = por %p84, %p85
      %s87 = ssub.s32 %s11, %s18
      %p88 = scmp.eq.s32.totalorder %s87, 0
      %s90 = sadd.s32 %s89, 1
      %s91 = scalar_select %p88, %s89, %s90
      %p94 = pneg %p88
      %p95 = scmp.eq.s32.totalorder %s11, 3
      %p96 = por %p94, %p95
      %p97 = scmp.ne.s32.totalorder %s89, %s92
      %p98 = scmp.eq.s32.totalorder %s11, 0
      %p99 = por %p97, %p98
      %p100 = scmp.ne.s32.totalorder %s89, %s92
      %p101 = scmp.eq.s32.totalorder %s16, 3
      %p102 = por %p100, %p101
      %p103 = scmp.ne.s32.totalorder %s92, %s93
      %p104 = scmp.eq.s32.totalorder %s16, 0
      %p105 = por %p103, %p104
      %p106 = scmp.ne.s32.totalorder %s92, %s93
      %p107 = scmp.eq.s32.totalorder %s17, 3
      %p108 = por %p106, %p107
      %p110 = scmp.ne.s32.totalorder %s93, %s109
      %p111 = scmp.eq.s32.totalorder %s17, 0
      %p112 = por %p110, %p111
      %s113 = ssub.s32 %s11, %s18
      %p114 = scmp.eq.s32.totalorder %s113, 0
      %s116 = sadd.s32 %s115, 1
      %s117 = scalar_select %p114, %s115, %s116
      %p120 = pneg %p114
      %p121 = scmp.eq.s32.totalorder %s11, 3
      %p122 = por %p120, %p121
      %p123 = scmp.ne.s32.totalorder %s115, %s118
      %p124 = scmp.eq.s32.totalorder %s11, 0
      %p125 = por %p123, %p124
      %p126 = scmp.ne.s32.totalorder %s115, %s118
      %p127 = scmp.eq.s32.totalorder %s16, 3
      %p128 = por %p126, %p127
      %p129 = scmp.ne.s32.totalorder %s118, %s119
      %p130 = scmp.eq.s32.totalorder %s16, 0
      %p131 = por %p129, %p130
      %p132 = scmp.ne.s32.totalorder %s118, %s119
      %p133 = scmp.eq.s32.totalorder %s17, 3
      %p134 = por %p132, %p133
      %p136 = scmp.ne.s32.totalorder %s119, %s135
      %p137 = scmp.eq.s32.totalorder %s17, 0
      %p138 = por %p136, %p137
      %p139 = scmp.le.s32.totalorder 1, %s11
      %p140 = scmp.lt.s32.totalorder %s11, 5
      %p141 = pnand %p139, %p140
      %p142 = pneg %p141
      // Predicated region
      $region9: #{fno2d_forward.5} parent=5 // pred_check
        _
      $region10: #{fno2d_forward.5} parent=5 // pred_check_branch
        %144 = sbr.rel (%p141) target = $region12
      $region11: #{fno2d_forward.5} parent=5 // pred_region
        %s145 = ssub.s32 %s11, 1
        // Predicated region
        $region13: #{fno2d_forward.5} parent=11 // pred_check
          %p146 = pneg %p58
        $region14: #{fno2d_forward.5} parent=11 // pred_check_branch
          %148 = sbr.rel (%p146) target = $region16
        $region15: #{fno2d_forward.5} parent=11 // pred_region
          _
        $region16: #{fno2d_forward.5} parent=11 // pred_fallthru
          _
        // Predicated region
        $region17: #{fno2d_forward.5} parent=11 // pred_check
          %p149 = pneg %p79
        $region18: #{fno2d_forward.5} parent=11 // pred_check_branch
          %151 = sbr.rel (%p149) target = $region20
        $region19: #{fno2d_forward.5} parent=11 // pred_region
          _
        $region20: #{fno2d_forward.5} parent=11 // pred_fallthru
          _
      $region12: #{fno2d_forward.5} parent=5 // pred_fallthru
        _
      %p152 = scmp.lt.s32.totalorder %s11, 4
      // Predicated region
      $region21: #{fno2d_forward.5} parent=5 // pred_check
        %p153 = pneg %p152
      $region22: #{fno2d_forward.5} parent=5 // pred_check_branch
        %155 = sbr.rel (%p153) target = $region24
      $region23: #{fno2d_forward.5} parent=5 // pred_region
        // Predicated region
        $region25: #{fno2d_forward.5} parent=23 // pred_check
          %p156 = pneg %p31
        $region26: #{fno2d_forward.5} parent=23 // pred_check_branch
          %158 = sbr.rel (%p156) target = $region28
        $region27: #{fno2d_forward.5} parent=23 // pred_region
          %p159 = scmp.lt.s32.totalorder %s11, 3
          %s160 = scalar_select %p159, %s11, 3
          %s161 = scalar_lea.vmem %s0, %s160
        $region28: #{fno2d_forward.5} parent=23 // pred_fallthru
          _
      $region24: #{fno2d_forward.5} parent=5 // pred_fallthru
        _
      %p162 = scmp.le.s32.totalorder 1, %s11
      %p163 = scmp.lt.s32.totalorder %s11, 5
      %p164 = pnand %p162, %p163
      %p165 = pneg %p164
      // Predicated region
      $region29: #{fno2d_forward.5} parent=5 // pred_check
        _
      $region30: #{fno2d_forward.5} parent=5 // pred_check_branch
        %167 = sbr.rel (%p164) target = $region32
      $region31: #{fno2d_forward.5} parent=5 // pred_region
        %s168 = ssub.s32 %s11, 1
        %p169 = scmp.lt.s32.totalorder %s16, 3
        %s170 = scalar_select %p169, %s16, 3
        %s171 = scalar_lea.vmem %s0, %s170
        %p172 = pneg %p37
        %p173 = pneg %p34
        %p174 = pneg %p58
        %p175 = pneg %p55
        %p176 = pneg %p79
        %p177 = pneg %p76
        %p178 = pneg %p105
        %p179 = pneg %p102
        %s180 = sand.u32 %s92, 1
        %s181 = sand.u32 %s92, 1
        %s182 = smul.addr %s181, 16
        %s183 = scalar_lea.vmem [#allocation2], %s182
        %p184 = pneg %p131
        %p185 = pneg %p128
        %s186 = sand.u32 %s118, 1
        %s187 = sand.u32 %s118, 1
        %s188 = smul.addr %s187, 32
        %s189 = scalar_lea.vmem [#allocation3], %s188
        %p190 = scmp.lt.s32.totalorder %s16, 3
        %s191 = scalar_select %p190, %s16, 3
        %s192 = scalar_lea.vmem %s0, %s191
        %v193 = vld [vmem:[%s1] sm:$0xff]
        %v194 = vld [vmem:[%s1 + $0x8] sm:$0xff]
        %v195 = vld [vmem:[%s1 + $0x10] sm:$0xff]
        %v196 = vld [vmem:[%s1 + $0x18] sm:$0xff]
        %v197 = vld [vmem:[%s192] sm:$0x1]
        %199 = vset.pattern.permute.xlu0 0
        %200 = vperm.xlu0 %199, %v193
        %v201 = vpop.permute.xlu0 %200
        %204 = vset.pattern.permute.xlu0 0
        %205 = vperm.xlu0 %204, %v194
        %v206 = vpop.permute.xlu0 %205
        %209 = vset.pattern.permute.xlu0 0
        %210 = vperm.xlu0 %209, %v195
        %v211 = vpop.permute.xlu0 %210
        %214 = vset.pattern.permute.xlu0 0
        %215 = vperm.xlu0 %214, %v196
        %v216 = vpop.permute.xlu0 %215
        %v219 = vperm.slane %v197, 0
        %v221 = vmul.f32 %v201, %v219
        %v222 = vmul.f32 %v206, %v219
        %v223 = vmul.f32 %v211, %v219
        %v224 = vmul.f32 %v216, %v219
        %v225 = vld [vmem:[%s2] sm:$0xff]
        %v226 = vld [vmem:[%s2 + $0x8] sm:$0xff]
        %v227 = vld [vmem:[%s2 + $0x10] sm:$0xff]
        %v228 = vld [vmem:[%s2 + $0x18] sm:$0xff]
        %230 = vset.pattern.permute.xlu0 0
        %231 = vperm.xlu0 %230, %v225
        %v232 = vpop.permute.xlu0 %231
        %235 = vset.pattern.permute.xlu0 0
        %236 = vperm.xlu0 %235, %v226
        %v237 = vpop.permute.xlu0 %236
        %240 = vset.pattern.permute.xlu0 0
        %241 = vperm.xlu0 %240, %v227
        %v242 = vpop.permute.xlu0 %241
        %245 = vset.pattern.permute.xlu0 0
        %246 = vperm.xlu0 %245, %v228
        %v247 = vpop.permute.xlu0 %246
        %v249 = vadd.f32 %v221, %v232
        %v250 = vadd.f32 %v222, %v237
        %v251 = vadd.f32 %v223, %v242
        %v252 = vadd.f32 %v224, %v247
        %v253 = vpack.c.bf16 %v249, %v249
        %v254 = vpack.c.bf16 %v250, %v250
        %v255 = vpack.c.bf16 %v251, %v251
        %v256 = vpack.c.bf16 %v252, %v252
        %257 = vst [vmem:[%s183] sm:$0xf] %v253
        %258 = vst [vmem:[%s183 + $0x4] sm:$0xf] %v254
        %259 = vst [vmem:[%s183 + $0x8] sm:$0xf] %v255
        %260 = vst [vmem:[%s183 + $0xc] sm:$0xf] %v256
        %261 = vst [vmem:[%s189] sm:$0xff] %v249
        %262 = vst [vmem:[%s189 + $0x8] sm:$0xff] %v250
        %263 = vst [vmem:[%s189 + $0x10] sm:$0xff] %v251
        %264 = vst [vmem:[%s189 + $0x18] sm:$0xff] %v252
        %s265 = sand.u32 %s92, 1
        %s266 = sand.u32 %s92, 1
        %s267 = smul.addr %s266, 16
        %s268 = scalar_lea.vmem [#allocation2], %s267
        %s269 = sand.u32 %s118, 1
        %s270 = sand.u32 %s118, 1
        %s271 = smul.addr %s270, 32
        %s272 = scalar_lea.vmem [#allocation3], %s271
        // Predicated region
        $region33: #{fno2d_forward.5} parent=31 // pred_check
          %p273 = pneg %p102
        $region34: #{fno2d_forward.5} parent=31 // pred_check_branch
          %275 = sbr.rel (%p273) target = $region36
        $region35: #{fno2d_forward.5} parent=31 // pred_region
          %s276 = smul.addr %s16, 4
          %s277 = scalar_lea.vmem %s3, %s276
          // Predicated region
          $region37: #{fno2d_forward.5} parent=35 // pred_check
            _
          $region38: #{fno2d_forward.5} parent=35 // pred_check_branch
            %279 = sbr.rel (0) target = $region40
          $region39: #{fno2d_forward.5} parent=35 // pred_region
            // Predicated region
            $region41: #{fno2d_forward.5} parent=39 // pred_check
              _
            $region42: #{fno2d_forward.5} parent=39 // pred_check_branch
              %281 = sbr.rel target = $region44
            $region43: #{fno2d_forward.5} parent=39 // pred_region
              // Predicated region
              $region56: #{fno2d_forward.5} parent=43 // pred_check
                _
              $region57: #{fno2d_forward.5} parent=43 // pred_check_branch
                %303 = sbr.rel (0) target = $region59
              $region58: #{fno2d_forward.5} parent=43 // pred_region
                loop: start=0, step=1, limit=1
                $region60: #{fno2d_forward.5} parent=58 // loop_pre_header
                  _
                $region61: #{fno2d_forward.5} parent=58 // loop_header
                  %s305 = sphi 0, %s309
                  %p306 = scmp.ge.s32.totalorder %s305, 1
                  %s310 = sphi %s268, %s268
                  %s311 = sphi %s277, %s277
                $region62: #{fno2d_forward.5} parent=58 // loop_header_branch
                  %308 = sbr.rel (%p306) target = $region66
                $region63: #{fno2d_forward.5} parent=58 // loop_body
                  _
                $region64: #{fno2d_forward.5} parent=58 // loop_footer
                  %s309 = sadd.s32 1, %s305
                $region65: #{fno2d_forward.5} parent=58 // loop_footer_branch
                  %304 = sbr.rel target = $region61
                $region66: #{fno2d_forward.5} parent=58 // loop_exit
                  _
                %s313 = ssub.s32 16, 1
                loop: start=0, step=1, limit=1
                $region67: #{fno2d_forward.5} parent=58 // loop_pre_header
                  _
                $region68: #{fno2d_forward.5} parent=58 // loop_header
                  %s315 = sphi 0, %s319
                  %p316 = scmp.ge.s32.totalorder %s315, 1
                  %s320 = sphi %s268, %s268
                  %s321 = sphi %s277, %s277
                $region69: #{fno2d_forward.5} parent=58 // loop_header_branch
                  %318 = sbr.rel (%p316) target = $region73
                $region70: #{fno2d_forward.5} parent=58 // loop_body
                  %v322 = vld [vmem:[%s320] sm:%s313]
                  %323 = vst [vmem:[%s321] sm:%s313] %v322
                  %v324 = vld [vmem:[%s320 + $0x4] sm:%s313]
                  %325 = vst [vmem:[%s321 + $0x10] sm:%s313] %v324
                  %v326 = vld [vmem:[%s320 + $0x8] sm:%s313]
                  %327 = vst [vmem:[%s321 + $0x20] sm:%s313] %v326
                  %v328 = vld [vmem:[%s320 + $0xc] sm:%s313]
                  %329 = vst [vmem:[%s321 + $0x30] sm:%s313] %v328
                $region71: #{fno2d_forward.5} parent=58 // loop_footer
                  %s319 = sadd.s32 1, %s315
                $region72: #{fno2d_forward.5} parent=58 // loop_footer_branch
                  %314 = sbr.rel target = $region68
                $region73: #{fno2d_forward.5} parent=58 // loop_exit
                  _
              $region59: #{fno2d_forward.5} parent=43 // pred_fallthru
                _
            $region44: #{fno2d_forward.5} parent=39 // pred_fallthru
              _
            // Predicated region
            $region45: #{fno2d_forward.5} parent=39 // pred_check
              _
            $region46: #{fno2d_forward.5} parent=39 // pred_check_branch
              %283 = sbr.rel (0) target = $region48
            $region47: #{fno2d_forward.5} parent=39 // pred_region
              %s285 = ssub.s32 16, 1
              loop: start=0, step=1, limit=1
              $region49: #{fno2d_forward.5} parent=47 // loop_pre_header
                _
              $region50: #{fno2d_forward.5} parent=47 // loop_header
                %s287 = sphi 0, %s291
                %p288 = scmp.ge.s32.totalorder %s287, 1
                %s292 = sphi %s268, %s268
                %s293 = sphi %s277, %s277
              $region51: #{fno2d_forward.5} parent=47 // loop_header_branch
                %290 = sbr.rel (%p288) target = $region55
              $region52: #{fno2d_forward.5} parent=47 // loop_body
                %v294 = vld [vmem:[%s292] sm:%s285]
                %295 = vst [vmem:[%s293] sm:%s285] %v294
                %v296 = vld [vmem:[%s292 + $0x4] sm:%s285]
                %297 = vst [vmem:[%s293 + $0x10] sm:%s285] %v296
                %v298 = vld [vmem:[%s292 + $0x8] sm:%s285]
                %299 = vst [vmem:[%s293 + $0x20] sm:%s285] %v298
                %v300 = vld [vmem:[%s292 + $0xc] sm:%s285]
                %301 = vst [vmem:[%s293 + $0x30] sm:%s285] %v300
              $region53: #{fno2d_forward.5} parent=47 // loop_footer
                %s291 = sadd.s32 1, %s287
              $region54: #{fno2d_forward.5} parent=47 // loop_footer_branch
                %286 = sbr.rel target = $region50
              $region55: #{fno2d_forward.5} parent=47 // loop_exit
                _
            $region48: #{fno2d_forward.5} parent=39 // pred_fallthru
              _
          $region40: #{fno2d_forward.5} parent=35 // pred_fallthru
            _
          %330 = vnop
        $region36: #{fno2d_forward.5} parent=31 // pred_fallthru
          _
        // Predicated region
        $region74: #{fno2d_forward.5} parent=31 // pred_check
          %p331 = pneg %p128
        $region75: #{fno2d_forward.5} parent=31 // pred_check_branch
          %333 = sbr.rel (%p331) target = $region77
        $region76: #{fno2d_forward.5} parent=31 // pred_region
          %s334 = smul.addr %s16, 8
          %s335 = scalar_lea.vmem %s4, %s334
          // Predicated region
          $region78: #{fno2d_forward.5} parent=76 // pred_check
            _
          $region79: #{fno2d_forward.5} parent=76 // pred_check_branch
            %337 = sbr.rel (0) target = $region81
          $region80: #{fno2d_forward.5} parent=76 // pred_region
            // Predicated region
            $region82: #{fno2d_forward.5} parent=80 // pred_check
              _
            $region83: #{fno2d_forward.5} parent=80 // pred_check_branch
              %339 = sbr.rel (0) target = $region85
            $region84: #{fno2d_forward.5} parent=80 // pred_region
              // Predicated region
              $region97: #{fno2d_forward.5} parent=84 // pred_check
                _
              $region98: #{fno2d_forward.5} parent=84 // pred_check_branch
                %361 = sbr.rel (0) target = $region100
              $region99: #{fno2d_forward.5} parent=84 // pred_region
                loop: start=0, step=1, limit=1
                $region101: #{fno2d_forward.5} parent=99 // loop_pre_header
                  _
                $region102: #{fno2d_forward.5} parent=99 // loop_header
                  %s363 = sphi 0, %s367
                  %p364 = scmp.ge.s32.totalorder %s363, 1
                  %s368 = sphi %s272, %s272
                  %s369 = sphi %s335, %s335
                $region103: #{fno2d_forward.5} parent=99 // loop_header_branch
                  %366 = sbr.rel (%p364) target = $region107
                $region104: #{fno2d_forward.5} parent=99 // loop_body
                  %v370 = vld [vmem:[%s368] sm:$0xff]
                  %371 = vst [vmem:[%s369] sm:$0xff] %v370
                  %v372 = vld [vmem:[%s368 + $0x8] sm:$0xff]
                  %373 = vst [vmem:[%s369 + $0x20] sm:$0xff] %v372
                  %v374 = vld [vmem:[%s368 + $0x10] sm:$0xff]
                  %375 = vst [vmem:[%s369 + $0x40] sm:$0xff] %v374
                  %v376 = vld [vmem:[%s368 + $0x18] sm:$0xff]
                  %377 = vst [vmem:[%s369 + $0x60] sm:$0xff] %v376
                $region105: #{fno2d_forward.5} parent=99 // loop_footer
                  %s367 = sadd.s32 1, %s363
                $region106: #{fno2d_forward.5} parent=99 // loop_footer_branch
                  %362 = sbr.rel target = $region102
                $region107: #{fno2d_forward.5} parent=99 // loop_exit
                  _
              $region100: #{fno2d_forward.5} parent=84 // pred_fallthru
                _
              // Predicated region
              $region108: #{fno2d_forward.5} parent=84 // pred_check
                _
              $region109: #{fno2d_forward.5} parent=84 // pred_check_branch
                %379 = sbr.rel target = $region111
              $region110: #{fno2d_forward.5} parent=84 // pred_region
                _
              $region111: #{fno2d_forward.5} parent=84 // pred_fallthru
                _
            $region85: #{fno2d_forward.5} parent=80 // pred_fallthru
              _
            // Predicated region
            $region86: #{fno2d_forward.5} parent=80 // pred_check
              _
            $region87: #{fno2d_forward.5} parent=80 // pred_check_branch
              %341 = sbr.rel target = $region89
            $region88: #{fno2d_forward.5} parent=80 // pred_region
              %s343 = ssub.s32 256, 1
              loop: start=0, step=1, limit=1
              $region90: #{fno2d_forward.5} parent=88 // loop_pre_header
                _
              $region91: #{fno2d_forward.5} parent=88 // loop_header
                %s345 = sphi 0, %s349
                %p346 = scmp.ge.s32.totalorder %s345, 1
                %s350 = sphi %s272, %s272
                %s351 = sphi %s335, %s335
              $region92: #{fno2d_forward.5} parent=88 // loop_header_branch
                %348 = sbr.rel (%p346) target = $region96
              $region93: #{fno2d_forward.5} parent=88 // loop_body
                %v352 = vld [vmem:[%s350] sm:%s343]
                %353 = vst [vmem:[%s351] sm:%s343] %v352
                %v354 = vld [vmem:[%s350 + $0x8] sm:%s343]
                %355 = vst [vmem:[%s351 + $0x20] sm:%s343] %v354
                %v356 = vld [vmem:[%s350 + $0x10] sm:%s343]
                %357 = vst [vmem:[%s351 + $0x40] sm:%s343] %v356
                %v358 = vld [vmem:[%s350 + $0x18] sm:%s343]
                %359 = vst [vmem:[%s351 + $0x60] sm:%s343] %v358
              $region94: #{fno2d_forward.5} parent=88 // loop_footer
                %s349 = sadd.s32 1, %s345
              $region95: #{fno2d_forward.5} parent=88 // loop_footer_branch
                %344 = sbr.rel target = $region91
              $region96: #{fno2d_forward.5} parent=88 // loop_exit
                _
            $region89: #{fno2d_forward.5} parent=80 // pred_fallthru
              _
          $region81: #{fno2d_forward.5} parent=76 // pred_fallthru
            _
          %380 = vnop
        $region77: #{fno2d_forward.5} parent=31 // pred_fallthru
          _
      $region32: #{fno2d_forward.5} parent=5 // pred_fallthru
        _
      %p381 = scmp.le.s32.totalorder 2, %s11
      // Predicated region
      $region112: #{fno2d_forward.5} parent=5 // pred_check
        %p382 = pneg %p381
      $region113: #{fno2d_forward.5} parent=5 // pred_check_branch
        %384 = sbr.rel (%p382) target = $region115
      $region114: #{fno2d_forward.5} parent=5 // pred_region
        %s385 = ssub.s32 %s11, 2
        // Predicated region
        $region116: #{fno2d_forward.5} parent=114 // pred_check
          %p386 = pneg %p108
        $region117: #{fno2d_forward.5} parent=114 // pred_check_branch
          %388 = sbr.rel (%p386) target = $region119
        $region118: #{fno2d_forward.5} parent=114 // pred_region
          %s389 = sand.u32 %s93, 1
          %s390 = sand.u32 %s93, 1
          %s391 = smul.addr %s390, 16
          %s392 = scalar_lea.vmem [#allocation2], %s391
        $region119: #{fno2d_forward.5} parent=114 // pred_fallthru
          _
        // Predicated region
        $region120: #{fno2d_forward.5} parent=114 // pred_check
          %p393 = pneg %p134
        $region121: #{fno2d_forward.5} parent=114 // pred_check_branch
          %395 = sbr.rel (%p393) target = $region123
        $region122: #{fno2d_forward.5} parent=114 // pred_region
          %s396 = sand.u32 %s119, 1
          %s397 = sand.u32 %s119, 1
          %s398 = smul.addr %s397, 32
          %s399 = scalar_lea.vmem [#allocation3], %s398
        $region123: #{fno2d_forward.5} parent=114 // pred_fallthru
          _
      $region115: #{fno2d_forward.5} parent=5 // pred_fallthru
        _
    $region6: #{fno2d_forward.5} parent=1 // loop_footer
      %s15 = sadd.s32 1, %s11
    $region7: #{fno2d_forward.5} parent=1 // loop_footer_branch
      %10 = sbr.rel target = $region3
    $region8: #{fno2d_forward.5} parent=1 // loop_exit
      _

// kernel: custom-call
$region0: #{custom-call}
  %s0 = inlined_call_operand.hbm [shape: c64[32,32,4,4], index: 0, kind: input, shape index: {}]
  %s1 = inlined_call_operand.vmem [shape: f32[32,32,4,4], index: 1, kind: output, shape index: {}]
  $region1: #{custom-call} parent=0
    #allocation0 [shape = 's32[1]{0}', space=sflag, size = 0x4, scoped, tag = 'scoped memory for custom-call']
    %2 = vsyncpa [#allocation0], 0
    %s4 = sshll.u32 %s0, 4
    %s5 = int_to_ptr.hbm [resolvable:$true] %s4
    %s6 = sshll.u32 %s1, 4
    %s7 = int_to_ptr.vmem [resolvable:$true] %s6
    %9 = dma.hbm_to_vmem [thread:$0]  %s5, 8192, %s7, [#allocation0]
    %11 = dma.done [#allocation0], 8192
    %12 = vsyncpa [#allocation0], 1

// kernel: custom-call.1
$region0: #{custom-call.1}
  %s0 = inlined_call_operand.hbm [shape: c64[32,32,4,4], index: 0, kind: input, shape index: {}]
  %s1 = inlined_call_operand.vmem [shape: f32[32,32,4,4], index: 1, kind: output, shape index: {}]
  %s2 = scalar_lea.hbm %s0, 512
  $region1: #{custom-call.1} parent=0
    #allocation0 [shape = 's32[1]{0}', space=sflag, size = 0x4, scoped, tag = 'scoped memory for custom-call.1']
    %3 = vsyncpa [#allocation0], 0
    %s5 = sshll.u32 %s2, 4
    %s6 = int_to_ptr.hbm [resolvable:$true] %s5
    %s7 = sshll.u32 %s1, 4
    %s8 = int_to_ptr.vmem [resolvable:$true] %s7
    %10 = dma.hbm_to_vmem [thread:$0]  %s6, 8192, %s8, [#allocation0]
    %12 = dma.done [#allocation0], 8192
    %13 = vsyncpa [#allocation0], 1

// kernel: reverse.6
$region0: #{reverse.6}
  #allocation0 [shape = 's32[1]{0}', space=sflag, size = 0x4, scoped, tag = 'scoped memory for reverse.6']
  %s0 = inlined_call_operand.vmem [shape: f32[32,2,16,7], index: 0, kind: input, shape index: {}]
  %s1 = inlined_call_operand.vmem [shape: f32[32,2,16,7], index: 1, kind: output, shape index: {}]
  %s2 = scalar_lea.vmem %s0, 96
  %v3 = vld [vmem:[%s2] sm:$0xff]
  %4 = vst [vmem:[%s1] sm:$0xff] %v3
  %s5 = scalar_lea.vmem %s0, 208
  %v6 = vld [vmem:[%s5] sm:$0xff]
  %s7 = scalar_lea.vmem %s1, 112
  %8 = vst [vmem:[%s7] sm:$0xff] %v6
  %s9 = scalar_lea.vmem %s0, 80
  %v10 = vld [vmem:[%s9] sm:$0xff]
  %s11 = scalar_lea.vmem %s1, 16
  %12 = vst [vmem:[%s11] sm:$0xff] %v10
  %s13 = scalar_lea.vmem %s0, 192
  %v14 = vld [vmem:[%s13] sm:$0xff]
  %s15 = scalar_lea.vmem %s1, 128
  %16 = vst [vmem:[%s15] sm:$0xff] %v14
  %s17 = scalar_lea.vmem %s0, 64
  %v18 = vld [vmem:[%s17] sm:$0xff]
  %s19 = scalar_lea.vmem %s1, 32
  %20 = vst [vmem:[%s19] sm:$0xff] %v18
  %s21 = scalar_lea.vmem %s0, 176
  %v22 = vld [vmem:[%s21] sm:$0xff]
  %s23 = scalar_lea.vmem %s1, 144
  %24 = vst [vmem:[%s23] sm:$0xff] %v22
  %s25 = scalar_lea.vmem %s0, 48
  %v26 = vld [vmem:[%s25] sm:$0xff]
  %s27 = scalar_lea.vmem %s1, 48
  %28 = vst [vmem:[%s27] sm:$0xff] %v26
  %s29 = scalar_lea.vmem %s0, 160
  %v30 = vld [vmem:[%s29] sm:$0xff]
  %s31 = scalar_lea.vmem %s1, 160
  %32 = vst [vmem:[%s31] sm:$0xff] %v30
  %s33 = scalar_lea.vmem %s0, 32
  %v34 = vld [vmem:[%s33] sm:$0xff]
  %s35 = scalar_lea.vmem %s1, 64
  %36 = vst [vmem:[%s35] sm:$0xff] %v34
  %s37 = scalar_lea.vmem %s0, 144
  %v38 = vld [vmem:[%s37] sm:$0xff]
  %s39 = scalar_lea.vmem %s1, 176
  %40 = vst [vmem:[%s39] sm:$0xff] %v38
  %s41 = scalar_lea.vmem %s0, 16
  %v42 = vld [vmem:[%s41] sm:$0xff]
  %s43 = scalar_lea.vmem %s1, 80
  %44 = vst [vmem:[%s43] sm:$0xff] %v42
  %s45 = scalar_lea.vmem %s0, 128
  %v46 = vld [vmem:[%s45] sm:$0xff]
  %s47 = scalar_lea.vmem %s1, 192
  %48 = vst [vmem:[%s47] sm:$0xff] %v46
  %v49 = vld [vmem:[%s0] sm:$0xff]
  %s50 = scalar_lea.vmem %s1, 96
  %51 = vst [vmem:[%s50] sm:$0xff] %v49
  %s52 = scalar_lea.vmem %s0, 112
  %v53 = vld [vmem:[%s52] sm:$0xff]
  %s54 = scalar_lea.vmem %s1, 208
  %55 = vst [vmem:[%s54] sm:$0xff] %v53
  %s56 = scalar_lea.vmem %s0, 104
  %v57 = vld [vmem:[%s56] sm:$0xff]
  %s58 = scalar_lea.vmem %s1, 8
  %59 = vst [vmem:[%s58] sm:$0xff] %v57
  %s60 = scalar_lea.vmem %s0, 216
  %v61 = vld [vmem:[%s60] sm:$0xff]
  %s62 = scalar_lea.vmem %s1, 120
  %63 = vst [vmem:[%s62] sm:$0xff] %v61
  %s64 = scalar_lea.vmem %s0, 88
  %v65 = vld [vmem:[%s64] sm:$0xff]
  %s66 = scalar_lea.vmem %s1, 24
  %67 = vst [vmem:[%s66] sm:$0xff] %v65
  %s68 = scalar_lea.vmem %s0, 200
  %v69 = vld [vmem:[%s68] sm:$0xff]
  %s70 = scalar_lea.vmem %s1, 136
  %71 = vst [vmem:[%s70] sm:$0xff] %v69
  %s72 = scalar_lea.vmem %s0, 72
  %v73 = vld [vmem:[%s72] sm:$0xff]
  %s74 = scalar_lea.vmem %s1, 40
  %75 = vst [vmem:[%s74] sm:$0xff] %v73
  %s76 = scalar_lea.vmem %s0, 184
  %v77 = vld [vmem:[%s76] sm:$0xff]
  %s78 = scalar_lea.vmem %s1, 152
  %79 = vst [vmem:[%s78] sm:$0xff] %v77
  %s80 = scalar_lea.vmem %s0, 56
  %v81 = vld [vmem:[%s80] sm:$0xff]
  %s82 = scalar_lea.vmem %s1, 56
  %83 = vst [vmem:[%s82] sm:$0xff] %v81
  %s84 = scalar_lea.vmem %s0, 168
  %v85 = vld [vmem:[%s84] sm:$0xff]
  %s86 = scalar_lea.vmem %s1, 168
  %87 = vst [vmem:[%s86] sm:$0xff] %v85
  %s88 = scalar_lea.vmem %s0, 40
  %v89 = vld [vmem:[%s88] sm:$0xff]
  %s90 = scalar_lea.vmem %s1, 72
  %91 = vst [vmem:[%s90] sm:$0xff] %v89
  %s92 = scalar_lea.vmem %s0, 152
  %v93 = vld [vmem:[%s92] sm:$0xff]
  %s94 = scalar_lea.vmem %s1, 184
  %95 = vst [vmem:[%s94] sm:$0xff] %v93
  %s96 = scalar_lea.vmem %s0, 24
  %v97 = vld [vmem:[%s96] sm:$0xff]
  %s98 = scalar_lea.vmem %s1, 88
  %99 = vst [vmem:[%s98] sm:$0xff] %v97
  %s100 = scalar_lea.vmem %s0, 136
  %v101 = vld [vmem:[%s100] sm:$0xff]
  %s102 = scalar_lea.vmem %s1, 200
  %103 = vst [vmem:[%s102] sm:$0xff] %v101
  %s104 = scalar_lea.vmem %s0, 8
  %v105 = vld [vmem:[%s104] sm:$0xff]
  %s106 = scalar_lea.vmem %s1, 104
  %107 = vst [vmem:[%s106] sm:$0xff] %v105
  %s108 = scalar_lea.vmem %s0, 120
  %v109 = vld [vmem:[%s108] sm:$0xff]
  %s110 = scalar_lea.vmem %s1, 216
  %111 = vst [vmem:[%s110] sm:$0xff] %v109

// kernel: fno2d_forward.6
$region0: #{fno2d_forward.6}
  #allocation0 [shape = 'u32[]', space=smem, size = 0x4, offset = 0x4, fixed_abs, tag = 'smem constant byte address 0x4 - core index']
  #allocation1 [shape = 'u32[72,128]{1,0:T(1,128)}', space=vmem, size = 0x9000, scoped, tag = 'internal scratch']
  %s0 = inlined_call_operand.vmem [shape: bf16[32,512], index: 0, kind: input, shape index: {}]
  %s1 = inlined_call_operand.vmem [shape: bf16[32,32], index: 1, kind: input, shape index: {}]
  %s2 = inlined_call_operand.vmem [shape: f32[32,1], index: 2, kind: input, shape index: {}]
  %s3 = inlined_call_operand.vmem [shape: f32[32,512], index: 3, kind: input, shape index: {}]
  %s4 = inlined_call_operand.vmem [shape: bf16[32,512], index: 4, kind: output, shape index: {0}]
  %s5 = inlined_call_operand.vmem [shape: f32[32,512], index: 5, kind: output, shape index: {1}]
  %6 = xla_tuple %s4, %s5
  %s7 = sld [smem:[#allocation0]]
  $region207: #{fno2d_forward.6} parent=0
    _
  %s9 = ssub.s32 1, %s7
  %s10 = scalar_select 0, %s9, %s7
  $region1: #{fno2d_forward.6} parent=0
    #allocation2 [shape = 'u8[16384]{0}', space=vmem, size = 0x4000, scoped, tag = 'input window, operand 0']
    #allocation3 [shape = 'u8[32768]{0}', space=vmem, size = 0x8000, scoped, tag = 'input window, operand 3']
    #allocation4 [shape = 'u8[16384]{0}', space=vmem, size = 0x4000, scoped, tag = 'output window, operand 0']
    #allocation5 [shape = 'u8[32768]{0}', space=vmem, size = 0x8000, scoped, tag = 'output window, operand 1']
    loop: start=0, step=1, limit=6
    $region2: #{fno2d_forward.6} parent=1 // loop_pre_header
      _
    $region3: #{fno2d_forward.6} parent=1 // loop_header
      %s12 = sphi 0, %s16
      %p13 = scmp.ge.s32.totalorder %s12, 6
      %s22 = sphi 0, %s24
      %s25 = sphi 0, %s22
      %s26 = sphi 0, %s25
      %s42 = sphi 0, %s26
      %s46 = sphi 0, %s46
      %s48 = sphi 0, %s46
      %s49 = sphi 0, %s48
      %s63 = sphi 0, %s49
      %s67 = sphi 0, %s67
      %s69 = sphi 0, %s67
      %s70 = sphi 0, %s69
      %s84 = sphi 0, %s70
      %s90 = sphi 0, %s92
      %s93 = sphi 0, %s90
      %s94 = sphi 0, %s93
      %s110 = sphi 0, %s94
      %s116 = sphi 0, %s118
      %s119 = sphi 0, %s116
      %s120 = sphi 0, %s119
      %s136 = sphi 0, %s120
      %s142 = sphi 0, %s144
      %s145 = sphi 0, %s142
      %s146 = sphi 0, %s145
      %s162 = sphi 0, %s146
    $region4: #{fno2d_forward.6} parent=1 // loop_header_branch
      %15 = sbr.rel (%p13) target = $region8
    $region5: #{fno2d_forward.6} parent=1 // loop_body
      %s17 = ssub.s32 %s12, 1
      %s18 = ssub.s32 %s12, 2
      %s19 = sadd.s32 %s12, 1
      %s20 = ssub.s32 %s12, %s19
      %p21 = scmp.eq.s32.totalorder %s20, 0
      %s23 = sadd.s32 %s22, 1
      %s24 = scalar_select %p21, %s22, %s23
      %p27 = pneg %p21
      %p28 = scmp.eq.s32.totalorder %s12, 3
      %p29 = por %p27, %p28
      %p30 = scmp.ne.s32.totalorder %s22, %s25
      %p31 = scmp.eq.s32.totalorder %s12, 0
      %p32 = por %p30, %p31
      %p33 = scmp.ne.s32.totalorder %s22, %s25
      %p34 = scmp.eq.s32.totalorder %s17, 3
      %p35 = por %p33, %p34
      %p36 = scmp.ne.s32.totalorder %s25, %s26
      %p37 = scmp.eq.s32.totalorder %s17, 0
      %p38 = por %p36, %p37
      %p39 = scmp.ne.s32.totalorder %s25, %s26
      %p40 = scmp.eq.s32.totalorder %s18, 3
      %p41 = por %p39, %p40
      %p43 = scmp.ne.s32.totalorder %s26, %s42
      %p44 = scmp.eq.s32.totalorder %s18, 0
      %p45 = por %p43, %p44
      %s47 = sadd.s32 %s46, 1
      %p50 = scmp.eq.s32.totalorder %s12, 3
      %p51 = scmp.ne.s32.totalorder %s46, %s48
      %p52 = scmp.eq.s32.totalorder %s12, 0
      %p53 = por %p51, %p52
      %p54 = scmp.ne.s32.totalorder %s46, %s48
      %p55 = scmp.eq.s32.totalorder %s17, 3
      %p56 = por %p54, %p55
      %p57 = scmp.ne.s32.totalorder %s48, %s49
      %p58 = scmp.eq.s32.totalorder %s17, 0
      %p59 = por %p57, %p58
      %p60 = scmp.ne.s32.totalorder %s48, %s49
      %p61 = scmp.eq.s32.totalorder %s18, 3
      %p62 = por %p60, %p61
      %p64 = scmp.ne.s32.totalorder %s49, %s63
      %p65 = scmp.eq.s32.totalorder %s18, 0
      %p66 = por %p64, %p65
      %s68 = sadd.s32 %s67, 1
      %p71 = scmp.eq.s32.totalorder %s12, 3
      %p72 = scmp.ne.s32.totalorder %s67, %s69
      %p73 = scmp.eq.s32.totalorder %s12, 0
      %p74 = por %p72, %p73
      %p75 = scmp.ne.s32.totalorder %s67, %s69
      %p76 = scmp.eq.s32.totalorder %s17, 3
      %p77 = por %p75, %p76
      %p78 = scmp.ne.s32.totalorder %s69, %s70
      %p79 = scmp.eq.s32.totalorder %s17, 0
      %p80 = por %p78, %p79
      %p81 = scmp.ne.s32.totalorder %s69, %s70
      %p82 = scmp.eq.s32.totalorder %s18, 3
      %p83 = por %p81, %p82
      %p85 = scmp.ne.s32.totalorder %s70, %s84
      %p86 = scmp.eq.s32.totalorder %s18, 0
      %p87 = por %p85, %p86
      %s88 = ssub.s32 %s12, %s19
      %p89 = scmp.eq.s32.totalorder %s88, 0
      %s91 = sadd.s32 %s90, 1
      %s92 = scalar_select %p89, %s90, %s91
      %p95 = pneg %p89
      %p96 = scmp.eq.s32.totalorder %s12, 3
      %p97 = por %p95, %p96
      %p98 = scmp.ne.s32.totalorder %s90, %s93
      %p99 = scmp.eq.s32.totalorder %s12, 0
      %p100 = por %p98, %p99
      %p101 = scmp.ne.s32.totalorder %s90, %s93
      %p102 = scmp.eq.s32.totalorder %s17, 3
      %p103 = por %p101, %p102
      %p104 = scmp.ne.s32.totalorder %s93, %s94
      %p105 = scmp.eq.s32.totalorder %s17, 0
      %p106 = por %p104, %p105
      %p107 = scmp.ne.s32.totalorder %s93, %s94
      %p108 = scmp.eq.s32.totalorder %s18, 3
      %p109 = por %p107, %p108
      %p111 = scmp.ne.s32.totalorder %s94, %s110
      %p112 = scmp.eq.s32.totalorder %s18, 0
      %p113 = por %p111, %p112
      %s114 = ssub.s32 %s12, %s19
      %p115 = scmp.eq.s32.totalorder %s114, 0
      %s117 = sadd.s32 %s116, 1
      %s118 = scalar_select %p115, %s116, %s117
      %p121 = pneg %p115
      %p122 = scmp.eq.s32.totalorder %s12, 3
      %p123 = por %p121, %p122
      %p124 = scmp.ne.s32.totalorder %s116, %s119
      %p125 = scmp.eq.s32.totalorder %s12, 0
      %p126 = por %p124, %p125
      %p127 = scmp.ne.s32.totalorder %s116, %s119
      %p128 = scmp.eq.s32.totalorder %s17, 3
      %p129 = por %p127, %p128
      %p130 = scmp.ne.s32.totalorder %s119, %s120
      %p131 = scmp.eq.s32.totalorder %s17, 0
      %p132 = por %p130, %p131
      %p133 = scmp.ne.s32.totalorder %s119, %s120
      %p134 = scmp.eq.s32.totalorder %s18, 3
      %p135 = por %p133, %p134
      %p137 = scmp.ne.s32.totalorder %s120, %s136
      %p138 = scmp.eq.s32.totalorder %s18, 0
      %p139 = por %p137, %p138
      %s140 = ssub.s32 %s12, %s19
      %p141 = scmp.eq.s32.totalorder %s140, 0
      %s143 = sadd.s32 %s142, 1
      %s144 = scalar_select %p141, %s142, %s143
      %p147 = pneg %p141
      %p148 = scmp.eq.s32.totalorder %s12, 3
      %p149 = por %p147, %p148
      %p150 = scmp.ne.s32.totalorder %s142, %s145
      %p151 = scmp.eq.s32.totalorder %s12, 0
      %p152 = por %p150, %p151
      %p153 = scmp.ne.s32.totalorder %s142, %s145
      %p154 = scmp.eq.s32.totalorder %s17, 3
      %p155 = por %p153, %p154
      %p156 = scmp.ne.s32.totalorder %s145, %s146
      %p157 = scmp.eq.s32.totalorder %s17, 0
      %p158 = por %p156, %p157
      %p159 = scmp.ne.s32.totalorder %s145, %s146
      %p160 = scmp.eq.s32.totalorder %s18, 3
      %p161 = por %p159, %p160
      %p163 = scmp.ne.s32.totalorder %s146, %s162
      %p164 = scmp.eq.s32.totalorder %s18, 0
      %p165 = por %p163, %p164
      %p166 = scmp.le.s32.totalorder 1, %s12
      %p167 = scmp.lt.s32.totalorder %s12, 5
      %p168 = pnand %p166, %p167
      %p169 = pneg %p168
      // Predicated region
      $region9: #{fno2d_forward.6} parent=5 // pred_check
        _
      $region10: #{fno2d_forward.6} parent=5 // pred_check_branch
        %171 = sbr.rel (%p168) target = $region12
      $region11: #{fno2d_forward.6} parent=5 // pred_region
        %s172 = ssub.s32 %s12, 1
        // Predicated region
        $region13: #{fno2d_forward.6} parent=11 // pred_check
          %p173 = pneg %p59
        $region14: #{fno2d_forward.6} parent=11 // pred_check_branch
          %175 = sbr.rel (%p173) target = $region16
        $region15: #{fno2d_forward.6} parent=11 // pred_region
          _
        $region16: #{fno2d_forward.6} parent=11 // pred_fallthru
          _
        // Predicated region
        $region17: #{fno2d_forward.6} parent=11 // pred_check
          %p176 = pneg %p80
        $region18: #{fno2d_forward.6} parent=11 // pred_check_branch
          %178 = sbr.rel (%p176) target = $region20
        $region19: #{fno2d_forward.6} parent=11 // pred_region
          _
        $region20: #{fno2d_forward.6} parent=11 // pred_fallthru
          _
      $region12: #{fno2d_forward.6} parent=5 // pred_fallthru
        _
      %p179 = scmp.lt.s32.totalorder %s12, 4
      // Predicated region
      $region21: #{fno2d_forward.6} parent=5 // pred_check
        %p180 = pneg %p179
      $region22: #{fno2d_forward.6} parent=5 // pred_check_branch
        %182 = sbr.rel (%p180) target = $region24
      $region23: #{fno2d_forward.6} parent=5 // pred_region
        // Predicated region
        $region25: #{fno2d_forward.6} parent=23 // pred_check
          %p183 = pneg %p32
        $region26: #{fno2d_forward.6} parent=23 // pred_check_branch
          %185 = sbr.rel (%p183) target = $region28
        $region27: #{fno2d_forward.6} parent=23 // pred_region
          %s186 = sand.u32 %s22, 1
          %s187 = sand.u32 %s22, 1
          %s188 = smul.addr %s187, 16
          %s189 = scalar_lea.vmem [#allocation2], %s188
          %s190 = smul.addr %s12, 4
          %s191 = scalar_lea.vmem %s0, %s190
          // Predicated region
          $region29: #{fno2d_forward.6} parent=27 // pred_check
            _
          $region30: #{fno2d_forward.6} parent=27 // pred_check_branch
            %193 = sbr.rel (0) target = $region32
          $region31: #{fno2d_forward.6} parent=27 // pred_region
            // Predicated region
            $region33: #{fno2d_forward.6} parent=31 // pred_check
              _
            $region34: #{fno2d_forward.6} parent=31 // pred_check_branch
              %195 = sbr.rel target = $region36
            $region35: #{fno2d_forward.6} parent=31 // pred_region
              // Predicated region
              $region48: #{fno2d_forward.6} parent=35 // pred_check
                _
              $region49: #{fno2d_forward.6} parent=35 // pred_check_branch
                %217 = sbr.rel (0) target = $region51
              $region50: #{fno2d_forward.6} parent=35 // pred_region
                loop: start=0, step=1, limit=1
                $region52: #{fno2d_forward.6} parent=50 // loop_pre_header
                  _
                $region53: #{fno2d_forward.6} parent=50 // loop_header
                  %s219 = sphi 0, %s223
                  %p220 = scmp.ge.s32.totalorder %s219, 1
                  %s224 = sphi %s191, %s191
                  %s225 = sphi %s189, %s189
                $region54: #{fno2d_forward.6} parent=50 // loop_header_branch
                  %222 = sbr.rel (%p220) target = $region58
                $region55: #{fno2d_forward.6} parent=50 // loop_body
                  _
                $region56: #{fno2d_forward.6} parent=50 // loop_footer
                  %s223 = sadd.s32 1, %s219
                $region57: #{fno2d_forward.6} parent=50 // loop_footer_branch
                  %218 = sbr.rel target = $region53
                $region58: #{fno2d_forward.6} parent=50 // loop_exit
                  _
                %s227 = ssub.s32 16, 1
                loop: start=0, step=1, limit=1
                $region59: #{fno2d_forward.6} parent=50 // loop_pre_header
                  _
                $region60: #{fno2d_forward.6} parent=50 // loop_header
                  %s229 = sphi 0, %s233
                  %p230 = scmp.ge.s32.totalorder %s229, 1
                  %s234 = sphi %s191, %s191
                  %s235 = sphi %s189, %s189
                $region61: #{fno2d_forward.6} parent=50 // loop_header_branch
                  %232 = sbr.rel (%p230) target = $region65
                $region62: #{fno2d_forward.6} parent=50 // loop_body
                  %v236 = vld [vmem:[%s234] sm:%s227]
                  %237 = vst [vmem:[%s235] sm:%s227] %v236
                  %v238 = vld [vmem:[%s234 + $0x10] sm:%s227]
                  %239 = vst [vmem:[%s235 + $0x4] sm:%s227] %v238
                  %v240 = vld [vmem:[%s234 + $0x20] sm:%s227]
                  %241 = vst [vmem:[%s235 + $0x8] sm:%s227] %v240
                  %v242 = vld [vmem:[%s234 + $0x30] sm:%s227]
                  %243 = vst [vmem:[%s235 + $0xc] sm:%s227] %v242
                $region63: #{fno2d_forward.6} parent=50 // loop_footer
                  %s233 = sadd.s32 1, %s229
                $region64: #{fno2d_forward.6} parent=50 // loop_footer_branch
                  %228 = sbr.rel target = $region60
                $region65: #{fno2d_forward.6} parent=50 // loop_exit
                  _
              $region51: #{fno2d_forward.6} parent=35 // pred_fallthru
                _
            $region36: #{fno2d_forward.6} parent=31 // pred_fallthru
              _
            // Predicated region
            $region37: #{fno2d_forward.6} parent=31 // pred_check
              _
            $region38: #{fno2d_forward.6} parent=31 // pred_check_branch
              %197 = sbr.rel (0) target = $region40
            $region39: #{fno2d_forward.6} parent=31 // pred_region
              %s199 = ssub.s32 16, 1
              loop: start=0, step=1, limit=1
              $region41: #{fno2d_forward.6} parent=39 // loop_pre_header
                _
              $region42: #{fno2d_forward.6} parent=39 // loop_header
                %s201 = sphi 0, %s205
                %p202 = scmp.ge.s32.totalorder %s201, 1
                %s206 = sphi %s191, %s191
                %s207 = sphi %s189, %s189
              $region43: #{fno2d_forward.6} parent=39 // loop_header_branch
                %204 = sbr.rel (%p202) target = $region47
              $region44: #{fno2d_forward.6} parent=39 // loop_body
                %v208 = vld [vmem:[%s206] sm:%s199]
                %209 = vst [vmem:[%s207] sm:%s199] %v208
                %v210 = vld [vmem:[%s206 + $0x10] sm:%s199]
                %211 = vst [vmem:[%s207 + $0x4] sm:%s199] %v210
                %v212 = vld [vmem:[%s206 + $0x20] sm:%s199]
                %213 = vst [vmem:[%s207 + $0x8] sm:%s199] %v212
                %v214 = vld [vmem:[%s206 + $0x30] sm:%s199]
                %215 = vst [vmem:[%s207 + $0xc] sm:%s199] %v214
              $region45: #{fno2d_forward.6} parent=39 // loop_footer
                %s205 = sadd.s32 1, %s201
              $region46: #{fno2d_forward.6} parent=39 // loop_footer_branch
                %200 = sbr.rel target = $region42
              $region47: #{fno2d_forward.6} parent=39 // loop_exit
                _
            $region40: #{fno2d_forward.6} parent=31 // pred_fallthru
              _
          $region32: #{fno2d_forward.6} parent=27 // pred_fallthru
            _
          %244 = vnop
        $region28: #{fno2d_forward.6} parent=23 // pred_fallthru
          _
        // Predicated region
        $region66: #{fno2d_forward.6} parent=23 // pred_check
          %p245 = pneg %p100
        $region67: #{fno2d_forward.6} parent=23 // pred_check_branch
          %247 = sbr.rel (%p245) target = $region69
        $region68: #{fno2d_forward.6} parent=23 // pred_region
          %s248 = sand.u32 %s90, 1
          %s249 = sand.u32 %s90, 1
          %s250 = smul.addr %s249, 32
          %s251 = scalar_lea.vmem [#allocation3], %s250
          %s252 = smul.addr %s12, 8
          %s253 = scalar_lea.vmem %s3, %s252
          // Predicated region
          $region70: #{fno2d_forward.6} parent=68 // pred_check
            _
          $region71: #{fno2d_forward.6} parent=68 // pred_check_branch
            %255 = sbr.rel (0) target = $region73
          $region72: #{fno2d_forward.6} parent=68 // pred_region
            // Predicated region
            $region74: #{fno2d_forward.6} parent=72 // pred_check
              _
            $region75: #{fno2d_forward.6} parent=72 // pred_check_branch
              %257 = sbr.rel (0) target = $region77
            $region76: #{fno2d_forward.6} parent=72 // pred_region
              // Predicated region
              $region89: #{fno2d_forward.6} parent=76 // pred_check
                _
              $region90: #{fno2d_forward.6} parent=76 // pred_check_branch
                %279 = sbr.rel (0) target = $region92
              $region91: #{fno2d_forward.6} parent=76 // pred_region
                loop: start=0, step=1, limit=1
                $region93: #{fno2d_forward.6} parent=91 // loop_pre_header
                  _
                $region94: #{fno2d_forward.6} parent=91 // loop_header
                  %s281 = sphi 0, %s285
                  %p282 = scmp.ge.s32.totalorder %s281, 1
                  %s286 = sphi %s253, %s253
                  %s287 = sphi %s251, %s251
                $region95: #{fno2d_forward.6} parent=91 // loop_header_branch
                  %284 = sbr.rel (%p282) target = $region99
                $region96: #{fno2d_forward.6} parent=91 // loop_body
                  %v288 = vld [vmem:[%s286] sm:$0xff]
                  %289 = vst [vmem:[%s287] sm:$0xff] %v288
                  %v290 = vld [vmem:[%s286 + $0x20] sm:$0xff]
                  %291 = vst [vmem:[%s287 + $0x8] sm:$0xff] %v290
                  %v292 = vld [vmem:[%s286 + $0x40] sm:$0xff]
                  %293 = vst [vmem:[%s287 + $0x10] sm:$0xff] %v292
                  %v294 = vld [vmem:[%s286 + $0x60] sm:$0xff]
                  %295 = vst [vmem:[%s287 + $0x18] sm:$0xff] %v294
                $region97: #{fno2d_forward.6} parent=91 // loop_footer
                  %s285 = sadd.s32 1, %s281
                $region98: #{fno2d_forward.6} parent=91 // loop_footer_branch
                  %280 = sbr.rel target = $region94
                $region99: #{fno2d_forward.6} parent=91 // loop_exit
                  _
              $region92: #{fno2d_forward.6} parent=76 // pred_fallthru
                _
              // Predicated region
              $region100: #{fno2d_forward.6} parent=76 // pred_check
                _
              $region101: #{fno2d_forward.6} parent=76 // pred_check_branch
                %297 = sbr.rel target = $region103
              $region102: #{fno2d_forward.6} parent=76 // pred_region
                _
              $region103: #{fno2d_forward.6} parent=76 // pred_fallthru
                _
            $region77: #{fno2d_forward.6} parent=72 // pred_fallthru
              _
            // Predicated region
            $region78: #{fno2d_forward.6} parent=72 // pred_check
              _
            $region79: #{fno2d_forward.6} parent=72 // pred_check_branch
              %259 = sbr.rel target = $region81
            $region80: #{fno2d_forward.6} parent=72 // pred_region
              %s261 = ssub.s32 256, 1
              loop: start=0, step=1, limit=1
              $region82: #{fno2d_forward.6} parent=80 // loop_pre_header
                _
              $region83: #{fno2d_forward.6} parent=80 // loop_header
                %s263 = sphi 0, %s267
                %p264 = scmp.ge.s32.totalorder %s263, 1
                %s268 = sphi %s253, %s253
                %s269 = sphi %s251, %s251
              $region84: #{fno2d_forward.6} parent=80 // loop_header_branch
                %266 = sbr.rel (%p264) target = $region88
              $region85: #{fno2d_forward.6} parent=80 // loop_body
                %v270 = vld [vmem:[%s268] sm:%s261]
                %271 = vst [vmem:[%s269] sm:%s261] %v270
                %v272 = vld [vmem:[%s268 + $0x20] sm:%s261]
                %273 = vst [vmem:[%s269 + $0x8] sm:%s261] %v272
                %v274 = vld [vmem:[%s268 + $0x40] sm:%s261]
                %275 = vst [vmem:[%s269 + $0x10] sm:%s261] %v274
                %v276 = vld [vmem:[%s268 + $0x60] sm:%s261]
                %277 = vst [vmem:[%s269 + $0x18] sm:%s261] %v276
              $region86: #{fno2d_forward.6} parent=80 // loop_footer
                %s267 = sadd.s32 1, %s263
              $region87: #{fno2d_forward.6} parent=80 // loop_footer_branch
                %262 = sbr.rel target = $region83
              $region88: #{fno2d_forward.6} parent=80 // loop_exit
                _
            $region81: #{fno2d_forward.6} parent=72 // pred_fallthru
              _
          $region73: #{fno2d_forward.6} parent=68 // pred_fallthru
            _
          %298 = vnop
        $region69: #{fno2d_forward.6} parent=23 // pred_fallthru
          _
      $region24: #{fno2d_forward.6} parent=5 // pred_fallthru
        _
      %p299 = scmp.le.s32.totalorder 1, %s12
      %p300 = scmp.lt.s32.totalorder %s12, 5
      %p301 = pnand %p299, %p300
      %p302 = pneg %p301
      // Predicated region
      $region104: #{fno2d_forward.6} parent=5 // pred_check
        _
      $region105: #{fno2d_forward.6} parent=5 // pred_check_branch
        %304 = sbr.rel (%p301) target = $region107
      $region106: #{fno2d_forward.6} parent=5 // pred_region
        %s305 = ssub.s32 %s12, 1
        %s306 = sand.u32 %s25, 1
        %s307 = sand.u32 %s25, 1
        %s308 = smul.addr %s307, 16
        %s309 = scalar_lea.vmem [#allocation2], %s308
        // Predicated region
        $region108: #{fno2d_forward.6} parent=106 // pred_check
          %p310 = pneg %p38
        $region109: #{fno2d_forward.6} parent=106 // pred_check_branch
          %312 = sbr.rel (%p310) target = $region111
        $region110: #{fno2d_forward.6} parent=106 // pred_region
          _
        $region111: #{fno2d_forward.6} parent=106 // pred_fallthru
          _
        %s313 = sand.u32 %s93, 1
        %s314 = sand.u32 %s93, 1
        %s315 = smul.addr %s314, 32
        %s316 = scalar_lea.vmem [#allocation3], %s315
        // Predicated region
        $region112: #{fno2d_forward.6} parent=106 // pred_check
          %p317 = pneg %p106
        $region113: #{fno2d_forward.6} parent=106 // pred_check_branch
          %319 = sbr.rel (%p317) target = $region115
        $region114: #{fno2d_forward.6} parent=106 // pred_region
          _
        $region115: #{fno2d_forward.6} parent=106 // pred_fallthru
          _
        %s320 = sand.u32 %s25, 1
        %s321 = sand.u32 %s25, 1
        %s322 = smul.addr %s321, 16
        %s323 = scalar_lea.vmem [#allocation2], %s322
        %p324 = pneg %p38
        %p325 = pneg %p35
        %p326 = pneg %p59
        %p327 = pneg %p56
        %p328 = pneg %p80
        %p329 = pneg %p77
        %s330 = sand.u32 %s93, 1
        %s331 = sand.u32 %s93, 1
        %s332 = smul.addr %s331, 32
        %s333 = scalar_lea.vmem [#allocation3], %s332
        %p334 = pneg %p106
        %p335 = pneg %p103
        %p336 = pneg %p132
        %p337 = pneg %p129
        %s338 = sand.u32 %s119, 1
        %s339 = sand.u32 %s119, 1
        %s340 = smul.addr %s339, 16
        %s341 = scalar_lea.vmem [#allocation4], %s340
        %p342 = pneg %p158
        %p343 = pneg %p155
        %s344 = sand.u32 %s145, 1
        %s345 = sand.u32 %s145, 1
        %s346 = smul.addr %s345, 32
        %s347 = scalar_lea.vmem [#allocation5], %s346
        %v349 = vld [vmem:[%s1] sm:$0xf]
        %v350 = vld [vmem:[%s1 + $0x4] sm:$0xf]
        %v351 = vld [vmem:[%s1 + $0x8] sm:$0xf]
        %v352 = vld [vmem:[%s1 + $0xc] sm:$0xf]
        %v353 = vld [vmem:[%s309] sm:$0xf]
        %v354 = vld [vmem:[%s309 + $0x4] sm:$0xf]
        %v355 = vld [vmem:[%s309 + $0x8] sm:$0xf]
        %v356 = vld [vmem:[%s309 + $0xc] sm:$0xf]
        %v357 = vld [vmem:[%s2] sm:$0xff]
        %v358 = vld [vmem:[%s2 + $0x8] sm:$0xff]
        %v359 = vld [vmem:[%s2 + $0x10] sm:$0xff]
        %v360 = vld [vmem:[%s2 + $0x18] sm:$0xff]
        %362 = vset.pattern.permute.xlu0 0
        %363 = vperm.xlu0 %362, %v357
        %v364 = vpop.permute.xlu0 %363
        %367 = vset.pattern.permute.xlu0 0
        %368 = vperm.xlu0 %367, %v358
        %v369 = vpop.permute.xlu0 %368
        %372 = vset.pattern.permute.xlu0 0
        %373 = vperm.xlu0 %372, %v359
        %v374 = vpop.permute.xlu0 %373
        %377 = vset.pattern.permute.xlu0 0
        %378 = vperm.xlu0 %377, %v360
        %v379 = vpop.permute.xlu0 %378
        %v385 = vunpack.c.l.b16 %v349
        %v386 = vunpack.c.l.b16 %v350
        %v387 = vunpack.c.l.b16 %v351
        %v388 = vunpack.c.l.b16 %v352
        %v389 = vpack.c.b16 %v386, %v385
        %v390 = vpack.c.b16 %v388, %v387
        %v395 = vunpack.c.l.b16 %v353
        %v396 = vunpack.c.l.b16 %v354
        %v397 = vunpack.c.l.b16 %v355
        %v398 = vunpack.c.l.b16 %v356
        %v399 = vpack.c.b16 %v396, %v395
        %v400 = vpack.c.b16 %v398, %v397
        %vm403 = vcmask 261120
        %v405 = vsel %vm403, %v389, 0
        %v408 = vsel %vm403, %v390, 0
        %410 = vmatpush.bf16.msra.mxu0 0
        %411 = vmatpush.bf16.msra.mxu0 0
        %412 = vmatpush.bf16.msra.mxu0 0
        %413 = vmatpush.bf16.msra.mxu0 0
        %414 = vmatpush.bf16.msra.mxu0 0
        %415 = vmatpush.bf16.msra.mxu0 0
        %416 = vmatpush.bf16.msra.mxu0 %v400
        %417 = vmatpush.bf16.msra.mxu0 %v399
        %418 = vmatmul.bf16.gmra.mxu0 %v405
        %v419 = vpop.f32.mrf.mxu0
        %v420 = vadd.f32 %v364, %v419
        %v421 = vpop.f32.mrf.mxu0
        %v422 = vadd.f32 %v369, %v421
        %423 = vmatmul.bf16.gmra.mxu0 %v408
        %v424 = vpop.f32.mrf.mxu0
        %v425 = vadd.f32 %v374, %v424
        %v426 = vpop.f32.mrf.mxu0
        %v427 = vadd.f32 %v379, %v426
        %428 = vdwg.mxu0
        %v429 = vld [vmem:[%s316] sm:$0xff]
        %v430 = vld [vmem:[%s316 + $0x8] sm:$0xff]
        %v431 = vld [vmem:[%s316 + $0x10] sm:$0xff]
        %v432 = vld [vmem:[%s316 + $0x18] sm:$0xff]
        %v433 = vadd.f32 %v420, %v429
        %v434 = vadd.f32 %v422, %v430
        %v435 = vadd.f32 %v425, %v431
        %v436 = vadd.f32 %v427, %v432
        %v437 = vmul.f32 %v433, 0.5
        %v438 = vmul.f32 %v434, 0.5
        %v439 = vmul.f32 %v435, 0.5
        %v440 = vmul.f32 %v436, 0.5
        %v441 = vmul.f32 %v433, 0.70710677
        %v442 = vmul.f32 %v434, 0.70710677
        %v443 = vmul.f32 %v435, 0.70710677
        %v444 = vmul.f32 %v436, 0.70710677
        %v445 = vand.u32 2147483647, %v441
        %v446 = vand.u32 2147483647, %v442
        %v447 = vand.u32 2147483647, %v443
        %v448 = vand.u32 2147483647, %v444
        %v449 = vmul.f32 %v445, 0.3275911
        %v450 = vmul.f32 %v446, 0.3275911
        %v451 = vmul.f32 %v447, 0.3275911
        %v452 = vmul.f32 %v448, 0.3275911
        %v453 = vadd.f32 %v449, 1.0
        %v454 = vadd.f32 %v450, 1.0
        %v455 = vadd.f32 %v451, 1.0
        %v456 = vadd.f32 %v452, 1.0
        %v457 = vrcp.pop %v453
        %v458 = vmul.f32 %v453, %v457
        %v459 = vsub.f32 1.0, %v458
        %v460 = vmul.f32 %v457, %v459
        %v461 = vadd.f32 %v457, %v460
        %vm462 = vweird.f32 %v453
        %vm463 = vweird.f32 %v457
        %vm464 = vmor %vm462, %vm463
        %v465 = vsel %vm464, %v457, %v461
        %v466 = vand.u32 2147483647, %v453
        %vm467 = vcmp.eq.f32.partialorder %v466, 8.507059e+37
        %v468 = vand.u32 %v453, 2147483648
        %v469 = vor.u32 1.1754944e-38, %v468
        %v470 = vsel %vm467, %v469, %v465
        %v471 = vmul.f32 1.0, %v470
        %v472 = vrcp.pop %v454
        %v473 = vmul.f32 %v454, %v472
        %v474 = vsub.f32 1.0, %v473
        %v475 = vmul.f32 %v472, %v474
        %v476 = vadd.f32 %v472, %v475
        %vm477 = vweird.f32 %v454
        %vm478 = vweird.f32 %v472
        %vm479 = vmor %vm477, %vm478
        %v480 = vsel %vm479, %v472, %v476
        %v481 = vand.u32 2147483647, %v454
        %vm482 = vcmp.eq.f32.partialorder %v481, 8.507059e+37
        %v483 = vand.u32 %v454, 2147483648
        %v484 = vor.u32 1.1754944e-38, %v483
        %v485 = vsel %vm482, %v484, %v480
        %v486 = vmul.f32 1.0, %v485
        %v487 = vrcp.pop %v455
        %v488 = vmul.f32 %v455, %v487
        %v489 = vsub.f32 1.0, %v488
        %v490 = vmul.f32 %v487, %v489
        %v491 = vadd.f32 %v487, %v490
        %vm492 = vweird.f32 %v455
        %vm493 = vweird.f32 %v487
        %vm494 = vmor %vm492, %vm493
        %v495 = vsel %vm494, %v487, %v491
        %v496 = vand.u32 2147483647, %v455
        %vm497 = vcmp.eq.f32.partialorder %v496, 8.507059e+37
        %v498 = vand.u32 %v455, 2147483648
        %v499 = vor.u32 1.1754944e-38, %v498
        %v500 = vsel %vm497, %v499, %v495
        %v501 = vmul.f32 1.0, %v500
        %v502 = vrcp.pop %v456
        %v503 = vmul.f32 %v456, %v502
        %v504 = vsub.f32 1.0, %v503
        %v505 = vmul.f32 %v502, %v504
        %v506 = vadd.f32 %v502, %v505
        %vm507 = vweird.f32 %v456
        %vm508 = vweird.f32 %v502
        %vm509 = vmor %vm507, %vm508
        %v510 = vsel %vm509, %v502, %v506
        %v511 = vand.u32 2147483647, %v456
        %vm512 = vcmp.eq.f32.partialorder %v511, 8.507059e+37
        %v513 = vand.u32 %v456, 2147483648
        %v514 = vor.u32 1.1754944e-38, %v513
        %v515 = vsel %vm512, %v514, %v510
        %v516 = vmul.f32 1.0, %v515
        %v517 = vmul.f32 %v471, 1.0614054
        %v518 = vmul.f32 %v486, 1.0614054
        %v519 = vmul.f32 %v501, 1.0614054
        %v520 = vmul.f32 %v516, 1.0614054
        %v521 = vadd.f32 %v517, -1.4531521
        %v522 = vadd.f32 %v518, -1.4531521
        %v523 = vadd.f32 %v519, -1.4531521
        %v524 = vadd.f32 %v520, -1.4531521
        %v525 = vmul.f32 %v471, %v521
        %v526 = vmul.f32 %v486, %v522
        %v527 = vmul.f32 %v501, %v523
        %v528 = vmul.f32 %v516, %v524
        %v529 = vadd.f32 %v525, 1.4214138
        %v530 = vadd.f32 %v526, 1.4214138
        %v531 = vadd.f32 %v527, 1.4214138
        %v532 = vadd.f32 %v528, 1.4214138
        %v533 = vmul.f32 %v471, %v529
        %v534 = vmul.f32 %v486, %v530
        %v535 = vmul.f32 %v501, %v531
        %v536 = vmul.f32 %v516, %v532
        %v537 = vadd.f32 %v533, -0.28449672
        %v538 = vadd.f32 %v534, -0.28449672
        %v539 = vadd.f32 %v535, -0.28449672
        %v540 = vadd.f32 %v536, -0.28449672
        %v541 = vmul.f32 %v471, %v537
        %v542 = vmul.f32 %v486, %v538
        %v543 = vmul.f32 %v501, %v539
        %v544 = vmul.f32 %v516, %v540
        %v545 = vadd.f32 %v541, 0.2548296
        %v546 = vadd.f32 %v542, 0.2548296
        %v547 = vadd.f32 %v543, 0.2548296
        %v548 = vadd.f32 %v544, 0.2548296
        %v549 = vmul.f32 %v471, %v545
        %v550 = vmul.f32 %v486, %v546
        %v551 = vmul.f32 %v501, %v547
        %v552 = vmul.f32 %v516, %v548
        %v553 = vsub.f32 0.0, %v445
        %v554 = vsub.f32 0.0, %v446
        %v555 = vsub.f32 0.0, %v447
        %v556 = vsub.f32 0.0, %v448
        %v557 = vmul.f32 %v553, %v445
        %v558 = vmul.f32 %v554, %v446
        %v559 = vmul.f32 %v555, %v447
        %v560 = vmul.f32 %v556, %v448
        %v561 = vmul.f32 %v557, 1.442695
        %v562 = vpow.pop %v561
        %v563 = vmul.f32 %v558, 1.442695
        %v564 = vpow.pop %v563
        %v565 = vmul.f32 %v559, 1.442695
        %v566 = vpow.pop %v565
        %v567 = vmul.f32 %v560, 1.442695
        %v568 = vpow.pop %v567
        %v569 = vmul.f32 %v549, %v562
        %v570 = vmul.f32 %v550, %v564
        %v571 = vmul.f32 %v551, %v566
        %v572 = vmul.f32 %v552, %v568
        %v573 = vsub.f32 1.0, %v569
        %v574 = vsub.f32 1.0, %v570
        %v575 = vsub.f32 1.0, %v571
        %v576 = vsub.f32 1.0, %v572
        %vm577 = vcmp.ge.f32.partialorder %v441, 0.0
        %vm578 = vcmp.ge.f32.partialorder %v442, 0.0
        %vm579 = vcmp.ge.f32.partialorder %v443, 0.0
        %vm580 = vcmp.ge.f32.partialorder %v444, 0.0
        %v581 = vsub.f32 0.0, %v573
        %v582 = vsub.f32 0.0, %v574
        %v583 = vsub.f32 0.0, %v575
        %v584 = vsub.f32 0.0, %v576
        %v585 = vsel %vm577, %v573, %v581
        %v586 = vsel %vm578, %v574, %v582
        %v587 = vsel %vm579, %v575, %v583
        %v588 = vsel %vm580, %v576, %v584
        %v589 = vadd.f32 %v585, 1.0
        %v590 = vadd.f32 %v586, 1.0
        %v591 = vadd.f32 %v587, 1.0
        %v592 = vadd.f32 %v588, 1.0
        %v593 = vmul.f32 %v437, %v589
        %v594 = vmul.f32 %v438, %v590
        %v595 = vmul.f32 %v439, %v591
        %v596 = vmul.f32 %v440, %v592
        %v597 = vpack.c.bf16 %v593, %v593
        %v598 = vpack.c.bf16 %v594, %v594
        %v599 = vpack.c.bf16 %v595, %v595
        %v600 = vpack.c.bf16 %v596, %v596
        %601 = vst [vmem:[%s341] sm:$0xf] %v597
        %602 = vst [vmem:[%s341 + $0x4] sm:$0xf] %v598
        %603 = vst [vmem:[%s341 + $0x8] sm:$0xf] %v599
        %604 = vst [vmem:[%s341 + $0xc] sm:$0xf] %v600
        %605 = vst [vmem:[%s347] sm:$0xff] %v593
        %606 = vst [vmem:[%s347 + $0x8] sm:$0xff] %v594
        %607 = vst [vmem:[%s347 + $0x10] sm:$0xff] %v595
        %608 = vst [vmem:[%s347 + $0x18] sm:$0xff] %v596
        %s609 = sand.u32 %s119, 1
        %s610 = sand.u32 %s119, 1
        %s611 = smul.addr %s610, 16
        %s612 = scalar_lea.vmem [#allocation4], %s611
        %s613 = sand.u32 %s145, 1
        %s614 = sand.u32 %s145, 1
        %s615 = smul.addr %s614, 32
        %s616 = scalar_lea.vmem [#allocation5], %s615
        // Predicated region
        $region116: #{fno2d_forward.6} parent=106 // pred_check
          %p617 = pneg %p129
        $region117: #{fno2d_forward.6} parent=106 // pred_check_branch
          %619 = sbr.rel (%p617) target = $region119
        $region118: #{fno2d_forward.6} parent=106 // pred_region
          %s620 = smul.addr %s17, 4
          %s621 = scalar_lea.vmem %s4, %s620
          // Predicated region
          $region120: #{fno2d_forward.6} parent=118 // pred_check
            _
          $region121: #{fno2d_forward.6} parent=118 // pred_check_branch
            %623 = sbr.rel (0) target = $region123
          $region122: #{fno2d_forward.6} parent=118 // pred_region
            // Predicated region
            $region124: #{fno2d_forward.6} parent=122 // pred_check
              _
            $region125: #{fno2d_forward.6} parent=122 // pred_check_branch
              %625 = sbr.rel target = $region127
            $region126: #{fno2d_forward.6} parent=122 // pred_region
              // Predicated region
              $region139: #{fno2d_forward.6} parent=126 // pred_check
                _
              $region140: #{fno2d_forward.6} parent=126 // pred_check_branch
                %647 = sbr.rel (0) target = $region142
              $region141: #{fno2d_forward.6} parent=126 // pred_region
                loop: start=0, step=1, limit=1
                $region143: #{fno2d_forward.6} parent=141 // loop_pre_header
                  _
                $region144: #{fno2d_forward.6} parent=141 // loop_header
                  %s649 = sphi 0, %s653
                  %p650 = scmp.ge.s32.totalorder %s649, 1
                  %s654 = sphi %s612, %s612
                  %s655 = sphi %s621, %s621
                $region145: #{fno2d_forward.6} parent=141 // loop_header_branch
                  %652 = sbr.rel (%p650) target = $region149
                $region146: #{fno2d_forward.6} parent=141 // loop_body
                  _
                $region147: #{fno2d_forward.6} parent=141 // loop_footer
                  %s653 = sadd.s32 1, %s649
                $region148: #{fno2d_forward.6} parent=141 // loop_footer_branch
                  %648 = sbr.rel target = $region144
                $region149: #{fno2d_forward.6} parent=141 // loop_exit
                  _
                %s657 = ssub.s32 16, 1
                loop: start=0, step=1, limit=1
                $region150: #{fno2d_forward.6} parent=141 // loop_pre_header
                  _
                $region151: #{fno2d_forward.6} parent=141 // loop_header
                  %s659 = sphi 0, %s663
                  %p660 = scmp.ge.s32.totalorder %s659, 1
                  %s664 = sphi %s612, %s612
                  %s665 = sphi %s621, %s621
                $region152: #{fno2d_forward.6} parent=141 // loop_header_branch
                  %662 = sbr.rel (%p660) target = $region156
                $region153: #{fno2d_forward.6} parent=141 // loop_body
                  %v666 = vld [vmem:[%s664] sm:%s657]
                  %667 = vst [vmem:[%s665] sm:%s657] %v666
                  %v668 = vld [vmem:[%s664 + $0x4] sm:%s657]
                  %669 = vst [vmem:[%s665 + $0x10] sm:%s657] %v668
                  %v670 = vld [vmem:[%s664 + $0x8] sm:%s657]
                  %671 = vst [vmem:[%s665 + $0x20] sm:%s657] %v670
                  %v672 = vld [vmem:[%s664 + $0xc] sm:%s657]
                  %673 = vst [vmem:[%s665 + $0x30] sm:%s657] %v672
                $region154: #{fno2d_forward.6} parent=141 // loop_footer
                  %s663 = sadd.s32 1, %s659
                $region155: #{fno2d_forward.6} parent=141 // loop_footer_branch
                  %658 = sbr.rel target = $region151
                $region156: #{fno2d_forward.6} parent=141 // loop_exit
                  _
              $region142: #{fno2d_forward.6} parent=126 // pred_fallthru
                _
            $region127: #{fno2d_forward.6} parent=122 // pred_fallthru
              _
            // Predicated region
            $region128: #{fno2d_forward.6} parent=122 // pred_check
              _
            $region129: #{fno2d_forward.6} parent=122 // pred_check_branch
              %627 = sbr.rel (0) target = $region131
            $region130: #{fno2d_forward.6} parent=122 // pred_region
              %s629 = ssub.s32 16, 1
              loop: start=0, step=1, limit=1
              $region132: #{fno2d_forward.6} parent=130 // loop_pre_header
                _
              $region133: #{fno2d_forward.6} parent=130 // loop_header
                %s631 = sphi 0, %s635
                %p632 = scmp.ge.s32.totalorder %s631, 1
                %s636 = sphi %s612, %s612
                %s637 = sphi %s621, %s621
              $region134: #{fno2d_forward.6} parent=130 // loop_header_branch
                %634 = sbr.rel (%p632) target = $region138
              $region135: #{fno2d_forward.6} parent=130 // loop_body
                %v638 = vld [vmem:[%s636] sm:%s629]
                %639 = vst [vmem:[%s637] sm:%s629] %v638
                %v640 = vld [vmem:[%s636 + $0x4] sm:%s629]
                %641 = vst [vmem:[%s637 + $0x10] sm:%s629] %v640
                %v642 = vld [vmem:[%s636 + $0x8] sm:%s629]
                %643 = vst [vmem:[%s637 + $0x20] sm:%s629] %v642
                %v644 = vld [vmem:[%s636 + $0xc] sm:%s629]
                %645 = vst [vmem:[%s637 + $0x30] sm:%s629] %v644
              $region136: #{fno2d_forward.6} parent=130 // loop_footer
                %s635 = sadd.s32 1, %s631
              $region137: #{fno2d_forward.6} parent=130 // loop_footer_branch
                %630 = sbr.rel target = $region133
              $region138: #{fno2d_forward.6} parent=130 // loop_exit
                _
            $region131: #{fno2d_forward.6} parent=122 // pred_fallthru
              _
          $region123: #{fno2d_forward.6} parent=118 // pred_fallthru
            _
          %674 = vnop
        $region119: #{fno2d_forward.6} parent=106 // pred_fallthru
          _
        // Predicated region
        $region157: #{fno2d_forward.6} parent=106 // pred_check
          %p675 = pneg %p155
        $region158: #{fno2d_forward.6} parent=106 // pred_check_branch
          %677 = sbr.rel (%p675) target = $region160
        $region159: #{fno2d_forward.6} parent=106 // pred_region
          %s678 = smul.addr %s17, 8
          %s679 = scalar_lea.vmem %s5, %s678
          // Predicated region
          $region161: #{fno2d_forward.6} parent=159 // pred_check
            _
          $region162: #{fno2d_forward.6} parent=159 // pred_check_branch
            %681 = sbr.rel (0) target = $region164
          $region163: #{fno2d_forward.6} parent=159 // pred_region
            // Predicated region
            $region165: #{fno2d_forward.6} parent=163 // pred_check
              _
            $region166: #{fno2d_forward.6} parent=163 // pred_check_branch
              %683 = sbr.rel (0) target = $region168
            $region167: #{fno2d_forward.6} parent=163 // pred_region
              // Predicated region
              $region180: #{fno2d_forward.6} parent=167 // pred_check
                _
              $region181: #{fno2d_forward.6} parent=167 // pred_check_branch
                %705 = sbr.rel (0) target = $region183
              $region182: #{fno2d_forward.6} parent=167 // pred_region
                loop: start=0, step=1, limit=1
                $region184: #{fno2d_forward.6} parent=182 // loop_pre_header
                  _
                $region185: #{fno2d_forward.6} parent=182 // loop_header
                  %s707 = sphi 0, %s711
                  %p708 = scmp.ge.s32.totalorder %s707, 1
                  %s712 = sphi %s616, %s616
                  %s713 = sphi %s679, %s679
                $region186: #{fno2d_forward.6} parent=182 // loop_header_branch
                  %710 = sbr.rel (%p708) target = $region190
                $region187: #{fno2d_forward.6} parent=182 // loop_body
                  %v714 = vld [vmem:[%s712] sm:$0xff]
                  %715 = vst [vmem:[%s713] sm:$0xff] %v714
                  %v716 = vld [vmem:[%s712 + $0x8] sm:$0xff]
                  %717 = vst [vmem:[%s713 + $0x20] sm:$0xff] %v716
                  %v718 = vld [vmem:[%s712 + $0x10] sm:$0xff]
                  %719 = vst [vmem:[%s713 + $0x40] sm:$0xff] %v718
                  %v720 = vld [vmem:[%s712 + $0x18] sm:$0xff]
                  %721 = vst [vmem:[%s713 + $0x60] sm:$0xff] %v720
                $region188: #{fno2d_forward.6} parent=182 // loop_footer
                  %s711 = sadd.s32 1, %s707
                $region189: #{fno2d_forward.6} parent=182 // loop_footer_branch
                  %706 = sbr.rel target = $region185
                $region190: #{fno2d_forward.6} parent=182 // loop_exit
                  _
              $region183: #{fno2d_forward.6} parent=167 // pred_fallthru
                _
              // Predicated region
              $region191: #{fno2d_forward.6} parent=167 // pred_check
                _
              $region192: #{fno2d_forward.6} parent=167 // pred_check_branch
                %723 = sbr.rel target = $region194
              $region193: #{fno2d_forward.6} parent=167 // pred_region
                _
              $region194: #{fno2d_forward.6} parent=167 // pred_fallthru
                _
            $region168: #{fno2d_forward.6} parent=163 // pred_fallthru
              _
            // Predicated region
            $region169: #{fno2d_forward.6} parent=163 // pred_check
              _
            $region170: #{fno2d_forward.6} parent=163 // pred_check_branch
              %685 = sbr.rel target = $region172
            $region171: #{fno2d_forward.6} parent=163 // pred_region
              %s687 = ssub.s32 256, 1
              loop: start=0, step=1, limit=1
              $region173: #{fno2d_forward.6} parent=171 // loop_pre_header
                _
              $region174: #{fno2d_forward.6} parent=171 // loop_header
                %s689 = sphi 0, %s693
                %p690 = scmp.ge.s32.totalorder %s689, 1
                %s694 = sphi %s616, %s616
                %s695 = sphi %s679, %s679
              $region175: #{fno2d_forward.6} parent=171 // loop_header_branch
                %692 = sbr.rel (%p690) target = $region179
              $region176: #{fno2d_forward.6} parent=171 // loop_body
                %v696 = vld [vmem:[%s694] sm:%s687]
                %697 = vst [vmem:[%s695] sm:%s687] %v696
                %v698 = vld [vmem:[%s694 + $0x8] sm:%s687]
                %699 = vst [vmem:[%s695 + $0x20] sm:%s687] %v698
                %v700 = vld [vmem:[%s694 + $0x10] sm:%s687]
                %701 = vst [vmem:[%s695 + $0x40] sm:%s687] %v700
                %v702 = vld [vmem:[%s694 + $0x18] sm:%s687]
                %703 = vst [vmem:[%s695 + $0x60] sm:%s687] %v702
              $region177: #{fno2d_forward.6} parent=171 // loop_footer
                %s693 = sadd.s32 1, %s689
              $region178: #{fno2d_forward.6} parent=171 // loop_footer_branch
                %688 = sbr.rel target = $region174
              $region179: #{fno2d_forward.6} parent=171 // loop_exit
                _
            $region172: #{fno2d_forward.6} parent=163 // pred_fallthru
              _
          $region164: #{fno2d_forward.6} parent=159 // pred_fallthru
            _
          %724 = vnop
        $region160: #{fno2d_forward.6} parent=106 // pred_fallthru
          _
      $region107: #{fno2d_forward.6} parent=5 // pred_fallthru
        _
      %p725 = scmp.le.s32.totalorder 2, %s12
      // Predicated region
      $region195: #{fno2d_forward.6} parent=5 // pred_check
        %p726 = pneg %p725
      $region196: #{fno2d_forward.6} parent=5 // pred_check_branch
        %728 = sbr.rel (%p726) target = $region198
      $region197: #{fno2d_forward.6} parent=5 // pred_region
        %s729 = ssub.s32 %s12, 2
        // Predicated region
        $region199: #{fno2d_forward.6} parent=197 // pred_check
          %p730 = pneg %p135
        $region200: #{fno2d_forward.6} parent=197 // pred_check_branch
          %732 = sbr.rel (%p730) target = $region202
        $region201: #{fno2d_forward.6} parent=197 // pred_region
          %s733 = sand.u32 %s120, 1
          %s734 = sand.u32 %s120, 1
          %s735 = smul.addr %s734, 16
          %s736 = scalar_lea.vmem [#allocation4], %s735
        $region202: #{fno2d_forward.6} parent=197 // pred_fallthru
          _
        // Predicated region
        $region203: #{fno2d_forward.6} parent=197 // pred_check
          %p737 = pneg %p161
        $region204: #{fno2d_forward.6} parent=197 // pred_check_branch
          %739 = sbr.rel (%p737) target = $region206
        $region205: #{fno2d_forward.6} parent=197 // pred_region
          %s740 = sand.u32 %s146, 1
          %s741 = sand.u32 %s146, 1
          %s742 = smul.addr %s741, 32
          %s743 = scalar_lea.vmem [#allocation5], %s742
        $region206: #{fno2d_forward.6} parent=197 // pred_fallthru
          _
      $region198: #{fno2d_forward.6} parent=5 // pred_fallthru
        _
    $region6: #{fno2d_forward.6} parent=1 // loop_footer
      %s16 = sadd.s32 1, %s12
    $region7: #{fno2d_forward.6} parent=1 // loop_footer_branch
      %11 = sbr.rel target = $region3
    $region8: #{fno2d_forward.6} parent=1 // loop_exit
      _

// kernel: fno2d_forward.8
$region0: #{fno2d_forward.8}
  #allocation0 [shape = 'u32[]', space=smem, size = 0x4, offset = 0x4, fixed_abs, tag = 'smem constant byte address 0x4 - core index']
  #allocation1 [shape = 'u32[72,128]{1,0:T(1,128)}', space=vmem, size = 0x9000, scoped, tag = 'internal scratch']
  %s0 = inlined_call_operand.vmem [shape: bf16[32,512], index: 0, kind: input, shape index: {}]
  %s1 = inlined_call_operand.vmem [shape: bf16[32,32], index: 1, kind: input, shape index: {}]
  %s2 = inlined_call_operand.vmem [shape: f32[32,1], index: 2, kind: input, shape index: {}]
  %s3 = inlined_call_operand.vmem [shape: f32[32,512], index: 3, kind: input, shape index: {}]
  %s4 = inlined_call_operand.vmem [shape: bf16[32,512], index: 4, kind: output, shape index: {}]
  %s5 = sld [smem:[#allocation0]]
  $region165: #{fno2d_forward.8} parent=0
    _
  %s7 = ssub.s32 1, %s5
  %s8 = scalar_select 0, %s7, %s5
  $region1: #{fno2d_forward.8} parent=0
    #allocation2 [shape = 'u8[16384]{0}', space=vmem, size = 0x4000, scoped, tag = 'input window, operand 0']
    #allocation3 [shape = 'u8[32768]{0}', space=vmem, size = 0x8000, scoped, tag = 'input window, operand 3']
    #allocation4 [shape = 'u8[16384]{0}', space=vmem, size = 0x4000, scoped, tag = 'output window, operand 0']
    loop: start=0, step=1, limit=6
    $region2: #{fno2d_forward.8} parent=1 // loop_pre_header
      _
    $region3: #{fno2d_forward.8} parent=1 // loop_header
      %s10 = sphi 0, %s14
      %p11 = scmp.ge.s32.totalorder %s10, 6
      %s20 = sphi 0, %s22
      %s23 = sphi 0, %s20
      %s24 = sphi 0, %s23
      %s40 = sphi 0, %s24
      %s44 = sphi 0, %s44
      %s46 = sphi 0, %s44
      %s47 = sphi 0, %s46
      %s61 = sphi 0, %s47
      %s65 = sphi 0, %s65
      %s67 = sphi 0, %s65
      %s68 = sphi 0, %s67
      %s82 = sphi 0, %s68
      %s88 = sphi 0, %s90
      %s91 = sphi 0, %s88
      %s92 = sphi 0, %s91
      %s108 = sphi 0, %s92
      %s114 = sphi 0, %s116
      %s117 = sphi 0, %s114
      %s118 = sphi 0, %s117
      %s134 = sphi 0, %s118
    $region4: #{fno2d_forward.8} parent=1 // loop_header_branch
      %13 = sbr.rel (%p11) target = $region8
    $region5: #{fno2d_forward.8} parent=1 // loop_body
      %s15 = ssub.s32 %s10, 1
      %s16 = ssub.s32 %s10, 2
      %s17 = sadd.s32 %s10, 1
      %s18 = ssub.s32 %s10, %s17
      %p19 = scmp.eq.s32.totalorder %s18, 0
      %s21 = sadd.s32 %s20, 1
      %s22 = scalar_select %p19, %s20, %s21
      %p25 = pneg %p19
      %p26 = scmp.eq.s32.totalorder %s10, 3
      %p27 = por %p25, %p26
      %p28 = scmp.ne.s32.totalorder %s20, %s23
      %p29 = scmp.eq.s32.totalorder %s10, 0
      %p30 = por %p28, %p29
      %p31 = scmp.ne.s32.totalorder %s20, %s23
      %p32 = scmp.eq.s32.totalorder %s15, 3
      %p33 = por %p31, %p32
      %p34 = scmp.ne.s32.totalorder %s23, %s24
      %p35 = scmp.eq.s32.totalorder %s15, 0
      %p36 = por %p34, %p35
      %p37 = scmp.ne.s32.totalorder %s23, %s24
      %p38 = scmp.eq.s32.totalorder %s16, 3
      %p39 = por %p37, %p38
      %p41 = scmp.ne.s32.totalorder %s24, %s40
      %p42 = scmp.eq.s32.totalorder %s16, 0
      %p43 = por %p41, %p42
      %s45 = sadd.s32 %s44, 1
      %p48 = scmp.eq.s32.totalorder %s10, 3
      %p49 = scmp.ne.s32.totalorder %s44, %s46
      %p50 = scmp.eq.s32.totalorder %s10, 0
      %p51 = por %p49, %p50
      %p52 = scmp.ne.s32.totalorder %s44, %s46
      %p53 = scmp.eq.s32.totalorder %s15, 3
      %p54 = por %p52, %p53
      %p55 = scmp.ne.s32.totalorder %s46, %s47
      %p56 = scmp.eq.s32.totalorder %s15, 0
      %p57 = por %p55, %p56
      %p58 = scmp.ne.s32.totalorder %s46, %s47
      %p59 = scmp.eq.s32.totalorder %s16, 3
      %p60 = por %p58, %p59
      %p62 = scmp.ne.s32.totalorder %s47, %s61
      %p63 = scmp.eq.s32.totalorder %s16, 0
      %p64 = por %p62, %p63
      %s66 = sadd.s32 %s65, 1
      %p69 = scmp.eq.s32.totalorder %s10, 3
      %p70 = scmp.ne.s32.totalorder %s65, %s67
      %p71 = scmp.eq.s32.totalorder %s10, 0
      %p72 = por %p70, %p71
      %p73 = scmp.ne.s32.totalorder %s65, %s67
      %p74 = scmp.eq.s32.totalorder %s15, 3
      %p75 = por %p73, %p74
      %p76 = scmp.ne.s32.totalorder %s67, %s68
      %p77 = scmp.eq.s32.totalorder %s15, 0
      %p78 = por %p76, %p77
      %p79 = scmp.ne.s32.totalorder %s67, %s68
      %p80 = scmp.eq.s32.totalorder %s16, 3
      %p81 = por %p79, %p80
      %p83 = scmp.ne.s32.totalorder %s68, %s82
      %p84 = scmp.eq.s32.totalorder %s16, 0
      %p85 = por %p83, %p84
      %s86 = ssub.s32 %s10, %s17
      %p87 = scmp.eq.s32.totalorder %s86, 0
      %s89 = sadd.s32 %s88, 1
      %s90 = scalar_select %p87, %s88, %s89
      %p93 = pneg %p87
      %p94 = scmp.eq.s32.totalorder %s10, 3
      %p95 = por %p93, %p94
      %p96 = scmp.ne.s32.totalorder %s88, %s91
      %p97 = scmp.eq.s32.totalorder %s10, 0
      %p98 = por %p96, %p97
      %p99 = scmp.ne.s32.totalorder %s88, %s91
      %p100 = scmp.eq.s32.totalorder %s15, 3
      %p101 = por %p99, %p100
      %p102 = scmp.ne.s32.totalorder %s91, %s92
      %p103 = scmp.eq.s32.totalorder %s15, 0
      %p104 = por %p102, %p103
      %p105 = scmp.ne.s32.totalorder %s91, %s92
      %p106 = scmp.eq.s32.totalorder %s16, 3
      %p107 = por %p105, %p106
      %p109 = scmp.ne.s32.totalorder %s92, %s108
      %p110 = scmp.eq.s32.totalorder %s16, 0
      %p111 = por %p109, %p110
      %s112 = ssub.s32 %s10, %s17
      %p113 = scmp.eq.s32.totalorder %s112, 0
      %s115 = sadd.s32 %s114, 1
      %s116 = scalar_select %p113, %s114, %s115
      %p119 = pneg %p113
      %p120 = scmp.eq.s32.totalorder %s10, 3
      %p121 = por %p119, %p120
      %p122 = scmp.ne.s32.totalorder %s114, %s117
      %p123 = scmp.eq.s32.totalorder %s10, 0
      %p124 = por %p122, %p123
      %p125 = scmp.ne.s32.totalorder %s114, %s117
      %p126 = scmp.eq.s32.totalorder %s15, 3
      %p127 = por %p125, %p126
      %p128 = scmp.ne.s32.totalorder %s117, %s118
      %p129 = scmp.eq.s32.totalorder %s15, 0
      %p130 = por %p128, %p129
      %p131 = scmp.ne.s32.totalorder %s117, %s118
      %p132 = scmp.eq.s32.totalorder %s16, 3
      %p133 = por %p131, %p132
      %p135 = scmp.ne.s32.totalorder %s118, %s134
      %p136 = scmp.eq.s32.totalorder %s16, 0
      %p137 = por %p135, %p136
      %p138 = scmp.le.s32.totalorder 1, %s10
      %p139 = scmp.lt.s32.totalorder %s10, 5
      %p140 = pnand %p138, %p139
      %p141 = pneg %p140
      // Predicated region
      $region9: #{fno2d_forward.8} parent=5 // pred_check
        _
      $region10: #{fno2d_forward.8} parent=5 // pred_check_branch
        %143 = sbr.rel (%p140) target = $region12
      $region11: #{fno2d_forward.8} parent=5 // pred_region
        %s144 = ssub.s32 %s10, 1
        // Predicated region
        $region13: #{fno2d_forward.8} parent=11 // pred_check
          %p145 = pneg %p57
        $region14: #{fno2d_forward.8} parent=11 // pred_check_branch
          %147 = sbr.rel (%p145) target = $region16
        $region15: #{fno2d_forward.8} parent=11 // pred_region
          _
        $region16: #{fno2d_forward.8} parent=11 // pred_fallthru
          _
        // Predicated region
        $region17: #{fno2d_forward.8} parent=11 // pred_check
          %p148 = pneg %p78
        $region18: #{fno2d_forward.8} parent=11 // pred_check_branch
          %150 = sbr.rel (%p148) target = $region20
        $region19: #{fno2d_forward.8} parent=11 // pred_region
          _
        $region20: #{fno2d_forward.8} parent=11 // pred_fallthru
          _
      $region12: #{fno2d_forward.8} parent=5 // pred_fallthru
        _
      %p151 = scmp.lt.s32.totalorder %s10, 4
      // Predicated region
      $region21: #{fno2d_forward.8} parent=5 // pred_check
        %p152 = pneg %p151
      $region22: #{fno2d_forward.8} parent=5 // pred_check_branch
        %154 = sbr.rel (%p152) target = $region24
      $region23: #{fno2d_forward.8} parent=5 // pred_region
        // Predicated region
        $region25: #{fno2d_forward.8} parent=23 // pred_check
          %p155 = pneg %p30
        $region26: #{fno2d_forward.8} parent=23 // pred_check_branch
          %157 = sbr.rel (%p155) target = $region28
        $region27: #{fno2d_forward.8} parent=23 // pred_region
          %s158 = sand.u32 %s20, 1
          %s159 = sand.u32 %s20, 1
          %s160 = smul.addr %s159, 16
          %s161 = scalar_lea.vmem [#allocation2], %s160
          %s162 = smul.addr %s10, 4
          %s163 = scalar_lea.vmem %s0, %s162
          // Predicated region
          $region29: #{fno2d_forward.8} parent=27 // pred_check
            _
          $region30: #{fno2d_forward.8} parent=27 // pred_check_branch
            %165 = sbr.rel (0) target = $region32
          $region31: #{fno2d_forward.8} parent=27 // pred_region
            // Predicated region
            $region33: #{fno2d_forward.8} parent=31 // pred_check
              _
            $region34: #{fno2d_forward.8} parent=31 // pred_check_branch
              %167 = sbr.rel target = $region36
            $region35: #{fno2d_forward.8} parent=31 // pred_region
              // Predicated region
              $region48: #{fno2d_forward.8} parent=35 // pred_check
                _
              $region49: #{fno2d_forward.8} parent=35 // pred_check_branch
                %189 = sbr.rel (0) target = $region51
              $region50: #{fno2d_forward.8} parent=35 // pred_region
                loop: start=0, step=1, limit=1
                $region52: #{fno2d_forward.8} parent=50 // loop_pre_header
                  _
                $region53: #{fno2d_forward.8} parent=50 // loop_header
                  %s191 = sphi 0, %s195
                  %p192 = scmp.ge.s32.totalorder %s191, 1
                  %s196 = sphi %s163, %s163
                  %s197 = sphi %s161, %s161
                $region54: #{fno2d_forward.8} parent=50 // loop_header_branch
                  %194 = sbr.rel (%p192) target = $region58
                $region55: #{fno2d_forward.8} parent=50 // loop_body
                  _
                $region56: #{fno2d_forward.8} parent=50 // loop_footer
                  %s195 = sadd.s32 1, %s191
                $region57: #{fno2d_forward.8} parent=50 // loop_footer_branch
                  %190 = sbr.rel target = $region53
                $region58: #{fno2d_forward.8} parent=50 // loop_exit
                  _
                %s199 = ssub.s32 16, 1
                loop: start=0, step=1, limit=1
                $region59: #{fno2d_forward.8} parent=50 // loop_pre_header
                  _
                $region60: #{fno2d_forward.8} parent=50 // loop_header
                  %s201 = sphi 0, %s205
                  %p202 = scmp.ge.s32.totalorder %s201, 1
                  %s206 = sphi %s163, %s163
                  %s207 = sphi %s161, %s161
                $region61: #{fno2d_forward.8} parent=50 // loop_header_branch
                  %204 = sbr.rel (%p202) target = $region65
                $region62: #{fno2d_forward.8} parent=50 // loop_body
                  %v208 = vld [vmem:[%s206] sm:%s199]
                  %209 = vst [vmem:[%s207] sm:%s199] %v208
                  %v210 = vld [vmem:[%s206 + $0x10] sm:%s199]
                  %211 = vst [vmem:[%s207 + $0x4] sm:%s199] %v210
                  %v212 = vld [vmem:[%s206 + $0x20] sm:%s199]
                  %213 = vst [vmem:[%s207 + $0x8] sm:%s199] %v212
                  %v214 = vld [vmem:[%s206 + $0x30] sm:%s199]
                  %215 = vst [vmem:[%s207 + $0xc] sm:%s199] %v214
                $region63: #{fno2d_forward.8} parent=50 // loop_footer
                  %s205 = sadd.s32 1, %s201
                $region64: #{fno2d_forward.8} parent=50 // loop_footer_branch
                  %200 = sbr.rel target = $region60
                $region65: #{fno2d_forward.8} parent=50 // loop_exit
                  _
              $region51: #{fno2d_forward.8} parent=35 // pred_fallthru
                _
            $region36: #{fno2d_forward.8} parent=31 // pred_fallthru
              _
            // Predicated region
            $region37: #{fno2d_forward.8} parent=31 // pred_check
              _
            $region38: #{fno2d_forward.8} parent=31 // pred_check_branch
              %169 = sbr.rel (0) target = $region40
            $region39: #{fno2d_forward.8} parent=31 // pred_region
              %s171 = ssub.s32 16, 1
              loop: start=0, step=1, limit=1
              $region41: #{fno2d_forward.8} parent=39 // loop_pre_header
                _
              $region42: #{fno2d_forward.8} parent=39 // loop_header
                %s173 = sphi 0, %s177
                %p174 = scmp.ge.s32.totalorder %s173, 1
                %s178 = sphi %s163, %s163
                %s179 = sphi %s161, %s161
              $region43: #{fno2d_forward.8} parent=39 // loop_header_branch
                %176 = sbr.rel (%p174) target = $region47
              $region44: #{fno2d_forward.8} parent=39 // loop_body
                %v180 = vld [vmem:[%s178] sm:%s171]
                %181 = vst [vmem:[%s179] sm:%s171] %v180
                %v182 = vld [vmem:[%s178 + $0x10] sm:%s171]
                %183 = vst [vmem:[%s179 + $0x4] sm:%s171] %v182
                %v184 = vld [vmem:[%s178 + $0x20] sm:%s171]
                %185 = vst [vmem:[%s179 + $0x8] sm:%s171] %v184
                %v186 = vld [vmem:[%s178 + $0x30] sm:%s171]
                %187 = vst [vmem:[%s179 + $0xc] sm:%s171] %v186
              $region45: #{fno2d_forward.8} parent=39 // loop_footer
                %s177 = sadd.s32 1, %s173
              $region46: #{fno2d_forward.8} parent=39 // loop_footer_branch
                %172 = sbr.rel target = $region42
              $region47: #{fno2d_forward.8} parent=39 // loop_exit
                _
            $region40: #{fno2d_forward.8} parent=31 // pred_fallthru
              _
          $region32: #{fno2d_forward.8} parent=27 // pred_fallthru
            _
          %216 = vnop
        $region28: #{fno2d_forward.8} parent=23 // pred_fallthru
          _
        // Predicated region
        $region66: #{fno2d_forward.8} parent=23 // pred_check
          %p217 = pneg %p98
        $region67: #{fno2d_forward.8} parent=23 // pred_check_branch
          %219 = sbr.rel (%p217) target = $region69
        $region68: #{fno2d_forward.8} parent=23 // pred_region
          %s220 = sand.u32 %s88, 1
          %s221 = sand.u32 %s88, 1
          %s222 = smul.addr %s221, 32
          %s223 = scalar_lea.vmem [#allocation3], %s222
          %s224 = smul.addr %s10, 8
          %s225 = scalar_lea.vmem %s3, %s224
          // Predicated region
          $region70: #{fno2d_forward.8} parent=68 // pred_check
            _
          $region71: #{fno2d_forward.8} parent=68 // pred_check_branch
            %227 = sbr.rel (0) target = $region73
          $region72: #{fno2d_forward.8} parent=68 // pred_region
            // Predicated region
            $region74: #{fno2d_forward.8} parent=72 // pred_check
              _
            $region75: #{fno2d_forward.8} parent=72 // pred_check_branch
              %229 = sbr.rel (0) target = $region77
            $region76: #{fno2d_forward.8} parent=72 // pred_region
              // Predicated region
              $region89: #{fno2d_forward.8} parent=76 // pred_check
                _
              $region90: #{fno2d_forward.8} parent=76 // pred_check_branch
                %251 = sbr.rel (0) target = $region92
              $region91: #{fno2d_forward.8} parent=76 // pred_region
                loop: start=0, step=1, limit=1
                $region93: #{fno2d_forward.8} parent=91 // loop_pre_header
                  _
                $region94: #{fno2d_forward.8} parent=91 // loop_header
                  %s253 = sphi 0, %s257
                  %p254 = scmp.ge.s32.totalorder %s253, 1
                  %s258 = sphi %s225, %s225
                  %s259 = sphi %s223, %s223
                $region95: #{fno2d_forward.8} parent=91 // loop_header_branch
                  %256 = sbr.rel (%p254) target = $region99
                $region96: #{fno2d_forward.8} parent=91 // loop_body
                  %v260 = vld [vmem:[%s258] sm:$0xff]
                  %261 = vst [vmem:[%s259] sm:$0xff] %v260
                  %v262 = vld [vmem:[%s258 + $0x20] sm:$0xff]
                  %263 = vst [vmem:[%s259 + $0x8] sm:$0xff] %v262
                  %v264 = vld [vmem:[%s258 + $0x40] sm:$0xff]
                  %265 = vst [vmem:[%s259 + $0x10] sm:$0xff] %v264
                  %v266 = vld [vmem:[%s258 + $0x60] sm:$0xff]
                  %267 = vst [vmem:[%s259 + $0x18] sm:$0xff] %v266
                $region97: #{fno2d_forward.8} parent=91 // loop_footer
                  %s257 = sadd.s32 1, %s253
                $region98: #{fno2d_forward.8} parent=91 // loop_footer_branch
                  %252 = sbr.rel target = $region94
                $region99: #{fno2d_forward.8} parent=91 // loop_exit
                  _
              $region92: #{fno2d_forward.8} parent=76 // pred_fallthru
                _
              // Predicated region
              $region100: #{fno2d_forward.8} parent=76 // pred_check
                _
              $region101: #{fno2d_forward.8} parent=76 // pred_check_branch
                %269 = sbr.rel target = $region103
              $region102: #{fno2d_forward.8} parent=76 // pred_region
                _
              $region103: #{fno2d_forward.8} parent=76 // pred_fallthru
                _
            $region77: #{fno2d_forward.8} parent=72 // pred_fallthru
              _
            // Predicated region
            $region78: #{fno2d_forward.8} parent=72 // pred_check
              _
            $region79: #{fno2d_forward.8} parent=72 // pred_check_branch
              %231 = sbr.rel target = $region81
            $region80: #{fno2d_forward.8} parent=72 // pred_region
              %s233 = ssub.s32 256, 1
              loop: start=0, step=1, limit=1
              $region82: #{fno2d_forward.8} parent=80 // loop_pre_header
                _
              $region83: #{fno2d_forward.8} parent=80 // loop_header
                %s235 = sphi 0, %s239
                %p236 = scmp.ge.s32.totalorder %s235, 1
                %s240 = sphi %s225, %s225
                %s241 = sphi %s223, %s223
              $region84: #{fno2d_forward.8} parent=80 // loop_header_branch
                %238 = sbr.rel (%p236) target = $region88
              $region85: #{fno2d_forward.8} parent=80 // loop_body
                %v242 = vld [vmem:[%s240] sm:%s233]
                %243 = vst [vmem:[%s241] sm:%s233] %v242
                %v244 = vld [vmem:[%s240 + $0x20] sm:%s233]
                %245 = vst [vmem:[%s241 + $0x8] sm:%s233] %v244
                %v246 = vld [vmem:[%s240 + $0x40] sm:%s233]
                %247 = vst [vmem:[%s241 + $0x10] sm:%s233] %v246
                %v248 = vld [vmem:[%s240 + $0x60] sm:%s233]
                %249 = vst [vmem:[%s241 + $0x18] sm:%s233] %v248
              $region86: #{fno2d_forward.8} parent=80 // loop_footer
                %s239 = sadd.s32 1, %s235
              $region87: #{fno2d_forward.8} parent=80 // loop_footer_branch
                %234 = sbr.rel target = $region83
              $region88: #{fno2d_forward.8} parent=80 // loop_exit
                _
            $region81: #{fno2d_forward.8} parent=72 // pred_fallthru
              _
          $region73: #{fno2d_forward.8} parent=68 // pred_fallthru
            _
          %270 = vnop
        $region69: #{fno2d_forward.8} parent=23 // pred_fallthru
          _
      $region24: #{fno2d_forward.8} parent=5 // pred_fallthru
        _
      %p271 = scmp.le.s32.totalorder 1, %s10
      %p272 = scmp.lt.s32.totalorder %s10, 5
      %p273 = pnand %p271, %p272
      %p274 = pneg %p273
      // Predicated region
      $region104: #{fno2d_forward.8} parent=5 // pred_check
        _
      $region105: #{fno2d_forward.8} parent=5 // pred_check_branch
        %276 = sbr.rel (%p273) target = $region107
      $region106: #{fno2d_forward.8} parent=5 // pred_region
        %s277 = ssub.s32 %s10, 1
        %s278 = sand.u32 %s23, 1
        %s279 = sand.u32 %s23, 1
        %s280 = smul.addr %s279, 16
        %s281 = scalar_lea.vmem [#allocation2], %s280
        // Predicated region
        $region108: #{fno2d_forward.8} parent=106 // pred_check
          %p282 = pneg %p36
        $region109: #{fno2d_forward.8} parent=106 // pred_check_branch
          %284 = sbr.rel (%p282) target = $region111
        $region110: #{fno2d_forward.8} parent=106 // pred_region
          _
        $region111: #{fno2d_forward.8} parent=106 // pred_fallthru
          _
        %s285 = sand.u32 %s91, 1
        %s286 = sand.u32 %s91, 1
        %s287 = smul.addr %s286, 32
        %s288 = scalar_lea.vmem [#allocation3], %s287
        // Predicated region
        $region112: #{fno2d_forward.8} parent=106 // pred_check
          %p289 = pneg %p104
        $region113: #{fno2d_forward.8} parent=106 // pred_check_branch
          %291 = sbr.rel (%p289) target = $region115
        $region114: #{fno2d_forward.8} parent=106 // pred_region
          _
        $region115: #{fno2d_forward.8} parent=106 // pred_fallthru
          _
        %s292 = sand.u32 %s23, 1
        %s293 = sand.u32 %s23, 1
        %s294 = smul.addr %s293, 16
        %s295 = scalar_lea.vmem [#allocation2], %s294
        %p296 = pneg %p36
        %p297 = pneg %p33
        %p298 = pneg %p57
        %p299 = pneg %p54
        %p300 = pneg %p78
        %p301 = pneg %p75
        %s302 = sand.u32 %s91, 1
        %s303 = sand.u32 %s91, 1
        %s304 = smul.addr %s303, 32
        %s305 = scalar_lea.vmem [#allocation3], %s304
        %p306 = pneg %p104
        %p307 = pneg %p101
        %p308 = pneg %p130
        %p309 = pneg %p127
        %s310 = sand.u32 %s117, 1
        %s311 = sand.u32 %s117, 1
        %s312 = smul.addr %s311, 16
        %s313 = scalar_lea.vmem [#allocation4], %s312
        %v315 = vld [vmem:[%s1] sm:$0xf]
        %v316 = vld [vmem:[%s1 + $0x4] sm:$0xf]
        %v317 = vld [vmem:[%s1 + $0x8] sm:$0xf]
        %v318 = vld [vmem:[%s1 + $0xc] sm:$0xf]
        %v319 = vld [vmem:[%s281] sm:$0xf]
        %v320 = vld [vmem:[%s281 + $0x4] sm:$0xf]
        %v321 = vld [vmem:[%s281 + $0x8] sm:$0xf]
        %v322 = vld [vmem:[%s281 + $0xc] sm:$0xf]
        %v323 = vld [vmem:[%s2] sm:$0xff]
        %v324 = vld [vmem:[%s2 + $0x8] sm:$0xff]
        %v325 = vld [vmem:[%s2 + $0x10] sm:$0xff]
        %v326 = vld [vmem:[%s2 + $0x18] sm:$0xff]
        %328 = vset.pattern.permute.xlu0 0
        %329 = vperm.xlu0 %328, %v323
        %v330 = vpop.permute.xlu0 %329
        %333 = vset.pattern.permute.xlu0 0
        %334 = vperm.xlu0 %333, %v324
        %v335 = vpop.permute.xlu0 %334
        %338 = vset.pattern.permute.xlu0 0
        %339 = vperm.xlu0 %338, %v325
        %v340 = vpop.permute.xlu0 %339
        %343 = vset.pattern.permute.xlu0 0
        %344 = vperm.xlu0 %343, %v326
        %v345 = vpop.permute.xlu0 %344
        %v351 = vunpack.c.l.b16 %v315
        %v352 = vunpack.c.l.b16 %v316
        %v353 = vunpack.c.l.b16 %v317
        %v354 = vunpack.c.l.b16 %v318
        %v355 = vpack.c.b16 %v352, %v351
        %v356 = vpack.c.b16 %v354, %v353
        %v361 = vunpack.c.l.b16 %v319
        %v362 = vunpack.c.l.b16 %v320
        %v363 = vunpack.c.l.b16 %v321
        %v364 = vunpack.c.l.b16 %v322
        %v365 = vpack.c.b16 %v362, %v361
        %v366 = vpack.c.b16 %v364, %v363
        %vm369 = vcmask 261120
        %v371 = vsel %vm369, %v355, 0
        %v374 = vsel %vm369, %v356, 0
        %376 = vmatpush.bf16.msra.mxu0 0
        %377 = vmatpush.bf16.msra.mxu0 0
        %378 = vmatpush.bf16.msra.mxu0 0
        %379 = vmatpush.bf16.msra.mxu0 0
        %380 = vmatpush.bf16.msra.mxu0 0
        %381 = vmatpush.bf16.msra.mxu0 0
        %382 = vmatpush.bf16.msra.mxu0 %v366
        %383 = vmatpush.bf16.msra.mxu0 %v365
        %384 = vmatmul.bf16.gmra.mxu0 %v371
        %v385 = vpop.f32.mrf.mxu0
        %v386 = vadd.f32 %v330, %v385
        %v387 = vpop.f32.mrf.mxu0
        %v388 = vadd.f32 %v335, %v387
        %389 = vmatmul.bf16.gmra.mxu0 %v374
        %v390 = vpop.f32.mrf.mxu0
        %v391 = vadd.f32 %v340, %v390
        %v392 = vpop.f32.mrf.mxu0
        %v393 = vadd.f32 %v345, %v392
        %394 = vdwg.mxu0
        %v395 = vld [vmem:[%s288] sm:$0xff]
        %v396 = vld [vmem:[%s288 + $0x8] sm:$0xff]
        %v397 = vld [vmem:[%s288 + $0x10] sm:$0xff]
        %v398 = vld [vmem:[%s288 + $0x18] sm:$0xff]
        %v399 = vadd.f32 %v386, %v395
        %v400 = vadd.f32 %v388, %v396
        %v401 = vadd.f32 %v391, %v397
        %v402 = vadd.f32 %v393, %v398
        %v403 = vpack.c.bf16 %v399, %v399
        %v404 = vpack.c.bf16 %v400, %v400
        %v405 = vpack.c.bf16 %v401, %v401
        %v406 = vpack.c.bf16 %v402, %v402
        %407 = vst [vmem:[%s313] sm:$0xf] %v403
        %408 = vst [vmem:[%s313 + $0x4] sm:$0xf] %v404
        %409 = vst [vmem:[%s313 + $0x8] sm:$0xf] %v405
        %410 = vst [vmem:[%s313 + $0xc] sm:$0xf] %v406
        %s411 = sand.u32 %s117, 1
        %s412 = sand.u32 %s117, 1
        %s413 = smul.addr %s412, 16
        %s414 = scalar_lea.vmem [#allocation4], %s413
        // Predicated region
        $region116: #{fno2d_forward.8} parent=106 // pred_check
          %p415 = pneg %p127
        $region117: #{fno2d_forward.8} parent=106 // pred_check_branch
          %417 = sbr.rel (%p415) target = $region119
        $region118: #{fno2d_forward.8} parent=106 // pred_region
          %s418 = smul.addr %s15, 4
          %s419 = scalar_lea.vmem %s4, %s418
          // Predicated region
          $region120: #{fno2d_forward.8} parent=118 // pred_check
            _
          $region121: #{fno2d_forward.8} parent=118 // pred_check_branch
            %421 = sbr.rel (0) target = $region123
          $region122: #{fno2d_forward.8} parent=118 // pred_region
            // Predicated region
            $region124: #{fno2d_forward.8} parent=122 // pred_check
              _
            $region125: #{fno2d_forward.8} parent=122 // pred_check_branch
              %423 = sbr.rel target = $region127
            $region126: #{fno2d_forward.8} parent=122 // pred_region
              // Predicated region
              $region139: #{fno2d_forward.8} parent=126 // pred_check
                _
              $region140: #{fno2d_forward.8} parent=126 // pred_check_branch
                %445 = sbr.rel (0) target = $region142
              $region141: #{fno2d_forward.8} parent=126 // pred_region
                loop: start=0, step=1, limit=1
                $region143: #{fno2d_forward.8} parent=141 // loop_pre_header
                  _
                $region144: #{fno2d_forward.8} parent=141 // loop_header
                  %s447 = sphi 0, %s451
                  %p448 = scmp.ge.s32.totalorder %s447, 1
                  %s452 = sphi %s414, %s414
                  %s453 = sphi %s419, %s419
                $region145: #{fno2d_forward.8} parent=141 // loop_header_branch
                  %450 = sbr.rel (%p448) target = $region149
                $region146: #{fno2d_forward.8} parent=141 // loop_body
                  _
                $region147: #{fno2d_forward.8} parent=141 // loop_footer
                  %s451 = sadd.s32 1, %s447
                $region148: #{fno2d_forward.8} parent=141 // loop_footer_branch
                  %446 = sbr.rel target = $region144
                $region149: #{fno2d_forward.8} parent=141 // loop_exit
                  _
                %s455 = ssub.s32 16, 1
                loop: start=0, step=1, limit=1
                $region150: #{fno2d_forward.8} parent=141 // loop_pre_header
                  _
                $region151: #{fno2d_forward.8} parent=141 // loop_header
                  %s457 = sphi 0, %s461
                  %p458 = scmp.ge.s32.totalorder %s457, 1
                  %s462 = sphi %s414, %s414
                  %s463 = sphi %s419, %s419
                $region152: #{fno2d_forward.8} parent=141 // loop_header_branch
                  %460 = sbr.rel (%p458) target = $region156
                $region153: #{fno2d_forward.8} parent=141 // loop_body
                  %v464 = vld [vmem:[%s462] sm:%s455]
                  %465 = vst [vmem:[%s463] sm:%s455] %v464
                  %v466 = vld [vmem:[%s462 + $0x4] sm:%s455]
                  %467 = vst [vmem:[%s463 + $0x10] sm:%s455] %v466
                  %v468 = vld [vmem:[%s462 + $0x8] sm:%s455]
                  %469 = vst [vmem:[%s463 + $0x20] sm:%s455] %v468
                  %v470 = vld [vmem:[%s462 + $0xc] sm:%s455]
                  %471 = vst [vmem:[%s463 + $0x30] sm:%s455] %v470
                $region154: #{fno2d_forward.8} parent=141 // loop_footer
                  %s461 = sadd.s32 1, %s457
                $region155: #{fno2d_forward.8} parent=141 // loop_footer_branch
                  %456 = sbr.rel target = $region151
                $region156: #{fno2d_forward.8} parent=141 // loop_exit
                  _
              $region142: #{fno2d_forward.8} parent=126 // pred_fallthru
                _
            $region127: #{fno2d_forward.8} parent=122 // pred_fallthru
              _
            // Predicated region
            $region128: #{fno2d_forward.8} parent=122 // pred_check
              _
            $region129: #{fno2d_forward.8} parent=122 // pred_check_branch
              %425 = sbr.rel (0) target = $region131
            $region130: #{fno2d_forward.8} parent=122 // pred_region
              %s427 = ssub.s32 16, 1
              loop: start=0, step=1, limit=1
              $region132: #{fno2d_forward.8} parent=130 // loop_pre_header
                _
              $region133: #{fno2d_forward.8} parent=130 // loop_header
                %s429 = sphi 0, %s433
                %p430 = scmp.ge.s32.totalorder %s429, 1
                %s434 = sphi %s414, %s414
                %s435 = sphi %s419, %s419
              $region134: #{fno2d_forward.8} parent=130 // loop_header_branch
                %432 = sbr.rel (%p430) target = $region138
              $region135: #{fno2d_forward.8} parent=130 // loop_body
                %v436 = vld [vmem:[%s434] sm:%s427]
                %437 = vst [vmem:[%s435] sm:%s427] %v436
                %v438 = vld [vmem:[%s434 + $0x4] sm:%s427]
                %439 = vst [vmem:[%s435 + $0x10] sm:%s427] %v438
                %v440 = vld [vmem:[%s434 + $0x8] sm:%s427]
                %441 = vst [vmem:[%s435 + $0x20] sm:%s427] %v440
                %v442 = vld [vmem:[%s434 + $0xc] sm:%s427]
                %443 = vst [vmem:[%s435 + $0x30] sm:%s427] %v442
              $region136: #{fno2d_forward.8} parent=130 // loop_footer
                %s433 = sadd.s32 1, %s429
              $region137: #{fno2d_forward.8} parent=130 // loop_footer_branch
                %428 = sbr.rel target = $region133
              $region138: #{fno2d_forward.8} parent=130 // loop_exit
                _
            $region131: #{fno2d_forward.8} parent=122 // pred_fallthru
              _
          $region123: #{fno2d_forward.8} parent=118 // pred_fallthru
            _
          %472 = vnop
        $region119: #{fno2d_forward.8} parent=106 // pred_fallthru
          _
      $region107: #{fno2d_forward.8} parent=5 // pred_fallthru
        _
      %p473 = scmp.le.s32.totalorder 2, %s10
      // Predicated region
      $region157: #{fno2d_forward.8} parent=5 // pred_check
        %p474 = pneg %p473
      $region158: #{fno2d_forward.8} parent=5 // pred_check_branch
        %476 = sbr.rel (%p474) target = $region160
      $region159: #{fno2d_forward.8} parent=5 // pred_region
        %s477 = ssub.s32 %s10, 2
        // Predicated region
        $region161: #{fno2d_forward.8} parent=159 // pred_check
          %p478 = pneg %p133
        $region162: #{fno2d_forward.8} parent=159 // pred_check_branch
          %480 = sbr.rel (%p478) target = $region164
        $region163: #{fno2d_forward.8} parent=159 // pred_region
          %s481 = sand.u32 %s118, 1
          %s482 = sand.u32 %s118, 1
          %s483 = smul.addr %s482, 16
          %s484 = scalar_lea.vmem [#allocation4], %s483
        $region164: #{fno2d_forward.8} parent=159 // pred_fallthru
          _
      $region160: #{fno2d_forward.8} parent=5 // pred_fallthru
        _
    $region6: #{fno2d_forward.8} parent=1 // loop_footer
      %s14 = sadd.s32 1, %s10
    $region7: #{fno2d_forward.8} parent=1 // loop_footer_branch
      %9 = sbr.rel target = $region3
    $region8: #{fno2d_forward.8} parent=1 // loop_exit
      _

// kernel: fno2d_forward.9
$region0: #{fno2d_forward.9}
  #allocation0 [shape = 'u32[]', space=smem, size = 0x4, offset = 0x4, fixed_abs, tag = 'smem constant byte address 0x4 - core index']
  #allocation1 [shape = 'u32[72,128]{1,0:T(1,128)}', space=vmem, size = 0x9000, scoped, tag = 'internal scratch']
  #allocation2 [shape = 'f32[1]{0:T(128)S(6)}', space=smem, size = 0x200, scoped, tag = 'scoped memory for fno2d_forward.9']
  %s0 = inlined_call_operand.vmem [shape: bf16[32,512], index: 0, kind: input, shape index: {}]
  %s1 = inlined_call_operand.vmem [shape: bf16[64,32], index: 1, kind: input, shape index: {}]
  %s2 = inlined_call_operand.vmem [shape: f32[64,1], index: 2, kind: input, shape index: {}]
  %s3 = inlined_call_operand.vmem [shape: bf16[1,64], index: 3, kind: input, shape index: {}]
  %s4 = inlined_call_operand.<no memory space> [shape: f32[1], index: 4, kind: input, shape index: {}]
  %s5 = inlined_call_operand.vmem [shape: f32[1,512], index: 5, kind: output, shape index: {}]
  %s6 = sld [smem:[#allocation0]]
  $region94: #{fno2d_forward.9} parent=0
    _
  %s8 = ssub.s32 1, %s6
  %s9 = scalar_select 0, %s8, %s6
  %10 = sst [smem:[#allocation2]] %s4
  $region1: #{fno2d_forward.9} parent=0
    #allocation3 [shape = 'u8[16384]{0}', space=vmem, size = 0x4000, scoped, tag = 'input window, operand 0']
    loop: start=0, step=1, limit=6
    $region2: #{fno2d_forward.9} parent=1 // loop_pre_header
      _
    $region3: #{fno2d_forward.9} parent=1 // loop_header
      %s12 = sphi 0, %s16
      %p13 = scmp.ge.s32.totalorder %s12, 6
      %s22 = sphi 0, %s24
      %s25 = sphi 0, %s22
      %s26 = sphi 0, %s25
      %s42 = sphi 0, %s26
      %s46 = sphi 0, %s46
      %s48 = sphi 0, %s46
      %s49 = sphi 0, %s48
      %s63 = sphi 0, %s49
      %s67 = sphi 0, %s67
      %s69 = sphi 0, %s67
      %s70 = sphi 0, %s69
      %s84 = sphi 0, %s70
      %s88 = sphi 0, %s88
      %s90 = sphi 0, %s88
      %s91 = sphi 0, %s90
      %s105 = sphi 0, %s91
      %s109 = sphi 0, %s109
      %s111 = sphi 0, %s109
      %s112 = sphi 0, %s111
      %s126 = sphi 0, %s112
      %s132 = sphi 0, %s134
      %s135 = sphi 0, %s132
      %s136 = sphi 0, %s135
      %s152 = sphi 0, %s136
    $region4: #{fno2d_forward.9} parent=1 // loop_header_branch
      %15 = sbr.rel (%p13) target = $region8
    $region5: #{fno2d_forward.9} parent=1 // loop_body
      %s17 = ssub.s32 %s12, 1
      %s18 = ssub.s32 %s12, 2
      %s19 = sadd.s32 %s12, 1
      %s20 = ssub.s32 %s12, %s19
      %p21 = scmp.eq.s32.totalorder %s20, 0
      %s23 = sadd.s32 %s22, 1
      %s24 = scalar_select %p21, %s22, %s23
      %p27 = pneg %p21
      %p28 = scmp.eq.s32.totalorder %s12, 3
      %p29 = por %p27, %p28
      %p30 = scmp.ne.s32.totalorder %s22, %s25
      %p31 = scmp.eq.s32.totalorder %s12, 0
      %p32 = por %p30, %p31
      %p33 = scmp.ne.s32.totalorder %s22, %s25
      %p34 = scmp.eq.s32.totalorder %s17, 3
      %p35 = por %p33, %p34
      %p36 = scmp.ne.s32.totalorder %s25, %s26
      %p37 = scmp.eq.s32.totalorder %s17, 0
      %p38 = por %p36, %p37
      %p39 = scmp.ne.s32.totalorder %s25, %s26
      %p40 = scmp.eq.s32.totalorder %s18, 3
      %p41 = por %p39, %p40
      %p43 = scmp.ne.s32.totalorder %s26, %s42
      %p44 = scmp.eq.s32.totalorder %s18, 0
      %p45 = por %p43, %p44
      %s47 = sadd.s32 %s46, 1
      %p50 = scmp.eq.s32.totalorder %s12, 3
      %p51 = scmp.ne.s32.totalorder %s46, %s48
      %p52 = scmp.eq.s32.totalorder %s12, 0
      %p53 = por %p51, %p52
      %p54 = scmp.ne.s32.totalorder %s46, %s48
      %p55 = scmp.eq.s32.totalorder %s17, 3
      %p56 = por %p54, %p55
      %p57 = scmp.ne.s32.totalorder %s48, %s49
      %p58 = scmp.eq.s32.totalorder %s17, 0
      %p59 = por %p57, %p58
      %p60 = scmp.ne.s32.totalorder %s48, %s49
      %p61 = scmp.eq.s32.totalorder %s18, 3
      %p62 = por %p60, %p61
      %p64 = scmp.ne.s32.totalorder %s49, %s63
      %p65 = scmp.eq.s32.totalorder %s18, 0
      %p66 = por %p64, %p65
      %s68 = sadd.s32 %s67, 1
      %p71 = scmp.eq.s32.totalorder %s12, 3
      %p72 = scmp.ne.s32.totalorder %s67, %s69
      %p73 = scmp.eq.s32.totalorder %s12, 0
      %p74 = por %p72, %p73
      %p75 = scmp.ne.s32.totalorder %s67, %s69
      %p76 = scmp.eq.s32.totalorder %s17, 3
      %p77 = por %p75, %p76
      %p78 = scmp.ne.s32.totalorder %s69, %s70
      %p79 = scmp.eq.s32.totalorder %s17, 0
      %p80 = por %p78, %p79
      %p81 = scmp.ne.s32.totalorder %s69, %s70
      %p82 = scmp.eq.s32.totalorder %s18, 3
      %p83 = por %p81, %p82
      %p85 = scmp.ne.s32.totalorder %s70, %s84
      %p86 = scmp.eq.s32.totalorder %s18, 0
      %p87 = por %p85, %p86
      %s89 = sadd.s32 %s88, 1
      %p92 = scmp.eq.s32.totalorder %s12, 3
      %p93 = scmp.ne.s32.totalorder %s88, %s90
      %p94 = scmp.eq.s32.totalorder %s12, 0
      %p95 = por %p93, %p94
      %p96 = scmp.ne.s32.totalorder %s88, %s90
      %p97 = scmp.eq.s32.totalorder %s17, 3
      %p98 = por %p96, %p97
      %p99 = scmp.ne.s32.totalorder %s90, %s91
      %p100 = scmp.eq.s32.totalorder %s17, 0
      %p101 = por %p99, %p100
      %p102 = scmp.ne.s32.totalorder %s90, %s91
      %p103 = scmp.eq.s32.totalorder %s18, 3
      %p104 = por %p102, %p103
      %p106 = scmp.ne.s32.totalorder %s91, %s105
      %p107 = scmp.eq.s32.totalorder %s18, 0
      %p108 = por %p106, %p107
      %s110 = sadd.s32 %s109, 1
      %p113 = scmp.eq.s32.totalorder %s12, 3
      %p114 = scmp.ne.s32.totalorder %s109, %s111
      %p115 = scmp.eq.s32.totalorder %s12, 0
      %p116 = por %p114, %p115
      %p117 = scmp.ne.s32.totalorder %s109, %s111
      %p118 = scmp.eq.s32.totalorder %s17, 3
      %p119 = por %p117, %p118
      %p120 = scmp.ne.s32.totalorder %s111, %s112
      %p121 = scmp.eq.s32.totalorder %s17, 0
      %p122 = por %p120, %p121
      %p123 = scmp.ne.s32.totalorder %s111, %s112
      %p124 = scmp.eq.s32.totalorder %s18, 3
      %p125 = por %p123, %p124
      %p127 = scmp.ne.s32.totalorder %s112, %s126
      %p128 = scmp.eq.s32.totalorder %s18, 0
      %p129 = por %p127, %p128
      %s130 = ssub.s32 %s12, %s19
      %p131 = scmp.eq.s32.totalorder %s130, 0
      %s133 = sadd.s32 %s132, 1
      %s134 = scalar_select %p131, %s132, %s133
      %p137 = pneg %p131
      %p138 = scmp.eq.s32.totalorder %s12, 3
      %p139 = por %p137, %p138
      %p140 = scmp.ne.s32.totalorder %s132, %s135
      %p141 = scmp.eq.s32.totalorder %s12, 0
      %p142 = por %p140, %p141
      %p143 = scmp.ne.s32.totalorder %s132, %s135
      %p144 = scmp.eq.s32.totalorder %s17, 3
      %p145 = por %p143, %p144
      %p146 = scmp.ne.s32.totalorder %s135, %s136
      %p147 = scmp.eq.s32.totalorder %s17, 0
      %p148 = por %p146, %p147
      %p149 = scmp.ne.s32.totalorder %s135, %s136
      %p150 = scmp.eq.s32.totalorder %s18, 3
      %p151 = por %p149, %p150
      %p153 = scmp.ne.s32.totalorder %s136, %s152
      %p154 = scmp.eq.s32.totalorder %s18, 0
      %p155 = por %p153, %p154
      %p156 = scmp.le.s32.totalorder 1, %s12
      %p157 = scmp.lt.s32.totalorder %s12, 5
      %p158 = pnand %p156, %p157
      %p159 = pneg %p158
      // Predicated region
      $region9: #{fno2d_forward.9} parent=5 // pred_check
        _
      $region10: #{fno2d_forward.9} parent=5 // pred_check_branch
        %161 = sbr.rel (%p158) target = $region12
      $region11: #{fno2d_forward.9} parent=5 // pred_region
        %s162 = ssub.s32 %s12, 1
        // Predicated region
        $region13: #{fno2d_forward.9} parent=11 // pred_check
          %p163 = pneg %p59
        $region14: #{fno2d_forward.9} parent=11 // pred_check_branch
          %165 = sbr.rel (%p163) target = $region16
        $region15: #{fno2d_forward.9} parent=11 // pred_region
          _
        $region16: #{fno2d_forward.9} parent=11 // pred_fallthru
          _
        // Predicated region
        $region17: #{fno2d_forward.9} parent=11 // pred_check
          %p166 = pneg %p80
        $region18: #{fno2d_forward.9} parent=11 // pred_check_branch
          %168 = sbr.rel (%p166) target = $region20
        $region19: #{fno2d_forward.9} parent=11 // pred_region
          _
        $region20: #{fno2d_forward.9} parent=11 // pred_fallthru
          _
        // Predicated region
        $region21: #{fno2d_forward.9} parent=11 // pred_check
          %p169 = pneg %p101
        $region22: #{fno2d_forward.9} parent=11 // pred_check_branch
          %171 = sbr.rel (%p169) target = $region24
        $region23: #{fno2d_forward.9} parent=11 // pred_region
          _
        $region24: #{fno2d_forward.9} parent=11 // pred_fallthru
          _
        // Predicated region
        $region25: #{fno2d_forward.9} parent=11 // pred_check
          %p172 = pneg %p122
        $region26: #{fno2d_forward.9} parent=11 // pred_check_branch
          %174 = sbr.rel (%p172) target = $region28
        $region27: #{fno2d_forward.9} parent=11 // pred_region
          _
        $region28: #{fno2d_forward.9} parent=11 // pred_fallthru
          _
      $region12: #{fno2d_forward.9} parent=5 // pred_fallthru
        _
      %p175 = scmp.lt.s32.totalorder %s12, 4
      // Predicated region
      $region29: #{fno2d_forward.9} parent=5 // pred_check
        %p176 = pneg %p175
      $region30: #{fno2d_forward.9} parent=5 // pred_check_branch
        %178 = sbr.rel (%p176) target = $region32
      $region31: #{fno2d_forward.9} parent=5 // pred_region
        // Predicated region
        $region33: #{fno2d_forward.9} parent=31 // pred_check
          %p179 = pneg %p32
        $region34: #{fno2d_forward.9} parent=31 // pred_check_branch
          %181 = sbr.rel (%p179) target = $region36
        $region35: #{fno2d_forward.9} parent=31 // pred_region
          %s182 = sand.u32 %s22, 1
          %s183 = sand.u32 %s22, 1
          %s184 = smul.addr %s183, 16
          %s185 = scalar_lea.vmem [#allocation3], %s184
          %s186 = smul.addr %s12, 4
          %s187 = scalar_lea.vmem %s0, %s186
          // Predicated region
          $region37: #{fno2d_forward.9} parent=35 // pred_check
            _
          $region38: #{fno2d_forward.9} parent=35 // pred_check_branch
            %189 = sbr.rel (0) target = $region40
          $region39: #{fno2d_forward.9} parent=35 // pred_region
            // Predicated region
            $region41: #{fno2d_forward.9} parent=39 // pred_check
              _
            $region42: #{fno2d_forward.9} parent=39 // pred_check_branch
              %191 = sbr.rel target = $region44
            $region43: #{fno2d_forward.9} parent=39 // pred_region
              // Predicated region
              $region56: #{fno2d_forward.9} parent=43 // pred_check
                _
              $region57: #{fno2d_forward.9} parent=43 // pred_check_branch
                %213 = sbr.rel (0) target = $region59
              $region58: #{fno2d_forward.9} parent=43 // pred_region
                loop: start=0, step=1, limit=1
                $region60: #{fno2d_forward.9} parent=58 // loop_pre_header
                  _
                $region61: #{fno2d_forward.9} parent=58 // loop_header
                  %s215 = sphi 0, %s219
                  %p216 = scmp.ge.s32.totalorder %s215, 1
                  %s220 = sphi %s187, %s187
                  %s221 = sphi %s185, %s185
                $region62: #{fno2d_forward.9} parent=58 // loop_header_branch
                  %218 = sbr.rel (%p216) target = $region66
                $region63: #{fno2d_forward.9} parent=58 // loop_body
                  _
                $region64: #{fno2d_forward.9} parent=58 // loop_footer
                  %s219 = sadd.s32 1, %s215
                $region65: #{fno2d_forward.9} parent=58 // loop_footer_branch
                  %214 = sbr.rel target = $region61
                $region66: #{fno2d_forward.9} parent=58 // loop_exit
                  _
                %s223 = ssub.s32 16, 1
                loop: start=0, step=1, limit=1
                $region67: #{fno2d_forward.9} parent=58 // loop_pre_header
                  _
                $region68: #{fno2d_forward.9} parent=58 // loop_header
                  %s225 = sphi 0, %s229
                  %p226 = scmp.ge.s32.totalorder %s225, 1
                  %s230 = sphi %s187, %s187
                  %s231 = sphi %s185, %s185
                $region69: #{fno2d_forward.9} parent=58 // loop_header_branch
                  %228 = sbr.rel (%p226) target = $region73
                $region70: #{fno2d_forward.9} parent=58 // loop_body
                  %v232 = vld [vmem:[%s230] sm:%s223]
                  %233 = vst [vmem:[%s231] sm:%s223] %v232
                  %v234 = vld [vmem:[%s230 + $0x10] sm:%s223]
                  %235 = vst [vmem:[%s231 + $0x4] sm:%s223] %v234
                  %v236 = vld [vmem:[%s230 + $0x20] sm:%s223]
                  %237 = vst [vmem:[%s231 + $0x8] sm:%s223] %v236
                  %v238 = vld [vmem:[%s230 + $0x30] sm:%s223]
                  %239 = vst [vmem:[%s231 + $0xc] sm:%s223] %v238
                $region71: #{fno2d_forward.9} parent=58 // loop_footer
                  %s229 = sadd.s32 1, %s225
                $region72: #{fno2d_forward.9} parent=58 // loop_footer_branch
                  %224 = sbr.rel target = $region68
                $region73: #{fno2d_forward.9} parent=58 // loop_exit
                  _
              $region59: #{fno2d_forward.9} parent=43 // pred_fallthru
                _
            $region44: #{fno2d_forward.9} parent=39 // pred_fallthru
              _
            // Predicated region
            $region45: #{fno2d_forward.9} parent=39 // pred_check
              _
            $region46: #{fno2d_forward.9} parent=39 // pred_check_branch
              %193 = sbr.rel (0) target = $region48
            $region47: #{fno2d_forward.9} parent=39 // pred_region
              %s195 = ssub.s32 16, 1
              loop: start=0, step=1, limit=1
              $region49: #{fno2d_forward.9} parent=47 // loop_pre_header
                _
              $region50: #{fno2d_forward.9} parent=47 // loop_header
                %s197 = sphi 0, %s201
                %p198 = scmp.ge.s32.totalorder %s197, 1
                %s202 = sphi %s187, %s187
                %s203 = sphi %s185, %s185
              $region51: #{fno2d_forward.9} parent=47 // loop_header_branch
                %200 = sbr.rel (%p198) target = $region55
              $region52: #{fno2d_forward.9} parent=47 // loop_body
                %v204 = vld [vmem:[%s202] sm:%s195]
                %205 = vst [vmem:[%s203] sm:%s195] %v204
                %v206 = vld [vmem:[%s202 + $0x10] sm:%s195]
                %207 = vst [vmem:[%s203 + $0x4] sm:%s195] %v206
                %v208 = vld [vmem:[%s202 + $0x20] sm:%s195]
                %209 = vst [vmem:[%s203 + $0x8] sm:%s195] %v208
                %v210 = vld [vmem:[%s202 + $0x30] sm:%s195]
                %211 = vst [vmem:[%s203 + $0xc] sm:%s195] %v210
              $region53: #{fno2d_forward.9} parent=47 // loop_footer
                %s201 = sadd.s32 1, %s197
              $region54: #{fno2d_forward.9} parent=47 // loop_footer_branch
                %196 = sbr.rel target = $region50
              $region55: #{fno2d_forward.9} parent=47 // loop_exit
                _
            $region48: #{fno2d_forward.9} parent=39 // pred_fallthru
              _
          $region40: #{fno2d_forward.9} parent=35 // pred_fallthru
            _
          %240 = vnop
        $region36: #{fno2d_forward.9} parent=31 // pred_fallthru
          _
      $region32: #{fno2d_forward.9} parent=5 // pred_fallthru
        _
      %p241 = scmp.le.s32.totalorder 1, %s12
      %p242 = scmp.lt.s32.totalorder %s12, 5
      %p243 = pnand %p241, %p242
      %p244 = pneg %p243
      // Predicated region
      $region74: #{fno2d_forward.9} parent=5 // pred_check
        _
      $region75: #{fno2d_forward.9} parent=5 // pred_check_branch
        %246 = sbr.rel (%p243) target = $region77
      $region76: #{fno2d_forward.9} parent=5 // pred_region
        %s247 = ssub.s32 %s12, 1
        %s248 = sand.u32 %s25, 1
        %s249 = sand.u32 %s25, 1
        %s250 = smul.addr %s249, 16
        %s251 = scalar_lea.vmem [#allocation3], %s250
        // Predicated region
        $region78: #{fno2d_forward.9} parent=76 // pred_check
          %p252 = pneg %p38
        $region79: #{fno2d_forward.9} parent=76 // pred_check_branch
          %254 = sbr.rel (%p252) target = $region81
        $region80: #{fno2d_forward.9} parent=76 // pred_region
          _
        $region81: #{fno2d_forward.9} parent=76 // pred_fallthru
          _
        %s255 = sand.u32 %s25, 1
        %s256 = sand.u32 %s25, 1
        %s257 = smul.addr %s256, 16
        %s258 = scalar_lea.vmem [#allocation3], %s257
        %p259 = pneg %p38
        %p260 = pneg %p35
        %p261 = pneg %p59
        %p262 = pneg %p56
        %p263 = pneg %p80
        %p264 = pneg %p77
        %p265 = pneg %p101
        %p266 = pneg %p98
        %p267 = pneg %p122
        %p268 = pneg %p119
        %p269 = pneg %p148
        %p270 = pneg %p145
        %p271 = scmp.lt.s32.totalorder %s17, 3
        %s272 = scalar_select %p271, %s17, 3
        %s273 = scalar_lea.vmem %s5, %s272
        %p274 = scmp.lt.s32.totalorder %s17, 3
        %s275 = scalar_select %p274, %s17, 3
        %s276 = scalar_lea.vmem %s5, %s275
        %v278 = vld [vmem:[%s1] sm:$0xf]
        %v279 = vld [vmem:[%s1 + $0x4] sm:$0xf]
        %v280 = vld [vmem:[%s1 + $0x8] sm:$0xf]
        %v281 = vld [vmem:[%s1 + $0xc] sm:$0xf]
        %v282 = vld [vmem:[%s1 + $0x10] sm:$0xf]
        %v283 = vld [vmem:[%s1 + $0x14] sm:$0xf]
        %v284 = vld [vmem:[%s1 + $0x18] sm:$0xf]
        %v285 = vld [vmem:[%s1 + $0x1c] sm:$0xf]
        %v286 = vld [vmem:[%s251] sm:$0xf]
        %v287 = vld [vmem:[%s251 + $0x4] sm:$0xf]
        %v288 = vld [vmem:[%s251 + $0x8] sm:$0xf]
        %v289 = vld [vmem:[%s251 + $0xc] sm:$0xf]
        %v290 = vld [vmem:[%s2] sm:$0xff]
        %v291 = vld [vmem:[%s2 + $0x8] sm:$0xff]
        %v292 = vld [vmem:[%s2 + $0x10] sm:$0xff]
        %v293 = vld [vmem:[%s2 + $0x18] sm:$0xff]
        %v294 = vld [vmem:[%s2 + $0x20] sm:$0xff]
        %v295 = vld [vmem:[%s2 + $0x28] sm:$0xff]
        %v296 = vld [vmem:[%s2 + $0x30] sm:$0xff]
        %v297 = vld [vmem:[%s2 + $0x38] sm:$0xff]
        %299 = vset.pattern.permute.xlu0 0
        %300 = vperm.xlu0 %299, %v290
        %v301 = vpop.permute.xlu0 %300
        %304 = vset.pattern.permute.xlu0 0
        %305 = vperm.xlu0 %304, %v291
        %v306 = vpop.permute.xlu0 %305
        %309 = vset.pattern.permute.xlu0 0
        %310 = vperm.xlu0 %309, %v292
        %v311 = vpop.permute.xlu0 %310
        %314 = vset.pattern.permute.xlu0 0
        %315 = vperm.xlu0 %314, %v293
        %v316 = vpop.permute.xlu0 %315
        %319 = vset.pattern.permute.xlu0 0
        %320 = vperm.xlu0 %319, %v294
        %v321 = vpop.permute.xlu0 %320
        %324 = vset.pattern.permute.xlu0 0
        %325 = vperm.xlu0 %324, %v295
        %v326 = vpop.permute.xlu0 %325
        %329 = vset.pattern.permute.xlu0 0
        %330 = vperm.xlu0 %329, %v296
        %v331 = vpop.permute.xlu0 %330
        %334 = vset.pattern.permute.xlu0 0
        %335 = vperm.xlu0 %334, %v297
        %v336 = vpop.permute.xlu0 %335
        %v346 = vunpack.c.l.b16 %v278
        %v347 = vunpack.c.l.b16 %v279
        %v348 = vunpack.c.l.b16 %v280
        %v349 = vunpack.c.l.b16 %v281
        %v350 = vunpack.c.l.b16 %v282
        %v351 = vunpack.c.l.b16 %v283
        %v352 = vunpack.c.l.b16 %v284
        %v353 = vunpack.c.l.b16 %v285
        %v354 = vpack.c.b16 %v347, %v346
        %v355 = vpack.c.b16 %v349, %v348
        %v356 = vpack.c.b16 %v351, %v350
        %v357 = vpack.c.b16 %v353, %v352
        %v362 = vunpack.c.l.b16 %v286
        %v363 = vunpack.c.l.b16 %v287
        %v364 = vunpack.c.l.b16 %v288
        %v365 = vunpack.c.l.b16 %v289
        %v366 = vpack.c.b16 %v363, %v362
        %v367 = vpack.c.b16 %v365, %v364
        %vm370 = vcmask 261120
        %v372 = vsel %vm370, %v354, 0
        %v375 = vsel %vm370, %v355, 0
        %v378 = vsel %vm370, %v356, 0
        %v381 = vsel %vm370, %v357, 0
        %383 = vmatpush.bf16.msra.mxu0 0
        %384 = vmatpush.bf16.msra.mxu0 0
        %385 = vmatpush.bf16.msra.mxu0 0
        %386 = vmatpush.bf16.msra.mxu0 0
        %387 = vmatpush.bf16.msra.mxu0 0
        %388 = vmatpush.bf16.msra.mxu0 0
        %389 = vmatpush.bf16.msra.mxu0 %v367
        %390 = vmatpush.bf16.msra.mxu0 %v366
        %391 = vmatmul.bf16.gmra.mxu0 %v372
        %v392 = vpop.f32.mrf.mxu0
        %v393 = vadd.f32 %v301, %v392
        %v394 = vpop.f32.mrf.mxu0
        %v395 = vadd.f32 %v306, %v394
        %396 = vmatmul.bf16.gmra.mxu0 %v375
        %v397 = vpop.f32.mrf.mxu0
        %v398 = vadd.f32 %v311, %v397
        %v399 = vpop.f32.mrf.mxu0
        %v400 = vadd.f32 %v316, %v399
        %401 = vmatmul.bf16.gmra.mxu0 %v378
        %v402 = vpop.f32.mrf.mxu0
        %v403 = vadd.f32 %v321, %v402
        %v404 = vpop.f32.mrf.mxu0
        %v405 = vadd.f32 %v326, %v404
        %406 = vmatmul.bf16.gmra.mxu0 %v381
        %v407 = vpop.f32.mrf.mxu0
        %v408 = vadd.f32 %v331, %v407
        %v409 = vpop.f32.mrf.mxu0
        %v410 = vadd.f32 %v336, %v409
        %411 = vdwg.mxu0
        %v412 = vmul.f32 %v393, 0.5
        %v413 = vmul.f32 %v395, 0.5
        %v414 = vmul.f32 %v398, 0.5
        %v415 = vmul.f32 %v400, 0.5
        %v416 = vmul.f32 %v403, 0.5
        %v417 = vmul.f32 %v405, 0.5
        %v418 = vmul.f32 %v408, 0.5
        %v419 = vmul.f32 %v410, 0.5
        %v420 = vmul.f32 %v393, 0.70710677
        %v421 = vmul.f32 %v395, 0.70710677
        %v422 = vmul.f32 %v398, 0.70710677
        %v423 = vmul.f32 %v400, 0.70710677
        %v424 = vmul.f32 %v403, 0.70710677
        %v425 = vmul.f32 %v405, 0.70710677
        %v426 = vmul.f32 %v408, 0.70710677
        %v427 = vmul.f32 %v410, 0.70710677
        %v428 = vand.u32 2147483647, %v420
        %v429 = vand.u32 2147483647, %v421
        %v430 = vand.u32 2147483647, %v422
        %v431 = vand.u32 2147483647, %v423
        %v432 = vand.u32 2147483647, %v424
        %v433 = vand.u32 2147483647, %v425
        %v434 = vand.u32 2147483647, %v426
        %v435 = vand.u32 2147483647, %v427
        %v436 = vmul.f32 %v428, 0.3275911
        %v437 = vmul.f32 %v429, 0.3275911
        %v438 = vmul.f32 %v430, 0.3275911
        %v439 = vmul.f32 %v431, 0.3275911
        %v440 = vmul.f32 %v432, 0.3275911
        %v441 = vmul.f32 %v433, 0.3275911
        %v442 = vmul.f32 %v434, 0.3275911
        %v443 = vmul.f32 %v435, 0.3275911
        %v444 = vadd.f32 %v436, 1.0
        %v445 = vadd.f32 %v437, 1.0
        %v446 = vadd.f32 %v438, 1.0
        %v447 = vadd.f32 %v439, 1.0
        %v448 = vadd.f32 %v440, 1.0
        %v449 = vadd.f32 %v441, 1.0
        %v450 = vadd.f32 %v442, 1.0
        %v451 = vadd.f32 %v443, 1.0
        %v452 = vrcp.pop %v444
        %v453 = vmul.f32 %v444, %v452
        %v454 = vsub.f32 1.0, %v453
        %v455 = vmul.f32 %v452, %v454
        %v456 = vadd.f32 %v452, %v455
        %vm457 = vweird.f32 %v444
        %vm458 = vweird.f32 %v452
        %vm459 = vmor %vm457, %vm458
        %v460 = vsel %vm459, %v452, %v456
        %v461 = vand.u32 2147483647, %v444
        %vm462 = vcmp.eq.f32.partialorder %v461, 8.507059e+37
        %v463 = vand.u32 %v444, 2147483648
        %v464 = vor.u32 1.1754944e-38, %v463
        %v465 = vsel %vm462, %v464, %v460
        %v466 = vmul.f32 1.0, %v465
        %v467 = vrcp.pop %v445
        %v468 = vmul.f32 %v445, %v467
        %v469 = vsub.f32 1.0, %v468
        %v470 = vmul.f32 %v467, %v469
        %v471 = vadd.f32 %v467, %v470
        %vm472 = vweird.f32 %v445
        %vm473 = vweird.f32 %v467
        %vm474 = vmor %vm472, %vm473
        %v475 = vsel %vm474, %v467, %v471
        %v476 = vand.u32 2147483647, %v445
        %vm477 = vcmp.eq.f32.partialorder %v476, 8.507059e+37
        %v478 = vand.u32 %v445, 2147483648
        %v479 = vor.u32 1.1754944e-38, %v478
        %v480 = vsel %vm477, %v479, %v475
        %v481 = vmul.f32 1.0, %v480
        %v482 = vrcp.pop %v446
        %v483 = vmul.f32 %v446, %v482
        %v484 = vsub.f32 1.0, %v483
        %v485 = vmul.f32 %v482, %v484
        %v486 = vadd.f32 %v482, %v485
        %vm487 = vweird.f32 %v446
        %vm488 = vweird.f32 %v482
        %vm489 = vmor %vm487, %vm488
        %v490 = vsel %vm489, %v482, %v486
        %v491 = vand.u32 2147483647, %v446
        %vm492 = vcmp.eq.f32.partialorder %v491, 8.507059e+37
        %v493 = vand.u32 %v446, 2147483648
        %v494 = vor.u32 1.1754944e-38, %v493
        %v495 = vsel %vm492, %v494, %v490
        %v496 = vmul.f32 1.0, %v495
        %v497 = vrcp.pop %v447
        %v498 = vmul.f32 %v447, %v497
        %v499 = vsub.f32 1.0, %v498
        %v500 = vmul.f32 %v497, %v499
        %v501 = vadd.f32 %v497, %v500
        %vm502 = vweird.f32 %v447
        %vm503 = vweird.f32 %v497
        %vm504 = vmor %vm502, %vm503
        %v505 = vsel %vm504, %v497, %v501
        %v506 = vand.u32 2147483647, %v447
        %vm507 = vcmp.eq.f32.partialorder %v506, 8.507059e+37
        %v508 = vand.u32 %v447, 2147483648
        %v509 = vor.u32 1.1754944e-38, %v508
        %v510 = vsel %vm507, %v509, %v505
        %v511 = vmul.f32 1.0, %v510
        %v512 = vrcp.pop %v448
        %v513 = vmul.f32 %v448, %v512
        %v514 = vsub.f32 1.0, %v513
        %v515 = vmul.f32 %v512, %v514
        %v516 = vadd.f32 %v512, %v515
        %vm517 = vweird.f32 %v448
        %vm518 = vweird.f32 %v512
        %vm519 = vmor %vm517, %vm518
        %v520 = vsel %vm519, %v512, %v516
        %v521 = vand.u32 2147483647, %v448
        %vm522 = vcmp.eq.f32.partialorder %v521, 8.507059e+37
        %v523 = vand.u32 %v448, 2147483648
        %v524 = vor.u32 1.1754944e-38, %v523
        %v525 = vsel %vm522, %v524, %v520
        %v526 = vmul.f32 1.0, %v525
        %v527 = vrcp.pop %v449
        %v528 = vmul.f32 %v449, %v527
        %v529 = vsub.f32 1.0, %v528
        %v530 = vmul.f32 %v527, %v529
        %v531 = vadd.f32 %v527, %v530
        %vm532 = vweird.f32 %v449
        %vm533 = vweird.f32 %v527
        %vm534 = vmor %vm532, %vm533
        %v535 = vsel %vm534, %v527, %v531
        %v536 = vand.u32 2147483647, %v449
        %vm537 = vcmp.eq.f32.partialorder %v536, 8.507059e+37
        %v538 = vand.u32 %v449, 2147483648
        %v539 = vor.u32 1.1754944e-38, %v538
        %v540 = vsel %vm537, %v539, %v535
        %v541 = vmul.f32 1.0, %v540
        %v542 = vrcp.pop %v450
        %v543 = vmul.f32 %v450, %v542
        %v544 = vsub.f32 1.0, %v543
        %v545 = vmul.f32 %v542, %v544
        %v546 = vadd.f32 %v542, %v545
        %vm547 = vweird.f32 %v450
        %vm548 = vweird.f32 %v542
        %vm549 = vmor %vm547, %vm548
        %v550 = vsel %vm549, %v542, %v546
        %v551 = vand.u32 2147483647, %v450
        %vm552 = vcmp.eq.f32.partialorder %v551, 8.507059e+37
        %v553 = vand.u32 %v450, 2147483648
        %v554 = vor.u32 1.1754944e-38, %v553
        %v555 = vsel %vm552, %v554, %v550
        %v556 = vmul.f32 1.0, %v555
        %v557 = vrcp.pop %v451
        %v558 = vmul.f32 %v451, %v557
        %v559 = vsub.f32 1.0, %v558
        %v560 = vmul.f32 %v557, %v559
        %v561 = vadd.f32 %v557, %v560
        %vm562 = vweird.f32 %v451
        %vm563 = vweird.f32 %v557
        %vm564 = vmor %vm562, %vm563
        %v565 = vsel %vm564, %v557, %v561
        %v566 = vand.u32 2147483647, %v451
        %vm567 = vcmp.eq.f32.partialorder %v566, 8.507059e+37
        %v568 = vand.u32 %v451, 2147483648
        %v569 = vor.u32 1.1754944e-38, %v568
        %v570 = vsel %vm567, %v569, %v565
        %v571 = vmul.f32 1.0, %v570
        %v572 = vmul.f32 %v466, 1.0614054
        %v573 = vmul.f32 %v481, 1.0614054
        %v574 = vmul.f32 %v496, 1.0614054
        %v575 = vmul.f32 %v511, 1.0614054
        %v576 = vmul.f32 %v526, 1.0614054
        %v577 = vmul.f32 %v541, 1.0614054
        %v578 = vmul.f32 %v556, 1.0614054
        %v579 = vmul.f32 %v571, 1.0614054
        %v580 = vadd.f32 %v572, -1.4531521
        %v581 = vadd.f32 %v573, -1.4531521
        %v582 = vadd.f32 %v574, -1.4531521
        %v583 = vadd.f32 %v575, -1.4531521
        %v584 = vadd.f32 %v576, -1.4531521
        %v585 = vadd.f32 %v577, -1.4531521
        %v586 = vadd.f32 %v578, -1.4531521
        %v587 = vadd.f32 %v579, -1.4531521
        %v588 = vmul.f32 %v466, %v580
        %v589 = vmul.f32 %v481, %v581
        %v590 = vmul.f32 %v496, %v582
        %v591 = vmul.f32 %v511, %v583
        %v592 = vmul.f32 %v526, %v584
        %v593 = vmul.f32 %v541, %v585
        %v594 = vmul.f32 %v556, %v586
        %v595 = vmul.f32 %v571, %v587
        %v596 = vadd.f32 %v588, 1.4214138
        %v597 = vadd.f32 %v589, 1.4214138
        %v598 = vadd.f32 %v590, 1.4214138
        %v599 = vadd.f32 %v591, 1.4214138
        %v600 = vadd.f32 %v592, 1.4214138
        %v601 = vadd.f32 %v593, 1.4214138
        %v602 = vadd.f32 %v594, 1.4214138
        %v603 = vadd.f32 %v595, 1.4214138
        %v604 = vmul.f32 %v466, %v596
        %v605 = vmul.f32 %v481, %v597
        %v606 = vmul.f32 %v496, %v598
        %v607 = vmul.f32 %v511, %v599
        %v608 = vmul.f32 %v526, %v600
        %v609 = vmul.f32 %v541, %v601
        %v610 = vmul.f32 %v556, %v602
        %v611 = vmul.f32 %v571, %v603
        %v612 = vadd.f32 %v604, -0.28449672
        %v613 = vadd.f32 %v605, -0.28449672
        %v614 = vadd.f32 %v606, -0.28449672
        %v615 = vadd.f32 %v607, -0.28449672
        %v616 = vadd.f32 %v608, -0.28449672
        %v617 = vadd.f32 %v609, -0.28449672
        %v618 = vadd.f32 %v610, -0.28449672
        %v619 = vadd.f32 %v611, -0.28449672
        %v620 = vmul.f32 %v466, %v612
        %v621 = vmul.f32 %v481, %v613
        %v622 = vmul.f32 %v496, %v614
        %v623 = vmul.f32 %v511, %v615
        %v624 = vmul.f32 %v526, %v616
        %v625 = vmul.f32 %v541, %v617
        %v626 = vmul.f32 %v556, %v618
        %v627 = vmul.f32 %v571, %v619
        %v628 = vadd.f32 %v620, 0.2548296
        %v629 = vadd.f32 %v621, 0.2548296
        %v630 = vadd.f32 %v622, 0.2548296
        %v631 = vadd.f32 %v623, 0.2548296
        %v632 = vadd.f32 %v624, 0.2548296
        %v633 = vadd.f32 %v625, 0.2548296
        %v634 = vadd.f32 %v626, 0.2548296
        %v635 = vadd.f32 %v627, 0.2548296
        %v636 = vmul.f32 %v466, %v628
        %v637 = vmul.f32 %v481, %v629
        %v638 = vmul.f32 %v496, %v630
        %v639 = vmul.f32 %v511, %v631
        %v640 = vmul.f32 %v526, %v632
        %v641 = vmul.f32 %v541, %v633
        %v642 = vmul.f32 %v556, %v634
        %v643 = vmul.f32 %v571, %v635
        %v644 = vsub.f32 0.0, %v428
        %v645 = vsub.f32 0.0, %v429
        %v646 = vsub.f32 0.0, %v430
        %v647 = vsub.f32 0.0, %v431
        %v648 = vsub.f32 0.0, %v432
        %v649 = vsub.f32 0.0, %v433
        %v650 = vsub.f32 0.0, %v434
        %v651 = vsub.f32 0.0, %v435
        %v652 = vmul.f32 %v644, %v428
        %v653 = vmul.f32 %v645, %v429
        %v654 = vmul.f32 %v646, %v430
        %v655 = vmul.f32 %v647, %v431
        %v656 = vmul.f32 %v648, %v432
        %v657 = vmul.f32 %v649, %v433
        %v658 = vmul.f32 %v650, %v434
        %v659 = vmul.f32 %v651, %v435
        %v660 = vmul.f32 %v652, 1.442695
        %v661 = vpow.pop %v660
        %v662 = vmul.f32 %v653, 1.442695
        %v663 = vpow.pop %v662
        %v664 = vmul.f32 %v654, 1.442695
        %v665 = vpow.pop %v664
        %v666 = vmul.f32 %v655, 1.442695
        %v667 = vpow.pop %v666
        %v668 = vmul.f32 %v656, 1.442695
        %v669 = vpow.pop %v668
        %v670 = vmul.f32 %v657, 1.442695
        %v671 = vpow.pop %v670
        %v672 = vmul.f32 %v658, 1.442695
        %v673 = vpow.pop %v672
        %v674 = vmul.f32 %v659, 1.442695
        %v675 = vpow.pop %v674
        %v676 = vmul.f32 %v636, %v661
        %v677 = vmul.f32 %v637, %v663
        %v678 = vmul.f32 %v638, %v665
        %v679 = vmul.f32 %v639, %v667
        %v680 = vmul.f32 %v640, %v669
        %v681 = vmul.f32 %v641, %v671
        %v682 = vmul.f32 %v642, %v673
        %v683 = vmul.f32 %v643, %v675
        %v684 = vsub.f32 1.0, %v676
        %v685 = vsub.f32 1.0, %v677
        %v686 = vsub.f32 1.0, %v678
        %v687 = vsub.f32 1.0, %v679
        %v688 = vsub.f32 1.0, %v680
        %v689 = vsub.f32 1.0, %v681
        %v690 = vsub.f32 1.0, %v682
        %v691 = vsub.f32 1.0, %v683
        %vm692 = vcmp.ge.f32.partialorder %v420, 0.0
        %vm693 = vcmp.ge.f32.partialorder %v421, 0.0
        %vm694 = vcmp.ge.f32.partialorder %v422, 0.0
        %vm695 = vcmp.ge.f32.partialorder %v423, 0.0
        %vm696 = vcmp.ge.f32.partialorder %v424, 0.0
        %vm697 = vcmp.ge.f32.partialorder %v425, 0.0
        %vm698 = vcmp.ge.f32.partialorder %v426, 0.0
        %vm699 = vcmp.ge.f32.partialorder %v427, 0.0
        %v700 = vsub.f32 0.0, %v684
        %v701 = vsub.f32 0.0, %v685
        %v702 = vsub.f32 0.0, %v686
        %v703 = vsub.f32 0.0, %v687
        %v704 = vsub.f32 0.0, %v688
        %v705 = vsub.f32 0.0, %v689
        %v706 = vsub.f32 0.0, %v690
        %v707 = vsub.f32 0.0, %v691
        %v708 = vsel %vm692, %v684, %v700
        %v709 = vsel %vm693, %v685, %v701
        %v710 = vsel %vm694, %v686, %v702
        %v711 = vsel %vm695, %v687, %v703
        %v712 = vsel %vm696, %v688, %v704
        %v713 = vsel %vm697, %v689, %v705
        %v714 = vsel %vm698, %v690, %v706
        %v715 = vsel %vm699, %v691, %v707
        %v716 = vadd.f32 %v708, 1.0
        %v717 = vadd.f32 %v709, 1.0
        %v718 = vadd.f32 %v710, 1.0
        %v719 = vadd.f32 %v711, 1.0
        %v720 = vadd.f32 %v712, 1.0
        %v721 = vadd.f32 %v713, 1.0
        %v722 = vadd.f32 %v714, 1.0
        %v723 = vadd.f32 %v715, 1.0
        %v724 = vmul.f32 %v412, %v716
        %v725 = vmul.f32 %v413, %v717
        %v726 = vmul.f32 %v414, %v718
        %v727 = vmul.f32 %v415, %v719
        %v728 = vmul.f32 %v416, %v720
        %v729 = vmul.f32 %v417, %v721
        %v730 = vmul.f32 %v418, %v722
        %v731 = vmul.f32 %v419, %v723
        %v732 = vld [vmem:[%s3] sm:$0x1]
        %v733 = vpack.c.bf16 %v725, %v724
        %v734 = vpack.c.bf16 %v727, %v726
        %v735 = vpack.c.bf16 %v729, %v728
        %v736 = vpack.c.bf16 %v731, %v730
        %s737 = sld [smem:[#allocation2]]
        %v738 = vstv %s737
        %vm739 = vcmask 523264
        %v741 = vsel %vm739, %v732, 0
        %743 = vmatpush.bf16.msra.mxu0 0
        %744 = vmatpush.bf16.msra.mxu0 0
        %745 = vmatpush.bf16.msra.mxu0 0
        %746 = vmatpush.bf16.msra.mxu0 0
        %747 = vmatpush.bf16.msra.mxu0 %v736
        %748 = vmatpush.bf16.msra.mxu0 %v735
        %749 = vmatpush.bf16.msra.mxu0 %v734
        %750 = vmatpush.bf16.msra.mxu0 %v733
        %751 = vmatmul.bf16.gmra.mxu0 %v741
        %v752 = vpop.f32.mrf.mxu0
        %v753 = vadd.f32 %v738, %v752
        %v754 = vpop.f32.mrf.mxu0
        %755 = vdwg.mxu0
        %756 = vst [vmem:[%s276] sm:$0x1] %v753
        %p757 = scmp.lt.s32.totalorder %s17, 3
        %s758 = scalar_select %p757, %s17, 3
        %s759 = scalar_lea.vmem %s5, %s758
        // Predicated region
        $region82: #{fno2d_forward.9} parent=76 // pred_check
          %p760 = pneg %p145
        $region83: #{fno2d_forward.9} parent=76 // pred_check_branch
          %762 = sbr.rel (%p760) target = $region85
        $region84: #{fno2d_forward.9} parent=76 // pred_region
          _
        $region85: #{fno2d_forward.9} parent=76 // pred_fallthru
          _
      $region77: #{fno2d_forward.9} parent=5 // pred_fallthru
        _
      %p763 = scmp.le.s32.totalorder 2, %s12
      // Predicated region
      $region86: #{fno2d_forward.9} parent=5 // pred_check
        %p764 = pneg %p763
      $region87: #{fno2d_forward.9} parent=5 // pred_check_branch
        %766 = sbr.rel (%p764) target = $region89
      $region88: #{fno2d_forward.9} parent=5 // pred_region
        %s767 = ssub.s32 %s12, 2
        // Predicated region
        $region90: #{fno2d_forward.9} parent=88 // pred_check
          %p768 = pneg %p151
        $region91: #{fno2d_forward.9} parent=88 // pred_check_branch
          %770 = sbr.rel (%p768) target = $region93
        $region92: #{fno2d_forward.9} parent=88 // pred_region
          %p771 = scmp.lt.s32.totalorder %s18, 3
          %s772 = scalar_select %p771, %s18, 3
          %s773 = scalar_lea.vmem %s5, %s772
        $region93: #{fno2d_forward.9} parent=88 // pred_fallthru
          _
      $region89: #{fno2d_forward.9} parent=5 // pred_fallthru
        _
    $region6: #{fno2d_forward.9} parent=1 // loop_footer
      %s16 = sadd.s32 1, %s12
    $region7: #{fno2d_forward.9} parent=1 // loop_footer_branch
      %11 = sbr.rel target = $region3
    $region8: #{fno2d_forward.9} parent=1 // loop_exit
      _

</llo_original>
